<compile_context>
chip_gen: v5e
topology: v5e:2x2
jax: 0.10.0
libtpu: 0.0.40
codegen_flags: <defaults>
</compile_context>

<pallas_src>
import functools

import jax
import jax.numpy as jnp
from jax.experimental import pallas as pl
from jax.experimental.pallas import tpu as pltpu

_HIGHEST = jax.lax.Precision.HIGHEST


def _ntn_body(e1_ref, e2_ref, w1_ref, vb_ref, st_ref, bsum_ref, precision):
    """Shared compute. Returns nkb (K, B) and ff (B, K).

    nkb[i, j] = sum_d e2[j, d] * (e1 @ W[i])[j, d] + sum(b)
    ff        = e1 @ V[:D] + e2 @ V[D:]
    """
    k, kd = st_ref.shape                                   # K, K*D
    e1 = e1_ref[...]                                       # (B, D)
    e2 = e2_ref[...]                                       # (B, D)

    # One MXU push for everything that contracts with e1:
    #   y = e1 @ [ W_all | V_top ]  -> (B, K*D + K)
    # (NOTE: at scale on v6e/v7x use precision=DEFAULT / bf16 inputs here.)
    y = jnp.dot(e1, w1_ref[...],
                preferred_element_type=jnp.float32, precision=precision)
    p = y[:, :kd]                                          # (B, K*D): block i is e1 @ W[i]
    ff = y[:, kd:] + jnp.dot(e2, vb_ref[...],
                             preferred_element_type=jnp.float32,
                             precision=precision)          # (B, K)

    # e2 tiled K times along lanes, built in-kernel (no wrapper jnp.tile and
    # no extra HBM round trip).
    e2_tiled = jnp.concatenate([e2] * k, axis=-1)          # (B, K*D)
    q = p * e2_tiled

    # Static block-diagonal 0/1 selector contracted as st @ q^T -> (K, B):
    # replaces the K-iteration column loop with one MXU op.
    # TODO(synk): if bundle dumps show an XLU relayout of q for the A@B^T
    # form, swap operands to q @ st^T and transpose the small result instead.
    nkb = jax.lax.dot_general(
        st_ref[...], q,
        dimension_numbers=(((1,), (1,)), ((), ())),
        preferred_element_type=jnp.float32, precision=precision)

    return nkb + bsum_ref[...], ff                         # (1,1) bias broadcasts


def _ntn_fused_kernel(e1_ref, e2_ref, w1_ref, vb_ref, st_ref, bsum_ref,
                      out_ref, *, precision):
    # B == K: PyTorch's reshape(cat(btp_list, 0), (B, K)) equals the (K, B)
    # matrix nkb read as (B, K), so the whole epilogue fuses in-kernel.
    nkb, ff = _ntn_body(e1_ref, e2_ref, w1_ref, vb_ref, st_ref, bsum_ref,
                        precision)
    out_ref[...] = jnp.tanh(nkb + ff)


def _ntn_split_kernel(e1_ref, e2_ref, w1_ref, vb_ref, st_ref, bsum_ref,
                      nkb_ref, ff_ref, *, precision):
    nkb, ff = _ntn_body(e1_ref, e2_ref, w1_ref, vb_ref, st_ref, bsum_ref,
                        precision)
    nkb_ref[...] = nkb
    ff_ref[...] = ff


def prepare_ntn_params(W, V, b):
    """Hoisted out of the forward path: run once per parameter update."""
    K, D, _ = W.shape
    w2 = jnp.transpose(W, (1, 0, 2)).reshape(D, K * D)     # w2[e, i*D+d] = W[i, e, d]
    w1 = jnp.concatenate([w2, V[:D]], axis=1)              # (D, K*D + K), no zero block
    v_bot = V[D:]                                          # (D, K)
    st = jnp.kron(jnp.eye(K, dtype=W.dtype),
                  jnp.ones((1, D), W.dtype))               # (K, K*D) block-diag selector
    b_sum = jnp.sum(b).reshape(1, 1).astype(jnp.float32)   # b broadcasts over batch
    return w1, v_bot, st, b_sum


@functools.partial(jax.jit, static_argnames=("precision",))
def ntn_forward_batched(e1s, e2s, w1, v_bot, st, b_sum, *, precision=_HIGHEST):
    """N independent NTN instances (shared weights) in one gridded pallas_call."""
    n, bsz, d = e1s.shape
    k, kd = st.shape

    # Weights / selector / bias: constant index_map -> VMEM-resident across
    # the grid; activations and output stream per instance.
    in_specs = [
        pl.BlockSpec((None, bsz, d), lambda i: (i, 0, 0)),          # e1
        pl.BlockSpec((None, bsz, d), lambda i: (i, 0, 0)),          # e2
        pl.BlockSpec((d, kd + k), lambda i: (0, 0)),                # [W_all | V_top]
        pl.BlockSpec((d, k), lambda i: (0, 0)),                     # V_bot
        pl.BlockSpec((k, kd), lambda i: (0, 0)),                    # selector
        pl.BlockSpec((1, 1), lambda i: (0, 0)),                     # sum(b)
    ]

    flops = n * (2 * bsz * d * (kd + k) + 2 * bsz * d * k + 2 * k * bsz * kd)
    bytes_accessed = 4 * (2 * n * bsz * d + d * (kd + k) + d * k + k * kd + 1
                          + 2 * n * bsz * k)
    cost = pl.CostEstimate(flops=flops, transcendentals=n * bsz * k,
                           bytes_accessed=bytes_accessed)
    cparams = pltpu.CompilerParams(
        dimension_semantics=("parallel",),       # v7x: shard instances over 2 TCs
        vmem_limit_bytes=32 * 1024 * 1024)

    # TODO(synk): at large instance counts, pack >=16 instances per grid step
    # so the output store is 128-lane dense and the MXU M-dim fills (128 rows
    # on v5e, 256 on v6e/v7x); the per-instance reshape scramble makes that
    # packing nontrivial, so one instance per grid step is kept here.

    if bsz == k:
        return pl.pallas_call(
            functools.partial(_ntn_fused_kernel, precision=precision),
            grid=(n,),
            in_specs=in_specs,
            out_specs=pl.BlockSpec((None, bsz, k), lambda i: (i, 0, 0)),
            out_shape=jax.ShapeDtypeStruct((n, bsz, k), jnp.float32),
            compiler_params=cparams,
            cost_estimate=cost,
        )(e1s, e2s, w1, v_bot, st, b_sum)

    nkb_all, ff_all = pl.pallas_call(
        functools.partial(_ntn_split_kernel, precision=precision),
        grid=(n,),
        in_specs=in_specs,
        out_specs=(pl.BlockSpec((None, k, bsz), lambda i: (i, 0, 0)),
                   pl.BlockSpec((None, bsz, k), lambda i: (i, 0, 0))),
        out_shape=(jax.ShapeDtypeStruct((n, k, bsz), jnp.float32),
                   jax.ShapeDtypeStruct((n, bsz, k), jnp.float32)),
        compiler_params=cparams,
        cost_estimate=cost,
    )(e1s, e2s, w1, v_bot, st, b_sum)
    # TODO(synk): for B != K, PyTorch's reshape(cat(btp_list, 0), (B, K)) mixes
    # batch rows; it is exactly the row-major reshape of the (K, B) nkb and is
    # applied here outside the kernel (not lane/sublane-local).
    return jnp.tanh(nkb_all.reshape(n, bsz, k) + ff_all)


def ntn_forward(e1, e2, w1, v_bot, st, b_sum, *, precision=_HIGHEST):
    """Single NTN instance (grid of 1)."""
    return ntn_forward_batched(e1[None], e2[None], w1, v_bot, st, b_sum,
                               precision=precision)[0]


def _xavier_normal(key, shape, fan_in, fan_out):
    std = (2.0 / (fan_in + fan_out)) ** 0.5
    return std * jax.random.normal(key, shape, dtype=jnp.float32)


def _reference(e1, e2, W, V, b):
    """Pure-JAX replica of the PyTorch forward (f32, full precision)."""
    B = e1.shape[0]
    K = W.shape[0]
    ff = jnp.dot(jnp.concatenate([e1, e2], axis=1), V, precision=_HIGHEST)
    btp = [jnp.sum(e2 * jnp.dot(e1, W[i], precision=_HIGHEST) + b, axis=1)
           for i in range(K)]
    bil = jnp.concatenate(btp, axis=0).reshape(B, K)
    return jnp.tanh(bil + ff)


if __name__ == "__main__":
    D, K = 128, 8                     # embed_dim, output_dim
    key = jax.random.PRNGKey(0)
    kw, kv, kb, kx = jax.random.split(key, 4)

    # Deterministic parameter init (Xavier-normal fan computation a la torch).
    W = _xavier_normal(kw, (K, D, D), fan_in=D * D, fan_out=K * D)
    V = _xavier_normal(kv, (2 * D, K), fan_in=K, fan_out=2 * D)
    b = _xavier_normal(kb, (1, D), fan_in=D, fan_out=1)

    # Hoisted weight prep (once per parameter update).
    params = prepare_ntn_params(W, V, b)

    # --- batched: N independent instances, B == K fused in-kernel epilogue ---
    N, B = 4, 8
    k1, k2, k3, k4 = jax.random.split(kx, 4)
    e1s = jax.random.normal(k1, (N, B, D), dtype=jnp.float32)
    e2s = jax.random.normal(k2, (N, B, D), dtype=jnp.float32)
    out_b = jax.block_until_ready(ntn_forward_batched(e1s, e2s, *params))
    assert out_b.shape == (N, B, K)
    for i in range(N):
        ref = _reference(e1s[i], e2s[i], W, V, b)
        assert jnp.allclose(out_b[i], ref, atol=1e-4, rtol=1e-4), "batched mismatch"

    # --- single instance (grid of 1, same kernel) ---
    out_1 = jax.block_until_ready(ntn_forward(e1s[0], e2s[0], *params))
    assert jnp.allclose(out_1, _reference(e1s[0], e2s[0], W, V, b),
                        atol=1e-4, rtol=1e-4), "single-instance mismatch"

    # --- B != K general path (split kernel + out-of-kernel reshape) ---
    Bq = 4
    e1q = jax.random.normal(k3, (1, Bq, D), dtype=jnp.float32)
    e2q = jax.random.normal(k4, (1, Bq, D), dtype=jnp.float32)
    out_q = jax.block_until_ready(ntn_forward_batched(e1q, e2q, *params))
    assert out_q.shape == (1, Bq, K)
    assert jnp.allclose(out_q[0], _reference(e1q[0], e2q[0], W, V, b),
                        atol=1e-4, rtol=1e-4), "B != K path mismatch"

    print("KERNEL_OK")
</pallas_src>

<mosaic_0001>
module attributes {stable_mosaic.version = 11 : i64} {
  func.func @_ntn_fused_kernel(%arg0: i32, %arg1: memref<1x8x128xf32, #tpu.memory_space<vmem>>, %arg2: memref<1x8x128xf32, #tpu.memory_space<vmem>>, %arg3: memref<128x1032xf32, #tpu.memory_space<vmem>>, %arg4: memref<128x8xf32, #tpu.memory_space<vmem>>, %arg5: memref<8x1024xf32, #tpu.memory_space<vmem>>, %arg6: memref<1x1xf32, #tpu.memory_space<vmem>>, %arg7: memref<1x8x8xf32, #tpu.memory_space<vmem>>) attributes {dimension_semantics = [#tpu.dimension_semantics<parallel>], iteration_bounds = array<i64: 4>, scalar_prefetch = 0 : i64, scratch_operands = 0 : i64, tpu.core_type = #tpu.core_type<tc>, window_params = [{transform_indices = @transform_0, window_bounds = array<i64: 1, 8, 128>}, {transform_indices = @transform_1, window_bounds = array<i64: 1, 8, 128>}, {pipeline_mode = #tpu.pipeline_mode<synchronous>, transform_indices = @transform_2, window_bounds = array<i64: 128, 1032>}, {pipeline_mode = #tpu.pipeline_mode<synchronous>, transform_indices = @transform_3, window_bounds = array<i64: 128, 8>}, {pipeline_mode = #tpu.pipeline_mode<synchronous>, transform_indices = @transform_4, window_bounds = array<i64: 8, 1024>}, {pipeline_mode = #tpu.pipeline_mode<synchronous>, transform_indices = @transform_5, window_bounds = array<i64: 1, 1>}, {transform_indices = @transform_6, window_bounds = array<i64: 1, 8, 8>}]} {
    %c0 = arith.constant 0 : index
    %c0_0 = arith.constant 0 : index
    %c0_1 = arith.constant 0 : index
    %0 = vector.load %arg1[%c0, %c0_0, %c0_1] : memref<1x8x128xf32, #tpu.memory_space<vmem>>, vector<1x8x128xf32>
    %1 = vector.shape_cast %0 : vector<1x8x128xf32> to vector<8x128xf32>
    %c0_2 = arith.constant 0 : index
    %c0_3 = arith.constant 0 : index
    %c0_4 = arith.constant 0 : index
    %2 = vector.load %arg2[%c0_2, %c0_3, %c0_4] : memref<1x8x128xf32, #tpu.memory_space<vmem>>, vector<1x8x128xf32>
    %3 = vector.shape_cast %2 : vector<1x8x128xf32> to vector<8x128xf32>
    %c0_5 = arith.constant 0 : index
    %c0_6 = arith.constant 0 : index
    %4 = vector.load %arg3[%c0_5, %c0_6] : memref<128x1032xf32, #tpu.memory_space<vmem>>, vector<128x1032xf32>
    %cst = arith.constant dense<0.000000e+00> : vector<8x1032xf32>
    %5 = tpu.matmul %1, %4, %cst {dimension_numbers = #tpu.dot_dimension_numbers<[1], [0], [0], [1], [0, 0, 1, 1], [], []>, precision = #tpu.contract_precision<fp32>} : vector<8x128xf32>, vector<128x1032xf32>, vector<8x1032xf32> -> vector<8x1032xf32>
    %6 = vector.extract_strided_slice %5 {offsets = [0, 0], sizes = [8, 1024], strides = [1, 1]} : vector<8x1032xf32> to vector<8x1024xf32>
    %7 = vector.extract_strided_slice %5 {offsets = [0, 1024], sizes = [8, 8], strides = [1, 1]} : vector<8x1032xf32> to vector<8x8xf32>
    %c0_7 = arith.constant 0 : index
    %c0_8 = arith.constant 0 : index
    %8 = vector.load %arg4[%c0_7, %c0_8] : memref<128x8xf32, #tpu.memory_space<vmem>>, vector<128x8xf32>
    %cst_9 = arith.constant dense<0.000000e+00> : vector<8x8xf32>
    %9 = tpu.matmul %3, %8, %cst_9 {dimension_numbers = #tpu.dot_dimension_numbers<[1], [0], [0], [1], [0, 0, 1, 1], [], []>, precision = #tpu.contract_precision<fp32>} : vector<8x128xf32>, vector<128x8xf32>, vector<8x8xf32> -> vector<8x8xf32>
    %10 = arith.addf %7, %9 : vector<8x8xf32>
    %11 = tpu.concatenate %3, %3, %3, %3, %3, %3, %3, %3 in 1 : vector<8x128xf32>, vector<8x128xf32>, vector<8x128xf32>, vector<8x128xf32>, vector<8x128xf32>, vector<8x128xf32>, vector<8x128xf32>, vector<8x128xf32> -> vector<8x1024xf32>
    %12 = arith.mulf %6, %11 : vector<8x1024xf32>
    %c0_10 = arith.constant 0 : index
    %c0_11 = arith.constant 0 : index
    %13 = vector.load %arg5[%c0_10, %c0_11] : memref<8x1024xf32, #tpu.memory_space<vmem>>, vector<8x1024xf32>
    %cst_12 = arith.constant dense<0.000000e+00> : vector<8x8xf32>
    %14 = tpu.matmul %13, %12, %cst_12 {dimension_numbers = #tpu.dot_dimension_numbers<[1], [1], [0], [0], [0, 0, 1, 0], [], []>, precision = #tpu.contract_precision<fp32>} : vector<8x1024xf32>, vector<8x1024xf32>, vector<8x8xf32> -> vector<8x8xf32>
    %c0_13 = arith.constant 0 : index
    %c0_14 = arith.constant 0 : index
    %15 = vector.load %arg6[%c0_13, %c0_14] : memref<1x1xf32, #tpu.memory_space<vmem>>, vector<1x1xf32>
    %16 = vector.broadcast %15 : vector<1x1xf32> to vector<8x8xf32>
    %17 = arith.addf %14, %16 : vector<8x8xf32>
    %18 = arith.addf %17, %10 : vector<8x8xf32>
    %19 = math.tanh %18 : vector<8x8xf32>
    %c0_15 = arith.constant 0 : index
    %c0_16 = arith.constant 0 : index
    %c0_17 = arith.constant 0 : index
    %20 = vector.load %arg7[%c0_15, %c0_16, %c0_17] : memref<1x8x8xf32, #tpu.memory_space<vmem>>, vector<1x8x8xf32>
    %21 = vector.shape_cast %20 : vector<1x8x8xf32> to vector<8x8xf32>
    %22 = vector.shape_cast %19 : vector<8x8xf32> to vector<1x8x8xf32>
    tpu.vector_store %arg7[%c0_15, %c0_16, %c0_17], %22 {strides = array<i32>} : memref<1x8x8xf32, #tpu.memory_space<vmem>>, vector<1x8x8xf32>,
    return
  }
  func.func @transform_0(%arg0: i32) -> (i32, i32, i32) {
    %c0_i32 = arith.constant 0 : i32
    %c0_i32_0 = arith.constant 0 : i32
    %c0_i32_1 = arith.constant 0 : i32
    return %arg0, %c0_i32, %c0_i32_0 : i32, i32, i32
  }
  func.func @transform_1(%arg0: i32) -> (i32, i32, i32) {
    %c0_i32 = arith.constant 0 : i32
    %c0_i32_0 = arith.constant 0 : i32
    %c0_i32_1 = arith.constant 0 : i32
    return %arg0, %c0_i32, %c0_i32_0 : i32, i32, i32
  }
  func.func @transform_2(%arg0: i32) -> (i32, i32) {
    %c0_i32 = arith.constant 0 : i32
    %c0_i32_0 = arith.constant 0 : i32
    %c0_i32_1 = arith.constant 0 : i32
    return %c0_i32, %c0_i32_0 : i32, i32
  }
  func.func @transform_3(%arg0: i32) -> (i32, i32) {
    %c0_i32 = arith.constant 0 : i32
    %c0_i32_0 = arith.constant 0 : i32
    %c0_i32_1 = arith.constant 0 : i32
    return %c0_i32, %c0_i32_0 : i32, i32
  }
  func.func @transform_4(%arg0: i32) -> (i32, i32) {
    %c0_i32 = arith.constant 0 : i32
    %c0_i32_0 = arith.constant 0 : i32
    %c0_i32_1 = arith.constant 0 : i32
    return %c0_i32, %c0_i32_0 : i32, i32
  }
  func.func @transform_5(%arg0: i32) -> (i32, i32) {
    %c0_i32 = arith.constant 0 : i32
    %c0_i32_0 = arith.constant 0 : i32
    %c0_i32_1 = arith.constant 0 : i32
    return %c0_i32, %c0_i32_0 : i32, i32
  }
  func.func @transform_6(%arg0: i32) -> (i32, i32, i32) {
    %c0_i32 = arith.constant 0 : i32
    %c0_i32_0 = arith.constant 0 : i32
    %c0_i32_1 = arith.constant 0 : i32
    return %arg0, %c0_i32, %c0_i32_0 : i32, i32, i32
  }
}

</mosaic_0001>

<llo_original>
// kernel: ntn_forward_batched.1
$region0: #{ntn_forward_batched.1}
  #allocation0 [shape = 'u32[]', space=smem, size = 0x4, offset = 0x4, fixed_abs, tag = 'smem constant byte address 0x4 - core index']
  #allocation1 [shape = 'u32[72,128]{1,0:T(1,128)}', space=vmem, size = 0x9000, scoped, tag = 'internal scratch']
  #allocation2 [shape = 'f32[1,1]{1,0:T(1,128)S(1)}', space=vmem, size = 0x200, scoped, tag = 'scoped memory for ntn_forward_batched.1']
  %s0 = inlined_call_operand.vmem [shape: f32[4,8,128], index: 0, kind: input, shape index: {}]
  %s1 = inlined_call_operand.vmem [shape: f32[4,8,128], index: 1, kind: input, shape index: {}]
  %s2 = inlined_call_operand.vmem [shape: f32[128,1032], index: 2, kind: input, shape index: {}]
  %s3 = inlined_call_operand.vmem [shape: f32[128,8], index: 3, kind: input, shape index: {}]
  %s4 = inlined_call_operand.vmem [shape: f32[8,1024], index: 4, kind: input, shape index: {}]
  %s5 = inlined_call_operand.<no memory space> [shape: f32[1,1], index: 5, kind: input, shape index: {}]
  %s6 = inlined_call_operand.hbm [shape: f32[4,8,8], index: 6, kind: output, shape index: {}]
  %s7 = sld [smem:[#allocation0]]
  $region57: #{ntn_forward_batched.1} parent=0
    _
  %s9 = ssub.s32 1, %s7
  %s10 = scalar_select 0, %s9, %s7
  %v11 = vstv %s5
  %12 = vst [vmem:[#allocation2] sm:$0x1] %v11
  $region1: #{ntn_forward_batched.1} parent=0
    #allocation3 [shape = 'u8[8192]{0}', space=vmem, size = 0x2000, scoped, tag = 'output window, operand 0']
    #allocation4 [shape = 's32[2]{0}', space=sflag, size = 0x8, scoped, tag = 'scoped memory for ntn_forward_batched.1']
    %13 = vsyncpa [#allocation4], 0
    %s14 = scalar_lea.sflag [#allocation4], 1
    %15 = vsyncpa %s14, 0
    loop: start=0, step=1, limit=6
    $region2: #{ntn_forward_batched.1} parent=1 // loop_pre_header
      _
    $region3: #{ntn_forward_batched.1} parent=1 // loop_header
      %s17 = sphi 0, %s21
      %p18 = scmp.ge.s32.totalorder %s17, 6
      %s27 = sphi 0, %s29
      %s30 = sphi 0, %s27
      %s31 = sphi 0, %s30
      %s47 = sphi 0, %s31
      %s53 = sphi 0, %s55
      %s56 = sphi 0, %s53
      %s57 = sphi 0, %s56
      %s73 = sphi 0, %s57
      %s77 = sphi 0, %s77
      %s79 = sphi 0, %s77
      %s80 = sphi 0, %s79
      %s94 = sphi 0, %s80
      %s98 = sphi 0, %s98
      %s100 = sphi 0, %s98
      %s101 = sphi 0, %s100
      %s115 = sphi 0, %s101
      %s119 = sphi 0, %s119
      %s121 = sphi 0, %s119
      %s122 = sphi 0, %s121
      %s136 = sphi 0, %s122
      %s140 = sphi 0, %s140
      %s142 = sphi 0, %s140
      %s143 = sphi 0, %s142
      %s157 = sphi 0, %s143
      %s163 = sphi 0, %s165
      %s166 = sphi 0, %s163
      %s167 = sphi 0, %s166
      %s183 = sphi 0, %s167
    $region4: #{ntn_forward_batched.1} parent=1 // loop_header_branch
      %20 = sbr.rel (%p18) target = $region8
    $region5: #{ntn_forward_batched.1} parent=1 // loop_body
      %s22 = ssub.s32 %s17, 1
      %s23 = ssub.s32 %s17, 2
      %s24 = sadd.s32 %s17, 1
      %s25 = ssub.s32 %s17, %s24
      %p26 = scmp.eq.s32.totalorder %s25, 0
      %s28 = sadd.s32 %s27, 1
      %s29 = scalar_select %p26, %s27, %s28
      %p32 = pneg %p26
      %p33 = scmp.eq.s32.totalorder %s17, 3
      %p34 = por %p32, %p33
      %p35 = scmp.ne.s32.totalorder %s27, %s30
      %p36 = scmp.eq.s32.totalorder %s17, 0
      %p37 = por %p35, %p36
      %p38 = scmp.ne.s32.totalorder %s27, %s30
      %p39 = scmp.eq.s32.totalorder %s22, 3
      %p40 = por %p38, %p39
      %p41 = scmp.ne.s32.totalorder %s30, %s31
      %p42 = scmp.eq.s32.totalorder %s22, 0
      %p43 = por %p41, %p42
      %p44 = scmp.ne.s32.totalorder %s30, %s31
      %p45 = scmp.eq.s32.totalorder %s23, 3
      %p46 = por %p44, %p45
      %p48 = scmp.ne.s32.totalorder %s31, %s47
      %p49 = scmp.eq.s32.totalorder %s23, 0
      %p50 = por %p48, %p49
      %s51 = ssub.s32 %s17, %s24
      %p52 = scmp.eq.s32.totalorder %s51, 0
      %s54 = sadd.s32 %s53, 1
      %s55 = scalar_select %p52, %s53, %s54
      %p58 = pneg %p52
      %p59 = scmp.eq.s32.totalorder %s17, 3
      %p60 = por %p58, %p59
      %p61 = scmp.ne.s32.totalorder %s53, %s56
      %p62 = scmp.eq.s32.totalorder %s17, 0
      %p63 = por %p61, %p62
      %p64 = scmp.ne.s32.totalorder %s53, %s56
      %p65 = scmp.eq.s32.totalorder %s22, 3
      %p66 = por %p64, %p65
      %p67 = scmp.ne.s32.totalorder %s56, %s57
      %p68 = scmp.eq.s32.totalorder %s22, 0
      %p69 = por %p67, %p68
      %p70 = scmp.ne.s32.totalorder %s56, %s57
      %p71 = scmp.eq.s32.totalorder %s23, 3
      %p72 = por %p70, %p71
      %p74 = scmp.ne.s32.totalorder %s57, %s73
      %p75 = scmp.eq.s32.totalorder %s23, 0
      %p76 = por %p74, %p75
      %s78 = sadd.s32 %s77, 1
      %p81 = scmp.eq.s32.totalorder %s17, 3
      %p82 = scmp.ne.s32.totalorder %s77, %s79
      %p83 = scmp.eq.s32.totalorder %s17, 0
      %p84 = por %p82, %p83
      %p85 = scmp.ne.s32.totalorder %s77, %s79
      %p86 = scmp.eq.s32.totalorder %s22, 3
      %p87 = por %p85, %p86
      %p88 = scmp.ne.s32.totalorder %s79, %s80
      %p89 = scmp.eq.s32.totalorder %s22, 0
      %p90 = por %p88, %p89
      %p91 = scmp.ne.s32.totalorder %s79, %s80
      %p92 = scmp.eq.s32.totalorder %s23, 3
      %p93 = por %p91, %p92
      %p95 = scmp.ne.s32.totalorder %s80, %s94
      %p96 = scmp.eq.s32.totalorder %s23, 0
      %p97 = por %p95, %p96
      %s99 = sadd.s32 %s98, 1
      %p102 = scmp.eq.s32.totalorder %s17, 3
      %p103 = scmp.ne.s32.totalorder %s98, %s100
      %p104 = scmp.eq.s32.totalorder %s17, 0
      %p105 = por %p103, %p104
      %p106 = scmp.ne.s32.totalorder %s98, %s100
      %p107 = scmp.eq.s32.totalorder %s22, 3
      %p108 = por %p106, %p107
      %p109 = scmp.ne.s32.totalorder %s100, %s101
      %p110 = scmp.eq.s32.totalorder %s22, 0
      %p111 = por %p109, %p110
      %p112 = scmp.ne.s32.totalorder %s100, %s101
      %p113 = scmp.eq.s32.totalorder %s23, 3
      %p114 = por %p112, %p113
      %p116 = scmp.ne.s32.totalorder %s101, %s115
      %p117 = scmp.eq.s32.totalorder %s23, 0
      %p118 = por %p116, %p117
      %s120 = sadd.s32 %s119, 1
      %p123 = scmp.eq.s32.totalorder %s17, 3
      %p124 = scmp.ne.s32.totalorder %s119, %s121
      %p125 = scmp.eq.s32.totalorder %s17, 0
      %p126 = por %p124, %p125
      %p127 = scmp.ne.s32.totalorder %s119, %s121
      %p128 = scmp.eq.s32.totalorder %s22, 3
      %p129 = por %p127, %p128
      %p130 = scmp.ne.s32.totalorder %s121, %s122
      %p131 = scmp.eq.s32.totalorder %s22, 0
      %p132 = por %p130, %p131
      %p133 = scmp.ne.s32.totalorder %s121, %s122
      %p134 = scmp.eq.s32.totalorder %s23, 3
      %p135 = por %p133, %p134
      %p137 = scmp.ne.s32.totalorder %s122, %s136
      %p138 = scmp.eq.s32.totalorder %s23, 0
      %p139 = por %p137, %p138
      %s141 = sadd.s32 %s140, 1
      %p144 = scmp.eq.s32.totalorder %s17, 3
      %p145 = scmp.ne.s32.totalorder %s140, %s142
      %p146 = scmp.eq.s32.totalorder %s17, 0
      %p147 = por %p145, %p146
      %p148 = scmp.ne.s32.totalorder %s140, %s142
      %p149 = scmp.eq.s32.totalorder %s22, 3
      %p150 = por %p148, %p149
      %p151 = scmp.ne.s32.totalorder %s142, %s143
      %p152 = scmp.eq.s32.totalorder %s22, 0
      %p153 = por %p151, %p152
      %p154 = scmp.ne.s32.totalorder %s142, %s143
      %p155 = scmp.eq.s32.totalorder %s23, 3
      %p156 = por %p154, %p155
      %p158 = scmp.ne.s32.totalorder %s143, %s157
      %p159 = scmp.eq.s32.totalorder %s23, 0
      %p160 = por %p158, %p159
      %s161 = ssub.s32 %s17, %s24
      %p162 = scmp.eq.s32.totalorder %s161, 0
      %s164 = sadd.s32 %s163, 1
      %s165 = scalar_select %p162, %s163, %s164
      %p168 = pneg %p162
      %p169 = scmp.eq.s32.totalorder %s17, 3
      %p170 = por %p168, %p169
      %p171 = scmp.ne.s32.totalorder %s163, %s166
      %p172 = scmp.eq.s32.totalorder %s17, 0
      %p173 = por %p171, %p172
      %p174 = scmp.ne.s32.totalorder %s163, %s166
      %p175 = scmp.eq.s32.totalorder %s22, 3
      %p176 = por %p174, %p175
      %p177 = scmp.ne.s32.totalorder %s166, %s167
      %p178 = scmp.eq.s32.totalorder %s22, 0
      %p179 = por %p177, %p178
      %p180 = scmp.ne.s32.totalorder %s166, %s167
      %p181 = scmp.eq.s32.totalorder %s23, 3
      %p182 = por %p180, %p181
      %p184 = scmp.ne.s32.totalorder %s167, %s183
      %p185 = scmp.eq.s32.totalorder %s23, 0
      %p186 = por %p184, %p185
      %p187 = scmp.le.s32.totalorder 1, %s17
      %p188 = scmp.lt.s32.totalorder %s17, 5
      %p189 = pnand %p187, %p188
      %p190 = pneg %p189
      // Predicated region
      $region9: #{ntn_forward_batched.1} parent=5 // pred_check
        _
      $region10: #{ntn_forward_batched.1} parent=5 // pred_check_branch
        %192 = sbr.rel (%p189) target = $region12
      $region11: #{ntn_forward_batched.1} parent=5 // pred_region
        %s193 = ssub.s32 %s17, 1
        // Predicated region
        $region13: #{ntn_forward_batched.1} parent=11 // pred_check
          %p194 = pneg %p90
        $region14: #{ntn_forward_batched.1} parent=11 // pred_check_branch
          %196 = sbr.rel (%p194) target = $region16
        $region15: #{ntn_forward_batched.1} parent=11 // pred_region
          _
        $region16: #{ntn_forward_batched.1} parent=11 // pred_fallthru
          _
        // Predicated region
        $region17: #{ntn_forward_batched.1} parent=11 // pred_check
          %p197 = pneg %p111
        $region18: #{ntn_forward_batched.1} parent=11 // pred_check_branch
          %199 = sbr.rel (%p197) target = $region20
        $region19: #{ntn_forward_batched.1} parent=11 // pred_region
          _
        $region20: #{ntn_forward_batched.1} parent=11 // pred_fallthru
          _
        // Predicated region
        $region21: #{ntn_forward_batched.1} parent=11 // pred_check
          %p200 = pneg %p132
        $region22: #{ntn_forward_batched.1} parent=11 // pred_check_branch
          %202 = sbr.rel (%p200) target = $region24
        $region23: #{ntn_forward_batched.1} parent=11 // pred_region
          _
        $region24: #{ntn_forward_batched.1} parent=11 // pred_fallthru
          _
        // Predicated region
        $region25: #{ntn_forward_batched.1} parent=11 // pred_check
          %p203 = pneg %p153
        $region26: #{ntn_forward_batched.1} parent=11 // pred_check_branch
          %205 = sbr.rel (%p203) target = $region28
        $region27: #{ntn_forward_batched.1} parent=11 // pred_region
          _
        $region28: #{ntn_forward_batched.1} parent=11 // pred_fallthru
          _
      $region12: #{ntn_forward_batched.1} parent=5 // pred_fallthru
        _
      %p206 = scmp.lt.s32.totalorder %s17, 4
      // Predicated region
      $region29: #{ntn_forward_batched.1} parent=5 // pred_check
        %p207 = pneg %p206
      $region30: #{ntn_forward_batched.1} parent=5 // pred_check_branch
        %209 = sbr.rel (%p207) target = $region32
      $region31: #{ntn_forward_batched.1} parent=5 // pred_region
        // Predicated region
        $region33: #{ntn_forward_batched.1} parent=31 // pred_check
          %p210 = pneg %p37
        $region34: #{ntn_forward_batched.1} parent=31 // pred_check_branch
          %212 = sbr.rel (%p210) target = $region36
        $region35: #{ntn_forward_batched.1} parent=31 // pred_region
          %p213 = scmp.lt.s32.totalorder %s17, 3
          %s214 = scalar_select %p213, %s17, 3
          %s215 = smul.addr %s214, 8
          %s216 = scalar_lea.vmem %s0, %s215
        $region36: #{ntn_forward_batched.1} parent=31 // pred_fallthru
          _
        // Predicated region
        $region37: #{ntn_forward_batched.1} parent=31 // pred_check
          %p217 = pneg %p63
        $region38: #{ntn_forward_batched.1} parent=31 // pred_check_branch
          %219 = sbr.rel (%p217) target = $region40
        $region39: #{ntn_forward_batched.1} parent=31 // pred_region
          %p220 = scmp.lt.s32.totalorder %s17, 3
          %s221 = scalar_select %p220, %s17, 3
          %s222 = smul.addr %s221, 8
          %s223 = scalar_lea.vmem %s1, %s222
        $region40: #{ntn_forward_batched.1} parent=31 // pred_fallthru
          _
      $region32: #{ntn_forward_batched.1} parent=5 // pred_fallthru
        _
      %p224 = scmp.le.s32.totalorder 1, %s17
      %p225 = scmp.lt.s32.totalorder %s17, 5
      %p226 = pnand %p224, %p225
      %p227 = pneg %p226
      // Predicated region
      $region41: #{ntn_forward_batched.1} parent=5 // pred_check
        _
      $region42: #{ntn_forward_batched.1} parent=5 // pred_check_branch
        %229 = sbr.rel (%p226) target = $region44
      $region43: #{ntn_forward_batched.1} parent=5 // pred_region
        %s230 = ssub.s32 %s17, 1
        %p231 = scmp.lt.s32.totalorder %s22, 3
        %s232 = scalar_select %p231, %s22, 3
        %s233 = smul.addr %s232, 8
        %s234 = scalar_lea.vmem %s0, %s233
        %p235 = pneg %p43
        %p236 = pneg %p40
        %p237 = scmp.lt.s32.totalorder %s22, 3
        %s238 = scalar_select %p237, %s22, 3
        %s239 = smul.addr %s238, 8
        %s240 = scalar_lea.vmem %s1, %s239
        %p241 = pneg %p69
        %p242 = pneg %p66
        %p243 = pneg %p90
        %p244 = pneg %p87
        %p245 = pneg %p111
        %p246 = pneg %p108
        %p247 = pneg %p132
        %p248 = pneg %p129
        %p249 = pneg %p153
        %p250 = pneg %p150
        %p251 = pneg %p179
        %p252 = pneg %p176
        %s253 = sand.u32 %s166, 1
        %s254 = scalar_lea.sflag [#allocation4], %s253
        %s255 = sand.u32 %s166, 1
        %s256 = smul.addr %s255, 8
        %s257 = scalar_lea.vmem [#allocation3], %s256
        %p258 = scmp.lt.s32.totalorder %s22, 3
        %s259 = scalar_select %p258, %s22, 3
        %s260 = smul.addr %s259, 8
        %s261 = scalar_lea.vmem %s0, %s260
        %p262 = scmp.lt.s32.totalorder %s22, 3
        %s263 = scalar_select %p262, %s22, 3
        %s264 = smul.addr %s263, 8
        %s265 = scalar_lea.vmem %s1, %s264
        %v266 = vld [vmem:[%s261] sm:$0xff]
        %v267 = vld [vmem:[%s265] sm:$0xff]
        %v268 = vld [vmem:[%s2] sm:$0xff]
        %v269 = vld [vmem:[%s2 + $0x8] sm:$0xff]
        %v270 = vld [vmem:[%s2 + $0x10] sm:$0xff]
        %v271 = vld [vmem:[%s2 + $0x18] sm:$0xff]
        %v272 = vld [vmem:[%s2 + $0x20] sm:$0xff]
        %v273 = vld [vmem:[%s2 + $0x28] sm:$0xff]
        %v274 = vld [vmem:[%s2 + $0x30] sm:$0xff]
        %v275 = vld [vmem:[%s2 + $0x38] sm:$0xff]
        %v276 = vld [vmem:[%s2 + $0x40] sm:$0xff]
        %v277 = vld [vmem:[%s2 + $0x48] sm:$0xff]
        %v278 = vld [vmem:[%s2 + $0x50] sm:$0xff]
        %v279 = vld [vmem:[%s2 + $0x58] sm:$0xff]
        %v280 = vld [vmem:[%s2 + $0x60] sm:$0xff]
        %v281 = vld [vmem:[%s2 + $0x68] sm:$0xff]
        %v282 = vld [vmem:[%s2 + $0x70] sm:$0xff]
        %v283 = vld [vmem:[%s2 + $0x78] sm:$0xff]
        %v284 = vld [vmem:[%s2 + $0x80] sm:$0xff]
        %v285 = vld [vmem:[%s2 + $0x88] sm:$0xff]
        %v286 = vld [vmem:[%s2 + $0x90] sm:$0xff]
        %v287 = vld [vmem:[%s2 + $0x98] sm:$0xff]
        %v288 = vld [vmem:[%s2 + $0xa0] sm:$0xff]
        %v289 = vld [vmem:[%s2 + $0xa8] sm:$0xff]
        %v290 = vld [vmem:[%s2 + $0xb0] sm:$0xff]
        %v291 = vld [vmem:[%s2 + $0xb8] sm:$0xff]
        %v292 = vld [vmem:[%s2 + $0xc0] sm:$0xff]
        %v293 = vld [vmem:[%s2 + $0xc8] sm:$0xff]
        %v294 = vld [vmem:[%s2 + $0xd0] sm:$0xff]
        %v295 = vld [vmem:[%s2 + $0xd8] sm:$0xff]
        %v296 = vld [vmem:[%s2 + $0xe0] sm:$0xff]
        %v297 = vld [vmem:[%s2 + $0xe8] sm:$0xff]
        %v298 = vld [vmem:[%s2 + $0xf0] sm:$0xff]
        %v299 = vld [vmem:[%s2 + $0xf8] sm:$0xff]
        %v300 = vld [vmem:[%s2 + $0x100] sm:$0xff]
        %v301 = vld [vmem:[%s2 + $0x108] sm:$0xff]
        %v302 = vld [vmem:[%s2 + $0x110] sm:$0xff]
        %v303 = vld [vmem:[%s2 + $0x118] sm:$0xff]
        %v304 = vld [vmem:[%s2 + $0x120] sm:$0xff]
        %v305 = vld [vmem:[%s2 + $0x128] sm:$0xff]
        %v306 = vld [vmem:[%s2 + $0x130] sm:$0xff]
        %v307 = vld [vmem:[%s2 + $0x138] sm:$0xff]
        %v308 = vld [vmem:[%s2 + $0x140] sm:$0xff]
        %v309 = vld [vmem:[%s2 + $0x148] sm:$0xff]
        %v310 = vld [vmem:[%s2 + $0x150] sm:$0xff]
        %v311 = vld [vmem:[%s2 + $0x158] sm:$0xff]
        %v312 = vld [vmem:[%s2 + $0x160] sm:$0xff]
        %v313 = vld [vmem:[%s2 + $0x168] sm:$0xff]
        %v314 = vld [vmem:[%s2 + $0x170] sm:$0xff]
        %v315 = vld [vmem:[%s2 + $0x178] sm:$0xff]
        %v316 = vld [vmem:[%s2 + $0x180] sm:$0xff]
        %v317 = vld [vmem:[%s2 + $0x188] sm:$0xff]
        %v318 = vld [vmem:[%s2 + $0x190] sm:$0xff]
        %v319 = vld [vmem:[%s2 + $0x198] sm:$0xff]
        %v320 = vld [vmem:[%s2 + $0x1a0] sm:$0xff]
        %v321 = vld [vmem:[%s2 + $0x1a8] sm:$0xff]
        %v322 = vld [vmem:[%s2 + $0x1b0] sm:$0xff]
        %v323 = vld [vmem:[%s2 + $0x1b8] sm:$0xff]
        %v324 = vld [vmem:[%s2 + $0x1c0] sm:$0xff]
        %v325 = vld [vmem:[%s2 + $0x1c8] sm:$0xff]
        %v326 = vld [vmem:[%s2 + $0x1d0] sm:$0xff]
        %v327 = vld [vmem:[%s2 + $0x1d8] sm:$0xff]
        %v328 = vld [vmem:[%s2 + $0x1e0] sm:$0xff]
        %v329 = vld [vmem:[%s2 + $0x1e8] sm:$0xff]
        %v330 = vld [vmem:[%s2 + $0x1f0] sm:$0xff]
        %v331 = vld [vmem:[%s2 + $0x1f8] sm:$0xff]
        %v332 = vld [vmem:[%s2 + $0x200] sm:$0xff]
        %v333 = vld [vmem:[%s2 + $0x208] sm:$0xff]
        %v334 = vld [vmem:[%s2 + $0x210] sm:$0xff]
        %v335 = vld [vmem:[%s2 + $0x218] sm:$0xff]
        %v336 = vld [vmem:[%s2 + $0x220] sm:$0xff]
        %v337 = vld [vmem:[%s2 + $0x228] sm:$0xff]
        %v338 = vld [vmem:[%s2 + $0x230] sm:$0xff]
        %v339 = vld [vmem:[%s2 + $0x238] sm:$0xff]
        %v340 = vld [vmem:[%s2 + $0x240] sm:$0xff]
        %v341 = vld [vmem:[%s2 + $0x248] sm:$0xff]
        %v342 = vld [vmem:[%s2 + $0x250] sm:$0xff]
        %v343 = vld [vmem:[%s2 + $0x258] sm:$0xff]
        %v344 = vld [vmem:[%s2 + $0x260] sm:$0xff]
        %v345 = vld [vmem:[%s2 + $0x268] sm:$0xff]
        %v346 = vld [vmem:[%s2 + $0x270] sm:$0xff]
        %v347 = vld [vmem:[%s2 + $0x278] sm:$0xff]
        %v348 = vld [vmem:[%s2 + $0x280] sm:$0xff]
        %v349 = vld [vmem:[%s2 + $0x288] sm:$0xff]
        %v350 = vld [vmem:[%s2 + $0x290] sm:$0xff]
        %v351 = vld [vmem:[%s2 + $0x298] sm:$0xff]
        %v352 = vld [vmem:[%s2 + $0x2a0] sm:$0xff]
        %v353 = vld [vmem:[%s2 + $0x2a8] sm:$0xff]
        %v354 = vld [vmem:[%s2 + $0x2b0] sm:$0xff]
        %v355 = vld [vmem:[%s2 + $0x2b8] sm:$0xff]
        %v356 = vld [vmem:[%s2 + $0x2c0] sm:$0xff]
        %v357 = vld [vmem:[%s2 + $0x2c8] sm:$0xff]
        %v358 = vld [vmem:[%s2 + $0x2d0] sm:$0xff]
        %v359 = vld [vmem:[%s2 + $0x2d8] sm:$0xff]
        %v360 = vld [vmem:[%s2 + $0x2e0] sm:$0xff]
        %v361 = vld [vmem:[%s2 + $0x2e8] sm:$0xff]
        %v362 = vld [vmem:[%s2 + $0x2f0] sm:$0xff]
        %v363 = vld [vmem:[%s2 + $0x2f8] sm:$0xff]
        %v364 = vld [vmem:[%s2 + $0x300] sm:$0xff]
        %v365 = vld [vmem:[%s2 + $0x308] sm:$0xff]
        %v366 = vld [vmem:[%s2 + $0x310] sm:$0xff]
        %v367 = vld [vmem:[%s2 + $0x318] sm:$0xff]
        %v368 = vld [vmem:[%s2 + $0x320] sm:$0xff]
        %v369 = vld [vmem:[%s2 + $0x328] sm:$0xff]
        %v370 = vld [vmem:[%s2 + $0x330] sm:$0xff]
        %v371 = vld [vmem:[%s2 + $0x338] sm:$0xff]
        %v372 = vld [vmem:[%s2 + $0x340] sm:$0xff]
        %v373 = vld [vmem:[%s2 + $0x348] sm:$0xff]
        %v374 = vld [vmem:[%s2 + $0x350] sm:$0xff]
        %v375 = vld [vmem:[%s2 + $0x358] sm:$0xff]
        %v376 = vld [vmem:[%s2 + $0x360] sm:$0xff]
        %v377 = vld [vmem:[%s2 + $0x368] sm:$0xff]
        %v378 = vld [vmem:[%s2 + $0x370] sm:$0xff]
        %v379 = vld [vmem:[%s2 + $0x378] sm:$0xff]
        %v380 = vld [vmem:[%s2 + $0x380] sm:$0xff]
        %v381 = vld [vmem:[%s2 + $0x388] sm:$0xff]
        %v382 = vld [vmem:[%s2 + $0x390] sm:$0xff]
        %v383 = vld [vmem:[%s2 + $0x398] sm:$0xff]
        %v384 = vld [vmem:[%s2 + $0x3a0] sm:$0xff]
        %v385 = vld [vmem:[%s2 + $0x3a8] sm:$0xff]
        %v386 = vld [vmem:[%s2 + $0x3b0] sm:$0xff]
        %v387 = vld [vmem:[%s2 + $0x3b8] sm:$0xff]
        %v388 = vld [vmem:[%s2 + $0x3c0] sm:$0xff]
        %v389 = vld [vmem:[%s2 + $0x3c8] sm:$0xff]
        %v390 = vld [vmem:[%s2 + $0x3d0] sm:$0xff]
        %v391 = vld [vmem:[%s2 + $0x3d8] sm:$0xff]
        %v392 = vld [vmem:[%s2 + $0x3e0] sm:$0xff]
        %v393 = vld [vmem:[%s2 + $0x3e8] sm:$0xff]
        %v394 = vld [vmem:[%s2 + $0x3f0] sm:$0xff]
        %v395 = vld [vmem:[%s2 + $0x3f8] sm:$0xff]
        %v396 = vld [vmem:[%s2 + $0x400] sm:$0xff]
        %v397 = vld [vmem:[%s2 + $0x408] sm:$0xff]
        %v398 = vld [vmem:[%s2 + $0x410] sm:$0xff]
        %v399 = vld [vmem:[%s2 + $0x418] sm:$0xff]
        %v400 = vld [vmem:[%s2 + $0x420] sm:$0xff]
        %v401 = vld [vmem:[%s2 + $0x428] sm:$0xff]
        %v402 = vld [vmem:[%s2 + $0x430] sm:$0xff]
        %v403 = vld [vmem:[%s2 + $0x438] sm:$0xff]
        %v404 = vld [vmem:[%s2 + $0x440] sm:$0xff]
        %v405 = vld [vmem:[%s2 + $0x448] sm:$0xff]
        %v406 = vld [vmem:[%s2 + $0x450] sm:$0xff]
        %v407 = vld [vmem:[%s2 + $0x458] sm:$0xff]
        %v408 = vld [vmem:[%s2 + $0x460] sm:$0xff]
        %v409 = vld [vmem:[%s2 + $0x468] sm:$0xff]
        %v410 = vld [vmem:[%s2 + $0x470] sm:$0xff]
        %v411 = vld [vmem:[%s2 + $0x478] sm:$0xff]
        %v412 = vand.u32 %v403, 4294901760
        %413 = vmatpush.msra.mxu0 %v412
        %v414 = vand.u32 %v394, 4294901760
        %415 = vmatpush.msra.mxu0 %v414
        %v416 = vand.u32 %v385, 4294901760
        %417 = vmatpush.msra.mxu0 %v416
        %v418 = vand.u32 %v376, 4294901760
        %419 = vmatpush.msra.mxu0 %v418
        %v420 = vand.u32 %v367, 4294901760
        %421 = vmatpush.msra.mxu0 %v420
        %v422 = vand.u32 %v358, 4294901760
        %423 = vmatpush.msra.mxu0 %v422
        %v424 = vand.u32 %v349, 4294901760
        %425 = vmatpush.msra.mxu0 %v424
        %v426 = vand.u32 %v340, 4294901760
        %427 = vmatpush.msra.mxu0 %v426
        %v428 = vand.u32 %v331, 4294901760
        %429 = vmatpush.msra.mxu0 %v428
        %v430 = vand.u32 %v322, 4294901760
        %431 = vmatpush.msra.mxu0 %v430
        %v432 = vand.u32 %v313, 4294901760
        %433 = vmatpush.msra.mxu0 %v432
        %v434 = vand.u32 %v304, 4294901760
        %435 = vmatpush.msra.mxu0 %v434
        %v436 = vand.u32 %v295, 4294901760
        %437 = vmatpush.msra.mxu0 %v436
        %v438 = vand.u32 %v286, 4294901760
        %439 = vmatpush.msra.mxu0 %v438
        %v440 = vand.u32 %v277, 4294901760
        %441 = vmatpush.msra.mxu0 %v440
        %v442 = vand.u32 %v268, 4294901760
        %443 = vmatpush.msra.mxu0 %v442
        %v444 = vand.u32 %v266, 4294901760
        %v445 = vsub.f32 %v266, %v444
        %v446 = vand.u32 %v445, 4294901760
        %v447 = vsub.f32 %v445, %v446
        %v448 = vand.u32 %v447, 4294901760
        %449 = vmatmul.f32.gmra.mxu0 %v448
        %v450 = vpop.f32.mrf.mxu0
        %v451 = vadd.f32 0.0, %v450
        %452 = vdwg.mxu0
        %v453 = vand.u32 %v403, 4294901760
        %v454 = vsub.f32 %v403, %v453
        %v455 = vand.u32 %v454, 4294901760
        %v456 = vsub.f32 %v454, %v455
        %v457 = vand.u32 %v456, 4294901760
        %458 = vmatpush.msra.mxu0 %v457
        %v459 = vand.u32 %v394, 4294901760
        %v460 = vsub.f32 %v394, %v459
        %v461 = vand.u32 %v460, 4294901760
        %v462 = vsub.f32 %v460, %v461
        %v463 = vand.u32 %v462, 4294901760
        %464 = vmatpush.msra.mxu0 %v463
        %v465 = vand.u32 %v385, 4294901760
        %v466 = vsub.f32 %v385, %v465
        %v467 = vand.u32 %v466, 4294901760
        %v468 = vsub.f32 %v466, %v467
        %v469 = vand.u32 %v468, 4294901760
        %470 = vmatpush.msra.mxu0 %v469
        %v471 = vand.u32 %v376, 4294901760
        %v472 = vsub.f32 %v376, %v471
        %v473 = vand.u32 %v472, 4294901760
        %v474 = vsub.f32 %v472, %v473
        %v475 = vand.u32 %v474, 4294901760
        %476 = vmatpush.msra.mxu0 %v475
        %v477 = vand.u32 %v367, 4294901760
        %v478 = vsub.f32 %v367, %v477
        %v479 = vand.u32 %v478, 4294901760
        %v480 = vsub.f32 %v478, %v479
        %v481 = vand.u32 %v480, 4294901760
        %482 = vmatpush.msra.mxu0 %v481
        %v483 = vand.u32 %v358, 4294901760
        %v484 = vsub.f32 %v358, %v483
        %v485 = vand.u32 %v484, 4294901760
        %v486 = vsub.f32 %v484, %v485
        %v487 = vand.u32 %v486, 4294901760
        %488 = vmatpush.msra.mxu0 %v487
        %v489 = vand.u32 %v349, 4294901760
        %v490 = vsub.f32 %v349, %v489
        %v491 = vand.u32 %v490, 4294901760
        %v492 = vsub.f32 %v490, %v491
        %v493 = vand.u32 %v492, 4294901760
        %494 = vmatpush.msra.mxu0 %v493
        %v495 = vand.u32 %v340, 4294901760
        %v496 = vsub.f32 %v340, %v495
        %v497 = vand.u32 %v496, 4294901760
        %v498 = vsub.f32 %v496, %v497
        %v499 = vand.u32 %v498, 4294901760
        %500 = vmatpush.msra.mxu0 %v499
        %v501 = vand.u32 %v331, 4294901760
        %v502 = vsub.f32 %v331, %v501
        %v503 = vand.u32 %v502, 4294901760
        %v504 = vsub.f32 %v502, %v503
        %v505 = vand.u32 %v504, 4294901760
        %506 = vmatpush.msra.mxu0 %v505
        %v507 = vand.u32 %v322, 4294901760
        %v508 = vsub.f32 %v322, %v507
        %v509 = vand.u32 %v508, 4294901760
        %v510 = vsub.f32 %v508, %v509
        %v511 = vand.u32 %v510, 4294901760
        %512 = vmatpush.msra.mxu0 %v511
        %v513 = vand.u32 %v313, 4294901760
        %v514 = vsub.f32 %v313, %v513
        %v515 = vand.u32 %v514, 4294901760
        %v516 = vsub.f32 %v514, %v515
        %v517 = vand.u32 %v516, 4294901760
        %518 = vmatpush.msra.mxu0 %v517
        %v519 = vand.u32 %v304, 4294901760
        %v520 = vsub.f32 %v304, %v519
        %v521 = vand.u32 %v520, 4294901760
        %v522 = vsub.f32 %v520, %v521
        %v523 = vand.u32 %v522, 4294901760
        %524 = vmatpush.msra.mxu0 %v523
        %v525 = vand.u32 %v295, 4294901760
        %v526 = vsub.f32 %v295, %v525
        %v527 = vand.u32 %v526, 4294901760
        %v528 = vsub.f32 %v526, %v527
        %v529 = vand.u32 %v528, 4294901760
        %530 = vmatpush.msra.mxu0 %v529
        %v531 = vand.u32 %v286, 4294901760
        %v532 = vsub.f32 %v286, %v531
        %v533 = vand.u32 %v532, 4294901760
        %v534 = vsub.f32 %v532, %v533
        %v535 = vand.u32 %v534, 4294901760
        %536 = vmatpush.msra.mxu0 %v535
        %v537 = vand.u32 %v277, 4294901760
        %v538 = vsub.f32 %v277, %v537
        %v539 = vand.u32 %v538, 4294901760
        %v540 = vsub.f32 %v538, %v539
        %v541 = vand.u32 %v540, 4294901760
        %542 = vmatpush.msra.mxu0 %v541
        %v543 = vand.u32 %v268, 4294901760
        %v544 = vsub.f32 %v268, %v543
        %v545 = vand.u32 %v544, 4294901760
        %v546 = vsub.f32 %v544, %v545
        %v547 = vand.u32 %v546, 4294901760
        %548 = vmatpush.msra.mxu0 %v547
        %v549 = vand.u32 %v266, 4294901760
        %550 = vmatmul.f32.gmra.mxu0 %v549
        %v551 = vpop.f32.mrf.mxu0
        %v552 = vadd.f32 %v451, %v551
        %553 = vdwg.mxu0
        %v554 = vand.u32 %v403, 4294901760
        %v555 = vsub.f32 %v403, %v554
        %556 = vmatpush.msra.mxu0 %v555
        %v557 = vand.u32 %v394, 4294901760
        %v558 = vsub.f32 %v394, %v557
        %559 = vmatpush.msra.mxu0 %v558
        %v560 = vand.u32 %v385, 4294901760
        %v561 = vsub.f32 %v385, %v560
        %562 = vmatpush.msra.mxu0 %v561
        %v563 = vand.u32 %v376, 4294901760
        %v564 = vsub.f32 %v376, %v563
        %565 = vmatpush.msra.mxu0 %v564
        %v566 = vand.u32 %v367, 4294901760
        %v567 = vsub.f32 %v367, %v566
        %568 = vmatpush.msra.mxu0 %v567
        %v569 = vand.u32 %v358, 4294901760
        %v570 = vsub.f32 %v358, %v569
        %571 = vmatpush.msra.mxu0 %v570
        %v572 = vand.u32 %v349, 4294901760
        %v573 = vsub.f32 %v349, %v572
        %574 = vmatpush.msra.mxu0 %v573
        %v575 = vand.u32 %v340, 4294901760
        %v576 = vsub.f32 %v340, %v575
        %577 = vmatpush.msra.mxu0 %v576
        %v578 = vand.u32 %v331, 4294901760
        %v579 = vsub.f32 %v331, %v578
        %580 = vmatpush.msra.mxu0 %v579
        %v581 = vand.u32 %v322, 4294901760
        %v582 = vsub.f32 %v322, %v581
        %583 = vmatpush.msra.mxu0 %v582
        %v584 = vand.u32 %v313, 4294901760
        %v585 = vsub.f32 %v313, %v584
        %586 = vmatpush.msra.mxu0 %v585
        %v587 = vand.u32 %v304, 4294901760
        %v588 = vsub.f32 %v304, %v587
        %589 = vmatpush.msra.mxu0 %v588
        %v590 = vand.u32 %v295, 4294901760
        %v591 = vsub.f32 %v295, %v590
        %592 = vmatpush.msra.mxu0 %v591
        %v593 = vand.u32 %v286, 4294901760
        %v594 = vsub.f32 %v286, %v593
        %595 = vmatpush.msra.mxu0 %v594
        %v596 = vand.u32 %v277, 4294901760
        %v597 = vsub.f32 %v277, %v596
        %598 = vmatpush.msra.mxu0 %v597
        %v599 = vand.u32 %v268, 4294901760
        %v600 = vsub.f32 %v268, %v599
        %601 = vmatpush.msra.mxu0 %v600
        %v602 = vand.u32 %v266, 4294901760
        %v603 = vsub.f32 %v266, %v602
        %604 = vmatmul.f32.gmra.mxu0 %v603
        %v605 = vpop.f32.mrf.mxu0
        %v606 = vadd.f32 %v552, %v605
        %607 = vdwg.mxu0
        %v608 = vand.u32 %v403, 4294901760
        %609 = vmatpush.msra.mxu0 %v608
        %v610 = vand.u32 %v394, 4294901760
        %611 = vmatpush.msra.mxu0 %v610
        %v612 = vand.u32 %v385, 4294901760
        %613 = vmatpush.msra.mxu0 %v612
        %v614 = vand.u32 %v376, 4294901760
        %615 = vmatpush.msra.mxu0 %v614
        %v616 = vand.u32 %v367, 4294901760
        %617 = vmatpush.msra.mxu0 %v616
        %v618 = vand.u32 %v358, 4294901760
        %619 = vmatpush.msra.mxu0 %v618
        %v620 = vand.u32 %v349, 4294901760
        %621 = vmatpush.msra.mxu0 %v620
        %v622 = vand.u32 %v340, 4294901760
        %623 = vmatpush.msra.mxu0 %v622
        %v624 = vand.u32 %v331, 4294901760
        %625 = vmatpush.msra.mxu0 %v624
        %v626 = vand.u32 %v322, 4294901760
        %627 = vmatpush.msra.mxu0 %v626
        %v628 = vand.u32 %v313, 4294901760
        %629 = vmatpush.msra.mxu0 %v628
        %v630 = vand.u32 %v304, 4294901760
        %631 = vmatpush.msra.mxu0 %v630
        %v632 = vand.u32 %v295, 4294901760
        %633 = vmatpush.msra.mxu0 %v632
        %v634 = vand.u32 %v286, 4294901760
        %635 = vmatpush.msra.mxu0 %v634
        %v636 = vand.u32 %v277, 4294901760
        %637 = vmatpush.msra.mxu0 %v636
        %v638 = vand.u32 %v268, 4294901760
        %639 = vmatpush.msra.mxu0 %v638
        %v640 = vand.u32 %v266, 4294901760
        %v641 = vsub.f32 %v266, %v640
        %v642 = vand.u32 %v641, 4294901760
        %643 = vmatmul.f32.gmra.mxu0 %v642
        %v644 = vpop.f32.mrf.mxu0
        %v645 = vadd.f32 %v606, %v644
        %646 = vdwg.mxu0
        %v647 = vand.u32 %v403, 4294901760
        %v648 = vsub.f32 %v403, %v647
        %v649 = vand.u32 %v648, 4294901760
        %650 = vmatpush.msra.mxu0 %v649
        %v651 = vand.u32 %v394, 4294901760
        %v652 = vsub.f32 %v394, %v651
        %v653 = vand.u32 %v652, 4294901760
        %654 = vmatpush.msra.mxu0 %v653
        %v655 = vand.u32 %v385, 4294901760
        %v656 = vsub.f32 %v385, %v655
        %v657 = vand.u32 %v656, 4294901760
        %658 = vmatpush.msra.mxu0 %v657
        %v659 = vand.u32 %v376, 4294901760
        %v660 = vsub.f32 %v376, %v659
        %v661 = vand.u32 %v660, 4294901760
        %662 = vmatpush.msra.mxu0 %v661
        %v663 = vand.u32 %v367, 4294901760
        %v664 = vsub.f32 %v367, %v663
        %v665 = vand.u32 %v664, 4294901760
        %666 = vmatpush.msra.mxu0 %v665
        %v667 = vand.u32 %v358, 4294901760
        %v668 = vsub.f32 %v358, %v667
        %v669 = vand.u32 %v668, 4294901760
        %670 = vmatpush.msra.mxu0 %v669
        %v671 = vand.u32 %v349, 4294901760
        %v672 = vsub.f32 %v349, %v671
        %v673 = vand.u32 %v672, 4294901760
        %674 = vmatpush.msra.mxu0 %v673
        %v675 = vand.u32 %v340, 4294901760
        %v676 = vsub.f32 %v340, %v675
        %v677 = vand.u32 %v676, 4294901760
        %678 = vmatpush.msra.mxu0 %v677
        %v679 = vand.u32 %v331, 4294901760
        %v680 = vsub.f32 %v331, %v679
        %v681 = vand.u32 %v680, 4294901760
        %682 = vmatpush.msra.mxu0 %v681
        %v683 = vand.u32 %v322, 4294901760
        %v684 = vsub.f32 %v322, %v683
        %v685 = vand.u32 %v684, 4294901760
        %686 = vmatpush.msra.mxu0 %v685
        %v687 = vand.u32 %v313, 4294901760
        %v688 = vsub.f32 %v313, %v687
        %v689 = vand.u32 %v688, 4294901760
        %690 = vmatpush.msra.mxu0 %v689
        %v691 = vand.u32 %v304, 4294901760
        %v692 = vsub.f32 %v304, %v691
        %v693 = vand.u32 %v692, 4294901760
        %694 = vmatpush.msra.mxu0 %v693
        %v695 = vand.u32 %v295, 4294901760
        %v696 = vsub.f32 %v295, %v695
        %v697 = vand.u32 %v696, 4294901760
        %698 = vmatpush.msra.mxu0 %v697
        %v699 = vand.u32 %v286, 4294901760
        %v700 = vsub.f32 %v286, %v699
        %v701 = vand.u32 %v700, 4294901760
        %702 = vmatpush.msra.mxu0 %v701
        %v703 = vand.u32 %v277, 4294901760
        %v704 = vsub.f32 %v277, %v703
        %v705 = vand.u32 %v704, 4294901760
        %706 = vmatpush.msra.mxu0 %v705
        %v707 = vand.u32 %v268, 4294901760
        %v708 = vsub.f32 %v268, %v707
        %v709 = vand.u32 %v708, 4294901760
        %710 = vmatpush.msra.mxu0 %v709
        %v711 = vand.u32 %v266, 4294901760
        %712 = vmatmul.f32.gmra.mxu0 %v711
        %v713 = vpop.f32.mrf.mxu0
        %v714 = vadd.f32 %v645, %v713
        %715 = vdwg.mxu0
        %v716 = vand.u32 %v403, 4294901760
        %717 = vmatpush.msra.mxu0 %v716
        %v718 = vand.u32 %v394, 4294901760
        %719 = vmatpush.msra.mxu0 %v718
        %v720 = vand.u32 %v385, 4294901760
        %721 = vmatpush.msra.mxu0 %v720
        %v722 = vand.u32 %v376, 4294901760
        %723 = vmatpush.msra.mxu0 %v722
        %v724 = vand.u32 %v367, 4294901760
        %725 = vmatpush.msra.mxu0 %v724
        %v726 = vand.u32 %v358, 4294901760
        %727 = vmatpush.msra.mxu0 %v726
        %v728 = vand.u32 %v349, 4294901760
        %729 = vmatpush.msra.mxu0 %v728
        %v730 = vand.u32 %v340, 4294901760
        %731 = vmatpush.msra.mxu0 %v730
        %v732 = vand.u32 %v331, 4294901760
        %733 = vmatpush.msra.mxu0 %v732
        %v734 = vand.u32 %v322, 4294901760
        %735 = vmatpush.msra.mxu0 %v734
        %v736 = vand.u32 %v313, 4294901760
        %737 = vmatpush.msra.mxu0 %v736
        %v738 = vand.u32 %v304, 4294901760
        %739 = vmatpush.msra.mxu0 %v738
        %v740 = vand.u32 %v295, 4294901760
        %741 = vmatpush.msra.mxu0 %v740
        %v742 = vand.u32 %v286, 4294901760
        %743 = vmatpush.msra.mxu0 %v742
        %v744 = vand.u32 %v277, 4294901760
        %745 = vmatpush.msra.mxu0 %v744
        %v746 = vand.u32 %v268, 4294901760
        %747 = vmatpush.msra.mxu0 %v746
        %v748 = vand.u32 %v266, 4294901760
        %749 = vmatmul.f32.gmra.mxu0 %v748
        %v750 = vpop.f32.mrf.mxu0
        %v751 = vadd.f32 %v714, %v750
        %752 = vdwg.mxu0
        %v753 = vand.u32 %v404, 4294901760
        %754 = vmatpush.msra.mxu0 %v753
        %v755 = vand.u32 %v395, 4294901760
        %756 = vmatpush.msra.mxu0 %v755
        %v757 = vand.u32 %v386, 4294901760
        %758 = vmatpush.msra.mxu0 %v757
        %v759 = vand.u32 %v377, 4294901760
        %760 = vmatpush.msra.mxu0 %v759
        %v761 = vand.u32 %v368, 4294901760
        %762 = vmatpush.msra.mxu0 %v761
        %v763 = vand.u32 %v359, 4294901760
        %764 = vmatpush.msra.mxu0 %v763
        %v765 = vand.u32 %v350, 4294901760
        %766 = vmatpush.msra.mxu0 %v765
        %v767 = vand.u32 %v341, 4294901760
        %768 = vmatpush.msra.mxu0 %v767
        %v769 = vand.u32 %v332, 4294901760
        %770 = vmatpush.msra.mxu0 %v769
        %v771 = vand.u32 %v323, 4294901760
        %772 = vmatpush.msra.mxu0 %v771
        %v773 = vand.u32 %v314, 4294901760
        %774 = vmatpush.msra.mxu0 %v773
        %v775 = vand.u32 %v305, 4294901760
        %776 = vmatpush.msra.mxu0 %v775
        %v777 = vand.u32 %v296, 4294901760
        %778 = vmatpush.msra.mxu0 %v777
        %v779 = vand.u32 %v287, 4294901760
        %780 = vmatpush.msra.mxu0 %v779
        %v781 = vand.u32 %v278, 4294901760
        %782 = vmatpush.msra.mxu0 %v781
        %v783 = vand.u32 %v269, 4294901760
        %784 = vmatpush.msra.mxu0 %v783
        %v785 = vand.u32 %v266, 4294901760
        %v786 = vsub.f32 %v266, %v785
        %v787 = vand.u32 %v786, 4294901760
        %v788 = vsub.f32 %v786, %v787
        %v789 = vand.u32 %v788, 4294901760
        %790 = vmatmul.f32.gmra.mxu0 %v789
        %v791 = vpop.f32.mrf.mxu0
        %v792 = vadd.f32 0.0, %v791
        %793 = vdwg.mxu0
        %v794 = vand.u32 %v404, 4294901760
        %v795 = vsub.f32 %v404, %v794
        %v796 = vand.u32 %v795, 4294901760
        %v797 = vsub.f32 %v795, %v796
        %v798 = vand.u32 %v797, 4294901760
        %799 = vmatpush.msra.mxu0 %v798
        %v800 = vand.u32 %v395, 4294901760
        %v801 = vsub.f32 %v395, %v800
        %v802 = vand.u32 %v801, 4294901760
        %v803 = vsub.f32 %v801, %v802
        %v804 = vand.u32 %v803, 4294901760
        %805 = vmatpush.msra.mxu0 %v804
        %v806 = vand.u32 %v386, 4294901760
        %v807 = vsub.f32 %v386, %v806
        %v808 = vand.u32 %v807, 4294901760
        %v809 = vsub.f32 %v807, %v808
        %v810 = vand.u32 %v809, 4294901760
        %811 = vmatpush.msra.mxu0 %v810
        %v812 = vand.u32 %v377, 4294901760
        %v813 = vsub.f32 %v377, %v812
        %v814 = vand.u32 %v813, 4294901760
        %v815 = vsub.f32 %v813, %v814
        %v816 = vand.u32 %v815, 4294901760
        %817 = vmatpush.msra.mxu0 %v816
        %v818 = vand.u32 %v368, 4294901760
        %v819 = vsub.f32 %v368, %v818
        %v820 = vand.u32 %v819, 4294901760
        %v821 = vsub.f32 %v819, %v820
        %v822 = vand.u32 %v821, 4294901760
        %823 = vmatpush.msra.mxu0 %v822
        %v824 = vand.u32 %v359, 4294901760
        %v825 = vsub.f32 %v359, %v824
        %v826 = vand.u32 %v825, 4294901760
        %v827 = vsub.f32 %v825, %v826
        %v828 = vand.u32 %v827, 4294901760
        %829 = vmatpush.msra.mxu0 %v828
        %v830 = vand.u32 %v350, 4294901760
        %v831 = vsub.f32 %v350, %v830
        %v832 = vand.u32 %v831, 4294901760
        %v833 = vsub.f32 %v831, %v832
        %v834 = vand.u32 %v833, 4294901760
        %835 = vmatpush.msra.mxu0 %v834
        %v836 = vand.u32 %v341, 4294901760
        %v837 = vsub.f32 %v341, %v836
        %v838 = vand.u32 %v837, 4294901760
        %v839 = vsub.f32 %v837, %v838
        %v840 = vand.u32 %v839, 4294901760
        %841 = vmatpush.msra.mxu0 %v840
        %v842 = vand.u32 %v332, 4294901760
        %v843 = vsub.f32 %v332, %v842
        %v844 = vand.u32 %v843, 4294901760
        %v845 = vsub.f32 %v843, %v844
        %v846 = vand.u32 %v845, 4294901760
        %847 = vmatpush.msra.mxu0 %v846
        %v848 = vand.u32 %v323, 4294901760
        %v849 = vsub.f32 %v323, %v848
        %v850 = vand.u32 %v849, 4294901760
        %v851 = vsub.f32 %v849, %v850
        %v852 = vand.u32 %v851, 4294901760
        %853 = vmatpush.msra.mxu0 %v852
        %v854 = vand.u32 %v314, 4294901760
        %v855 = vsub.f32 %v314, %v854
        %v856 = vand.u32 %v855, 4294901760
        %v857 = vsub.f32 %v855, %v856
        %v858 = vand.u32 %v857, 4294901760
        %859 = vmatpush.msra.mxu0 %v858
        %v860 = vand.u32 %v305, 4294901760
        %v861 = vsub.f32 %v305, %v860
        %v862 = vand.u32 %v861, 4294901760
        %v863 = vsub.f32 %v861, %v862
        %v864 = vand.u32 %v863, 4294901760
        %865 = vmatpush.msra.mxu0 %v864
        %v866 = vand.u32 %v296, 4294901760
        %v867 = vsub.f32 %v296, %v866
        %v868 = vand.u32 %v867, 4294901760
        %v869 = vsub.f32 %v867, %v868
        %v870 = vand.u32 %v869, 4294901760
        %871 = vmatpush.msra.mxu0 %v870
        %v872 = vand.u32 %v287, 4294901760
        %v873 = vsub.f32 %v287, %v872
        %v874 = vand.u32 %v873, 4294901760
        %v875 = vsub.f32 %v873, %v874
        %v876 = vand.u32 %v875, 4294901760
        %877 = vmatpush.msra.mxu0 %v876
        %v878 = vand.u32 %v278, 4294901760
        %v879 = vsub.f32 %v278, %v878
        %v880 = vand.u32 %v879, 4294901760
        %v881 = vsub.f32 %v879, %v880
        %v882 = vand.u32 %v881, 4294901760
        %883 = vmatpush.msra.mxu0 %v882
        %v884 = vand.u32 %v269, 4294901760
        %v885 = vsub.f32 %v269, %v884
        %v886 = vand.u32 %v885, 4294901760
        %v887 = vsub.f32 %v885, %v886
        %v888 = vand.u32 %v887, 4294901760
        %889 = vmatpush.msra.mxu0 %v888
        %v890 = vand.u32 %v266, 4294901760
        %891 = vmatmul.f32.gmra.mxu0 %v890
        %v892 = vpop.f32.mrf.mxu0
        %v893 = vadd.f32 %v792, %v892
        %894 = vdwg.mxu0
        %v895 = vand.u32 %v404, 4294901760
        %v896 = vsub.f32 %v404, %v895
        %897 = vmatpush.msra.mxu0 %v896
        %v898 = vand.u32 %v395, 4294901760
        %v899 = vsub.f32 %v395, %v898
        %900 = vmatpush.msra.mxu0 %v899
        %v901 = vand.u32 %v386, 4294901760
        %v902 = vsub.f32 %v386, %v901
        %903 = vmatpush.msra.mxu0 %v902
        %v904 = vand.u32 %v377, 4294901760
        %v905 = vsub.f32 %v377, %v904
        %906 = vmatpush.msra.mxu0 %v905
        %v907 = vand.u32 %v368, 4294901760
        %v908 = vsub.f32 %v368, %v907
        %909 = vmatpush.msra.mxu0 %v908
        %v910 = vand.u32 %v359, 4294901760
        %v911 = vsub.f32 %v359, %v910
        %912 = vmatpush.msra.mxu0 %v911
        %v913 = vand.u32 %v350, 4294901760
        %v914 = vsub.f32 %v350, %v913
        %915 = vmatpush.msra.mxu0 %v914
        %v916 = vand.u32 %v341, 4294901760
        %v917 = vsub.f32 %v341, %v916
        %918 = vmatpush.msra.mxu0 %v917
        %v919 = vand.u32 %v332, 4294901760
        %v920 = vsub.f32 %v332, %v919
        %921 = vmatpush.msra.mxu0 %v920
        %v922 = vand.u32 %v323, 4294901760
        %v923 = vsub.f32 %v323, %v922
        %924 = vmatpush.msra.mxu0 %v923
        %v925 = vand.u32 %v314, 4294901760
        %v926 = vsub.f32 %v314, %v925
        %927 = vmatpush.msra.mxu0 %v926
        %v928 = vand.u32 %v305, 4294901760
        %v929 = vsub.f32 %v305, %v928
        %930 = vmatpush.msra.mxu0 %v929
        %v931 = vand.u32 %v296, 4294901760
        %v932 = vsub.f32 %v296, %v931
        %933 = vmatpush.msra.mxu0 %v932
        %v934 = vand.u32 %v287, 4294901760
        %v935 = vsub.f32 %v287, %v934
        %936 = vmatpush.msra.mxu0 %v935
        %v937 = vand.u32 %v278, 4294901760
        %v938 = vsub.f32 %v278, %v937
        %939 = vmatpush.msra.mxu0 %v938
        %v940 = vand.u32 %v269, 4294901760
        %v941 = vsub.f32 %v269, %v940
        %942 = vmatpush.msra.mxu0 %v941
        %v943 = vand.u32 %v266, 4294901760
        %v944 = vsub.f32 %v266, %v943
        %945 = vmatmul.f32.gmra.mxu0 %v944
        %v946 = vpop.f32.mrf.mxu0
        %v947 = vadd.f32 %v893, %v946
        %948 = vdwg.mxu0
        %v949 = vand.u32 %v404, 4294901760
        %950 = vmatpush.msra.mxu0 %v949
        %v951 = vand.u32 %v395, 4294901760
        %952 = vmatpush.msra.mxu0 %v951
        %v953 = vand.u32 %v386, 4294901760
        %954 = vmatpush.msra.mxu0 %v953
        %v955 = vand.u32 %v377, 4294901760
        %956 = vmatpush.msra.mxu0 %v955
        %v957 = vand.u32 %v368, 4294901760
        %958 = vmatpush.msra.mxu0 %v957
        %v959 = vand.u32 %v359, 4294901760
        %960 = vmatpush.msra.mxu0 %v959
        %v961 = vand.u32 %v350, 4294901760
        %962 = vmatpush.msra.mxu0 %v961
        %v963 = vand.u32 %v341, 4294901760
        %964 = vmatpush.msra.mxu0 %v963
        %v965 = vand.u32 %v332, 4294901760
        %966 = vmatpush.msra.mxu0 %v965
        %v967 = vand.u32 %v323, 4294901760
        %968 = vmatpush.msra.mxu0 %v967
        %v969 = vand.u32 %v314, 4294901760
        %970 = vmatpush.msra.mxu0 %v969
        %v971 = vand.u32 %v305, 4294901760
        %972 = vmatpush.msra.mxu0 %v971
        %v973 = vand.u32 %v296, 4294901760
        %974 = vmatpush.msra.mxu0 %v973
        %v975 = vand.u32 %v287, 4294901760
        %976 = vmatpush.msra.mxu0 %v975
        %v977 = vand.u32 %v278, 4294901760
        %978 = vmatpush.msra.mxu0 %v977
        %v979 = vand.u32 %v269, 4294901760
        %980 = vmatpush.msra.mxu0 %v979
        %v981 = vand.u32 %v266, 4294901760
        %v982 = vsub.f32 %v266, %v981
        %v983 = vand.u32 %v982, 4294901760
        %984 = vmatmul.f32.gmra.mxu0 %v983
        %v985 = vpop.f32.mrf.mxu0
        %v986 = vadd.f32 %v947, %v985
        %987 = vdwg.mxu0
        %v988 = vand.u32 %v404, 4294901760
        %v989 = vsub.f32 %v404, %v988
        %v990 = vand.u32 %v989, 4294901760
        %991 = vmatpush.msra.mxu0 %v990
        %v992 = vand.u32 %v395, 4294901760
        %v993 = vsub.f32 %v395, %v992
        %v994 = vand.u32 %v993, 4294901760
        %995 = vmatpush.msra.mxu0 %v994
        %v996 = vand.u32 %v386, 4294901760
        %v997 = vsub.f32 %v386, %v996
        %v998 = vand.u32 %v997, 4294901760
        %999 = vmatpush.msra.mxu0 %v998
        %v1000 = vand.u32 %v377, 4294901760
        %v1001 = vsub.f32 %v377, %v1000
        %v1002 = vand.u32 %v1001, 4294901760
        %1003 = vmatpush.msra.mxu0 %v1002
        %v1004 = vand.u32 %v368, 4294901760
        %v1005 = vsub.f32 %v368, %v1004
        %v1006 = vand.u32 %v1005, 4294901760
        %1007 = vmatpush.msra.mxu0 %v1006
        %v1008 = vand.u32 %v359, 4294901760
        %v1009 = vsub.f32 %v359, %v1008
        %v1010 = vand.u32 %v1009, 4294901760
        %1011 = vmatpush.msra.mxu0 %v1010
        %v1012 = vand.u32 %v350, 4294901760
        %v1013 = vsub.f32 %v350, %v1012
        %v1014 = vand.u32 %v1013, 4294901760
        %1015 = vmatpush.msra.mxu0 %v1014
        %v1016 = vand.u32 %v341, 4294901760
        %v1017 = vsub.f32 %v341, %v1016
        %v1018 = vand.u32 %v1017, 4294901760
        %1019 = vmatpush.msra.mxu0 %v1018
        %v1020 = vand.u32 %v332, 4294901760
        %v1021 = vsub.f32 %v332, %v1020
        %v1022 = vand.u32 %v1021, 4294901760
        %1023 = vmatpush.msra.mxu0 %v1022
        %v1024 = vand.u32 %v323, 4294901760
        %v1025 = vsub.f32 %v323, %v1024
        %v1026 = vand.u32 %v1025, 4294901760
        %1027 = vmatpush.msra.mxu0 %v1026
        %v1028 = vand.u32 %v314, 4294901760
        %v1029 = vsub.f32 %v314, %v1028
        %v1030 = vand.u32 %v1029, 4294901760
        %1031 = vmatpush.msra.mxu0 %v1030
        %v1032 = vand.u32 %v305, 4294901760
        %v1033 = vsub.f32 %v305, %v1032
        %v1034 = vand.u32 %v1033, 4294901760
        %1035 = vmatpush.msra.mxu0 %v1034
        %v1036 = vand.u32 %v296, 4294901760
        %v1037 = vsub.f32 %v296, %v1036
        %v1038 = vand.u32 %v1037, 4294901760
        %1039 = vmatpush.msra.mxu0 %v1038
        %v1040 = vand.u32 %v287, 4294901760
        %v1041 = vsub.f32 %v287, %v1040
        %v1042 = vand.u32 %v1041, 4294901760
        %1043 = vmatpush.msra.mxu0 %v1042
        %v1044 = vand.u32 %v278, 4294901760
        %v1045 = vsub.f32 %v278, %v1044
        %v1046 = vand.u32 %v1045, 4294901760
        %1047 = vmatpush.msra.mxu0 %v1046
        %v1048 = vand.u32 %v269, 4294901760
        %v1049 = vsub.f32 %v269, %v1048
        %v1050 = vand.u32 %v1049, 4294901760
        %1051 = vmatpush.msra.mxu0 %v1050
        %v1052 = vand.u32 %v266, 4294901760
        %1053 = vmatmul.f32.gmra.mxu0 %v1052
        %v1054 = vpop.f32.mrf.mxu0
        %v1055 = vadd.f32 %v986, %v1054
        %1056 = vdwg.mxu0
        %v1057 = vand.u32 %v404, 4294901760
        %1058 = vmatpush.msra.mxu0 %v1057
        %v1059 = vand.u32 %v395, 4294901760
        %1060 = vmatpush.msra.mxu0 %v1059
        %v1061 = vand.u32 %v386, 4294901760
        %1062 = vmatpush.msra.mxu0 %v1061
        %v1063 = vand.u32 %v377, 4294901760
        %1064 = vmatpush.msra.mxu0 %v1063
        %v1065 = vand.u32 %v368, 4294901760
        %1066 = vmatpush.msra.mxu0 %v1065
        %v1067 = vand.u32 %v359, 4294901760
        %1068 = vmatpush.msra.mxu0 %v1067
        %v1069 = vand.u32 %v350, 4294901760
        %1070 = vmatpush.msra.mxu0 %v1069
        %v1071 = vand.u32 %v341, 4294901760
        %1072 = vmatpush.msra.mxu0 %v1071
        %v1073 = vand.u32 %v332, 4294901760
        %1074 = vmatpush.msra.mxu0 %v1073
        %v1075 = vand.u32 %v323, 4294901760
        %1076 = vmatpush.msra.mxu0 %v1075
        %v1077 = vand.u32 %v314, 4294901760
        %1078 = vmatpush.msra.mxu0 %v1077
        %v1079 = vand.u32 %v305, 4294901760
        %1080 = vmatpush.msra.mxu0 %v1079
        %v1081 = vand.u32 %v296, 4294901760
        %1082 = vmatpush.msra.mxu0 %v1081
        %v1083 = vand.u32 %v287, 4294901760
        %1084 = vmatpush.msra.mxu0 %v1083
        %v1085 = vand.u32 %v278, 4294901760
        %1086 = vmatpush.msra.mxu0 %v1085
        %v1087 = vand.u32 %v269, 4294901760
        %1088 = vmatpush.msra.mxu0 %v1087
        %v1089 = vand.u32 %v266, 4294901760
        %1090 = vmatmul.f32.gmra.mxu0 %v1089
        %v1091 = vpop.f32.mrf.mxu0
        %v1092 = vadd.f32 %v1055, %v1091
        %1093 = vdwg.mxu0
        %v1094 = vand.u32 %v405, 4294901760
        %1095 = vmatpush.msra.mxu0 %v1094
        %v1096 = vand.u32 %v396, 4294901760
        %1097 = vmatpush.msra.mxu0 %v1096
        %v1098 = vand.u32 %v387, 4294901760
        %1099 = vmatpush.msra.mxu0 %v1098
        %v1100 = vand.u32 %v378, 4294901760
        %1101 = vmatpush.msra.mxu0 %v1100
        %v1102 = vand.u32 %v369, 4294901760
        %1103 = vmatpush.msra.mxu0 %v1102
        %v1104 = vand.u32 %v360, 4294901760
        %1105 = vmatpush.msra.mxu0 %v1104
        %v1106 = vand.u32 %v351, 4294901760
        %1107 = vmatpush.msra.mxu0 %v1106
        %v1108 = vand.u32 %v342, 4294901760
        %1109 = vmatpush.msra.mxu0 %v1108
        %v1110 = vand.u32 %v333, 4294901760
        %1111 = vmatpush.msra.mxu0 %v1110
        %v1112 = vand.u32 %v324, 4294901760
        %1113 = vmatpush.msra.mxu0 %v1112
        %v1114 = vand.u32 %v315, 4294901760
        %1115 = vmatpush.msra.mxu0 %v1114
        %v1116 = vand.u32 %v306, 4294901760
        %1117 = vmatpush.msra.mxu0 %v1116
        %v1118 = vand.u32 %v297, 4294901760
        %1119 = vmatpush.msra.mxu0 %v1118
        %v1120 = vand.u32 %v288, 4294901760
        %1121 = vmatpush.msra.mxu0 %v1120
        %v1122 = vand.u32 %v279, 4294901760
        %1123 = vmatpush.msra.mxu0 %v1122
        %v1124 = vand.u32 %v270, 4294901760
        %1125 = vmatpush.msra.mxu0 %v1124
        %v1126 = vand.u32 %v266, 4294901760
        %v1127 = vsub.f32 %v266, %v1126
        %v1128 = vand.u32 %v1127, 4294901760
        %v1129 = vsub.f32 %v1127, %v1128
        %v1130 = vand.u32 %v1129, 4294901760
        %1131 = vmatmul.f32.gmra.mxu0 %v1130
        %v1132 = vpop.f32.mrf.mxu0
        %v1133 = vadd.f32 0.0, %v1132
        %1134 = vdwg.mxu0
        %v1135 = vand.u32 %v405, 4294901760
        %v1136 = vsub.f32 %v405, %v1135
        %v1137 = vand.u32 %v1136, 4294901760
        %v1138 = vsub.f32 %v1136, %v1137
        %v1139 = vand.u32 %v1138, 4294901760
        %1140 = vmatpush.msra.mxu0 %v1139
        %v1141 = vand.u32 %v396, 4294901760
        %v1142 = vsub.f32 %v396, %v1141
        %v1143 = vand.u32 %v1142, 4294901760
        %v1144 = vsub.f32 %v1142, %v1143
        %v1145 = vand.u32 %v1144, 4294901760
        %1146 = vmatpush.msra.mxu0 %v1145
        %v1147 = vand.u32 %v387, 4294901760
        %v1148 = vsub.f32 %v387, %v1147
        %v1149 = vand.u32 %v1148, 4294901760
        %v1150 = vsub.f32 %v1148, %v1149
        %v1151 = vand.u32 %v1150, 4294901760
        %1152 = vmatpush.msra.mxu0 %v1151
        %v1153 = vand.u32 %v378, 4294901760
        %v1154 = vsub.f32 %v378, %v1153
        %v1155 = vand.u32 %v1154, 4294901760
        %v1156 = vsub.f32 %v1154, %v1155
        %v1157 = vand.u32 %v1156, 4294901760
        %1158 = vmatpush.msra.mxu0 %v1157
        %v1159 = vand.u32 %v369, 4294901760
        %v1160 = vsub.f32 %v369, %v1159
        %v1161 = vand.u32 %v1160, 4294901760
        %v1162 = vsub.f32 %v1160, %v1161
        %v1163 = vand.u32 %v1162, 4294901760
        %1164 = vmatpush.msra.mxu0 %v1163
        %v1165 = vand.u32 %v360, 4294901760
        %v1166 = vsub.f32 %v360, %v1165
        %v1167 = vand.u32 %v1166, 4294901760
        %v1168 = vsub.f32 %v1166, %v1167
        %v1169 = vand.u32 %v1168, 4294901760
        %1170 = vmatpush.msra.mxu0 %v1169
        %v1171 = vand.u32 %v351, 4294901760
        %v1172 = vsub.f32 %v351, %v1171
        %v1173 = vand.u32 %v1172, 4294901760
        %v1174 = vsub.f32 %v1172, %v1173
        %v1175 = vand.u32 %v1174, 4294901760
        %1176 = vmatpush.msra.mxu0 %v1175
        %v1177 = vand.u32 %v342, 4294901760
        %v1178 = vsub.f32 %v342, %v1177
        %v1179 = vand.u32 %v1178, 4294901760
        %v1180 = vsub.f32 %v1178, %v1179
        %v1181 = vand.u32 %v1180, 4294901760
        %1182 = vmatpush.msra.mxu0 %v1181
        %v1183 = vand.u32 %v333, 4294901760
        %v1184 = vsub.f32 %v333, %v1183
        %v1185 = vand.u32 %v1184, 4294901760
        %v1186 = vsub.f32 %v1184, %v1185
        %v1187 = vand.u32 %v1186, 4294901760
        %1188 = vmatpush.msra.mxu0 %v1187
        %v1189 = vand.u32 %v324, 4294901760
        %v1190 = vsub.f32 %v324, %v1189
        %v1191 = vand.u32 %v1190, 4294901760
        %v1192 = vsub.f32 %v1190, %v1191
        %v1193 = vand.u32 %v1192, 4294901760
        %1194 = vmatpush.msra.mxu0 %v1193
        %v1195 = vand.u32 %v315, 4294901760
        %v1196 = vsub.f32 %v315, %v1195
        %v1197 = vand.u32 %v1196, 4294901760
        %v1198 = vsub.f32 %v1196, %v1197
        %v1199 = vand.u32 %v1198, 4294901760
        %1200 = vmatpush.msra.mxu0 %v1199
        %v1201 = vand.u32 %v306, 4294901760
        %v1202 = vsub.f32 %v306, %v1201
        %v1203 = vand.u32 %v1202, 4294901760
        %v1204 = vsub.f32 %v1202, %v1203
        %v1205 = vand.u32 %v1204, 4294901760
        %1206 = vmatpush.msra.mxu0 %v1205
        %v1207 = vand.u32 %v297, 4294901760
        %v1208 = vsub.f32 %v297, %v1207
        %v1209 = vand.u32 %v1208, 4294901760
        %v1210 = vsub.f32 %v1208, %v1209
        %v1211 = vand.u32 %v1210, 4294901760
        %1212 = vmatpush.msra.mxu0 %v1211
        %v1213 = vand.u32 %v288, 4294901760
        %v1214 = vsub.f32 %v288, %v1213
        %v1215 = vand.u32 %v1214, 4294901760
        %v1216 = vsub.f32 %v1214, %v1215
        %v1217 = vand.u32 %v1216, 4294901760
        %1218 = vmatpush.msra.mxu0 %v1217
        %v1219 = vand.u32 %v279, 4294901760
        %v1220 = vsub.f32 %v279, %v1219
        %v1221 = vand.u32 %v1220, 4294901760
        %v1222 = vsub.f32 %v1220, %v1221
        %v1223 = vand.u32 %v1222, 4294901760
        %1224 = vmatpush.msra.mxu0 %v1223
        %v1225 = vand.u32 %v270, 4294901760
        %v1226 = vsub.f32 %v270, %v1225
        %v1227 = vand.u32 %v1226, 4294901760
        %v1228 = vsub.f32 %v1226, %v1227
        %v1229 = vand.u32 %v1228, 4294901760
        %1230 = vmatpush.msra.mxu0 %v1229
        %v1231 = vand.u32 %v266, 4294901760
        %1232 = vmatmul.f32.gmra.mxu0 %v1231
        %v1233 = vpop.f32.mrf.mxu0
        %v1234 = vadd.f32 %v1133, %v1233
        %1235 = vdwg.mxu0
        %v1236 = vand.u32 %v405, 4294901760
        %v1237 = vsub.f32 %v405, %v1236
        %1238 = vmatpush.msra.mxu0 %v1237
        %v1239 = vand.u32 %v396, 4294901760
        %v1240 = vsub.f32 %v396, %v1239
        %1241 = vmatpush.msra.mxu0 %v1240
        %v1242 = vand.u32 %v387, 4294901760
        %v1243 = vsub.f32 %v387, %v1242
        %1244 = vmatpush.msra.mxu0 %v1243
        %v1245 = vand.u32 %v378, 4294901760
        %v1246 = vsub.f32 %v378, %v1245
        %1247 = vmatpush.msra.mxu0 %v1246
        %v1248 = vand.u32 %v369, 4294901760
        %v1249 = vsub.f32 %v369, %v1248
        %1250 = vmatpush.msra.mxu0 %v1249
        %v1251 = vand.u32 %v360, 4294901760
        %v1252 = vsub.f32 %v360, %v1251
        %1253 = vmatpush.msra.mxu0 %v1252
        %v1254 = vand.u32 %v351, 4294901760
        %v1255 = vsub.f32 %v351, %v1254
        %1256 = vmatpush.msra.mxu0 %v1255
        %v1257 = vand.u32 %v342, 4294901760
        %v1258 = vsub.f32 %v342, %v1257
        %1259 = vmatpush.msra.mxu0 %v1258
        %v1260 = vand.u32 %v333, 4294901760
        %v1261 = vsub.f32 %v333, %v1260
        %1262 = vmatpush.msra.mxu0 %v1261
        %v1263 = vand.u32 %v324, 4294901760
        %v1264 = vsub.f32 %v324, %v1263
        %1265 = vmatpush.msra.mxu0 %v1264
        %v1266 = vand.u32 %v315, 4294901760
        %v1267 = vsub.f32 %v315, %v1266
        %1268 = vmatpush.msra.mxu0 %v1267
        %v1269 = vand.u32 %v306, 4294901760
        %v1270 = vsub.f32 %v306, %v1269
        %1271 = vmatpush.msra.mxu0 %v1270
        %v1272 = vand.u32 %v297, 4294901760
        %v1273 = vsub.f32 %v297, %v1272
        %1274 = vmatpush.msra.mxu0 %v1273
        %v1275 = vand.u32 %v288, 4294901760
        %v1276 = vsub.f32 %v288, %v1275
        %1277 = vmatpush.msra.mxu0 %v1276
        %v1278 = vand.u32 %v279, 4294901760
        %v1279 = vsub.f32 %v279, %v1278
        %1280 = vmatpush.msra.mxu0 %v1279
        %v1281 = vand.u32 %v270, 4294901760
        %v1282 = vsub.f32 %v270, %v1281
        %1283 = vmatpush.msra.mxu0 %v1282
        %v1284 = vand.u32 %v266, 4294901760
        %v1285 = vsub.f32 %v266, %v1284
        %1286 = vmatmul.f32.gmra.mxu0 %v1285
        %v1287 = vpop.f32.mrf.mxu0
        %v1288 = vadd.f32 %v1234, %v1287
        %1289 = vdwg.mxu0
        %v1290 = vand.u32 %v405, 4294901760
        %1291 = vmatpush.msra.mxu0 %v1290
        %v1292 = vand.u32 %v396, 4294901760
        %1293 = vmatpush.msra.mxu0 %v1292
        %v1294 = vand.u32 %v387, 4294901760
        %1295 = vmatpush.msra.mxu0 %v1294
        %v1296 = vand.u32 %v378, 4294901760
        %1297 = vmatpush.msra.mxu0 %v1296
        %v1298 = vand.u32 %v369, 4294901760
        %1299 = vmatpush.msra.mxu0 %v1298
        %v1300 = vand.u32 %v360, 4294901760
        %1301 = vmatpush.msra.mxu0 %v1300
        %v1302 = vand.u32 %v351, 4294901760
        %1303 = vmatpush.msra.mxu0 %v1302
        %v1304 = vand.u32 %v342, 4294901760
        %1305 = vmatpush.msra.mxu0 %v1304
        %v1306 = vand.u32 %v333, 4294901760
        %1307 = vmatpush.msra.mxu0 %v1306
        %v1308 = vand.u32 %v324, 4294901760
        %1309 = vmatpush.msra.mxu0 %v1308
        %v1310 = vand.u32 %v315, 4294901760
        %1311 = vmatpush.msra.mxu0 %v1310
        %v1312 = vand.u32 %v306, 4294901760
        %1313 = vmatpush.msra.mxu0 %v1312
        %v1314 = vand.u32 %v297, 4294901760
        %1315 = vmatpush.msra.mxu0 %v1314
        %v1316 = vand.u32 %v288, 4294901760
        %1317 = vmatpush.msra.mxu0 %v1316
        %v1318 = vand.u32 %v279, 4294901760
        %1319 = vmatpush.msra.mxu0 %v1318
        %v1320 = vand.u32 %v270, 4294901760
        %1321 = vmatpush.msra.mxu0 %v1320
        %v1322 = vand.u32 %v266, 4294901760
        %v1323 = vsub.f32 %v266, %v1322
        %v1324 = vand.u32 %v1323, 4294901760
        %1325 = vmatmul.f32.gmra.mxu0 %v1324
        %v1326 = vpop.f32.mrf.mxu0
        %v1327 = vadd.f32 %v1288, %v1326
        %1328 = vdwg.mxu0
        %v1329 = vand.u32 %v405, 4294901760
        %v1330 = vsub.f32 %v405, %v1329
        %v1331 = vand.u32 %v1330, 4294901760
        %1332 = vmatpush.msra.mxu0 %v1331
        %v1333 = vand.u32 %v396, 4294901760
        %v1334 = vsub.f32 %v396, %v1333
        %v1335 = vand.u32 %v1334, 4294901760
        %1336 = vmatpush.msra.mxu0 %v1335
        %v1337 = vand.u32 %v387, 4294901760
        %v1338 = vsub.f32 %v387, %v1337
        %v1339 = vand.u32 %v1338, 4294901760
        %1340 = vmatpush.msra.mxu0 %v1339
        %v1341 = vand.u32 %v378, 4294901760
        %v1342 = vsub.f32 %v378, %v1341
        %v1343 = vand.u32 %v1342, 4294901760
        %1344 = vmatpush.msra.mxu0 %v1343
        %v1345 = vand.u32 %v369, 4294901760
        %v1346 = vsub.f32 %v369, %v1345
        %v1347 = vand.u32 %v1346, 4294901760
        %1348 = vmatpush.msra.mxu0 %v1347
        %v1349 = vand.u32 %v360, 4294901760
        %v1350 = vsub.f32 %v360, %v1349
        %v1351 = vand.u32 %v1350, 4294901760
        %1352 = vmatpush.msra.mxu0 %v1351
        %v1353 = vand.u32 %v351, 4294901760
        %v1354 = vsub.f32 %v351, %v1353
        %v1355 = vand.u32 %v1354, 4294901760
        %1356 = vmatpush.msra.mxu0 %v1355
        %v1357 = vand.u32 %v342, 4294901760
        %v1358 = vsub.f32 %v342, %v1357
        %v1359 = vand.u32 %v1358, 4294901760
        %1360 = vmatpush.msra.mxu0 %v1359
        %v1361 = vand.u32 %v333, 4294901760
        %v1362 = vsub.f32 %v333, %v1361
        %v1363 = vand.u32 %v1362, 4294901760
        %1364 = vmatpush.msra.mxu0 %v1363
        %v1365 = vand.u32 %v324, 4294901760
        %v1366 = vsub.f32 %v324, %v1365
        %v1367 = vand.u32 %v1366, 4294901760
        %1368 = vmatpush.msra.mxu0 %v1367
        %v1369 = vand.u32 %v315, 4294901760
        %v1370 = vsub.f32 %v315, %v1369
        %v1371 = vand.u32 %v1370, 4294901760
        %1372 = vmatpush.msra.mxu0 %v1371
        %v1373 = vand.u32 %v306, 4294901760
        %v1374 = vsub.f32 %v306, %v1373
        %v1375 = vand.u32 %v1374, 4294901760
        %1376 = vmatpush.msra.mxu0 %v1375
        %v1377 = vand.u32 %v297, 4294901760
        %v1378 = vsub.f32 %v297, %v1377
        %v1379 = vand.u32 %v1378, 4294901760
        %1380 = vmatpush.msra.mxu0 %v1379
        %v1381 = vand.u32 %v288, 4294901760
        %v1382 = vsub.f32 %v288, %v1381
        %v1383 = vand.u32 %v1382, 4294901760
        %1384 = vmatpush.msra.mxu0 %v1383
        %v1385 = vand.u32 %v279, 4294901760
        %v1386 = vsub.f32 %v279, %v1385
        %v1387 = vand.u32 %v1386, 4294901760
        %1388 = vmatpush.msra.mxu0 %v1387
        %v1389 = vand.u32 %v270, 4294901760
        %v1390 = vsub.f32 %v270, %v1389
        %v1391 = vand.u32 %v1390, 4294901760
        %1392 = vmatpush.msra.mxu0 %v1391
        %v1393 = vand.u32 %v266, 4294901760
        %1394 = vmatmul.f32.gmra.mxu0 %v1393
        %v1395 = vpop.f32.mrf.mxu0
        %v1396 = vadd.f32 %v1327, %v1395
        %1397 = vdwg.mxu0
        %v1398 = vand.u32 %v405, 4294901760
        %1399 = vmatpush.msra.mxu0 %v1398
        %v1400 = vand.u32 %v396, 4294901760
        %1401 = vmatpush.msra.mxu0 %v1400
        %v1402 = vand.u32 %v387, 4294901760
        %1403 = vmatpush.msra.mxu0 %v1402
        %v1404 = vand.u32 %v378, 4294901760
        %1405 = vmatpush.msra.mxu0 %v1404
        %v1406 = vand.u32 %v369, 4294901760
        %1407 = vmatpush.msra.mxu0 %v1406
        %v1408 = vand.u32 %v360, 4294901760
        %1409 = vmatpush.msra.mxu0 %v1408
        %v1410 = vand.u32 %v351, 4294901760
        %1411 = vmatpush.msra.mxu0 %v1410
        %v1412 = vand.u32 %v342, 4294901760
        %1413 = vmatpush.msra.mxu0 %v1412
        %v1414 = vand.u32 %v333, 4294901760
        %1415 = vmatpush.msra.mxu0 %v1414
        %v1416 = vand.u32 %v324, 4294901760
        %1417 = vmatpush.msra.mxu0 %v1416
        %v1418 = vand.u32 %v315, 4294901760
        %1419 = vmatpush.msra.mxu0 %v1418
        %v1420 = vand.u32 %v306, 4294901760
        %1421 = vmatpush.msra.mxu0 %v1420
        %v1422 = vand.u32 %v297, 4294901760
        %1423 = vmatpush.msra.mxu0 %v1422
        %v1424 = vand.u32 %v288, 4294901760
        %1425 = vmatpush.msra.mxu0 %v1424
        %v1426 = vand.u32 %v279, 4294901760
        %1427 = vmatpush.msra.mxu0 %v1426
        %v1428 = vand.u32 %v270, 4294901760
        %1429 = vmatpush.msra.mxu0 %v1428
        %v1430 = vand.u32 %v266, 4294901760
        %1431 = vmatmul.f32.gmra.mxu0 %v1430
        %v1432 = vpop.f32.mrf.mxu0
        %v1433 = vadd.f32 %v1396, %v1432
        %1434 = vdwg.mxu0
        %v1435 = vand.u32 %v406, 4294901760
        %1436 = vmatpush.msra.mxu0 %v1435
        %v1437 = vand.u32 %v397, 4294901760
        %1438 = vmatpush.msra.mxu0 %v1437
        %v1439 = vand.u32 %v388, 4294901760
        %1440 = vmatpush.msra.mxu0 %v1439
        %v1441 = vand.u32 %v379, 4294901760
        %1442 = vmatpush.msra.mxu0 %v1441
        %v1443 = vand.u32 %v370, 4294901760
        %1444 = vmatpush.msra.mxu0 %v1443
        %v1445 = vand.u32 %v361, 4294901760
        %1446 = vmatpush.msra.mxu0 %v1445
        %v1447 = vand.u32 %v352, 4294901760
        %1448 = vmatpush.msra.mxu0 %v1447
        %v1449 = vand.u32 %v343, 4294901760
        %1450 = vmatpush.msra.mxu0 %v1449
        %v1451 = vand.u32 %v334, 4294901760
        %1452 = vmatpush.msra.mxu0 %v1451
        %v1453 = vand.u32 %v325, 4294901760
        %1454 = vmatpush.msra.mxu0 %v1453
        %v1455 = vand.u32 %v316, 4294901760
        %1456 = vmatpush.msra.mxu0 %v1455
        %v1457 = vand.u32 %v307, 4294901760
        %1458 = vmatpush.msra.mxu0 %v1457
        %v1459 = vand.u32 %v298, 4294901760
        %1460 = vmatpush.msra.mxu0 %v1459
        %v1461 = vand.u32 %v289, 4294901760
        %1462 = vmatpush.msra.mxu0 %v1461
        %v1463 = vand.u32 %v280, 4294901760
        %1464 = vmatpush.msra.mxu0 %v1463
        %v1465 = vand.u32 %v271, 4294901760
        %1466 = vmatpush.msra.mxu0 %v1465
        %v1467 = vand.u32 %v266, 4294901760
        %v1468 = vsub.f32 %v266, %v1467
        %v1469 = vand.u32 %v1468, 4294901760
        %v1470 = vsub.f32 %v1468, %v1469
        %v1471 = vand.u32 %v1470, 4294901760
        %1472 = vmatmul.f32.gmra.mxu0 %v1471
        %v1473 = vpop.f32.mrf.mxu0
        %v1474 = vadd.f32 0.0, %v1473
        %1475 = vdwg.mxu0
        %v1476 = vand.u32 %v406, 4294901760
        %v1477 = vsub.f32 %v406, %v1476
        %v1478 = vand.u32 %v1477, 4294901760
        %v1479 = vsub.f32 %v1477, %v1478
        %v1480 = vand.u32 %v1479, 4294901760
        %1481 = vmatpush.msra.mxu0 %v1480
        %v1482 = vand.u32 %v397, 4294901760
        %v1483 = vsub.f32 %v397, %v1482
        %v1484 = vand.u32 %v1483, 4294901760
        %v1485 = vsub.f32 %v1483, %v1484
        %v1486 = vand.u32 %v1485, 4294901760
        %1487 = vmatpush.msra.mxu0 %v1486
        %v1488 = vand.u32 %v388, 4294901760
        %v1489 = vsub.f32 %v388, %v1488
        %v1490 = vand.u32 %v1489, 4294901760
        %v1491 = vsub.f32 %v1489, %v1490
        %v1492 = vand.u32 %v1491, 4294901760
        %1493 = vmatpush.msra.mxu0 %v1492
        %v1494 = vand.u32 %v379, 4294901760
        %v1495 = vsub.f32 %v379, %v1494
        %v1496 = vand.u32 %v1495, 4294901760
        %v1497 = vsub.f32 %v1495, %v1496
        %v1498 = vand.u32 %v1497, 4294901760
        %1499 = vmatpush.msra.mxu0 %v1498
        %v1500 = vand.u32 %v370, 4294901760
        %v1501 = vsub.f32 %v370, %v1500
        %v1502 = vand.u32 %v1501, 4294901760
        %v1503 = vsub.f32 %v1501, %v1502
        %v1504 = vand.u32 %v1503, 4294901760
        %1505 = vmatpush.msra.mxu0 %v1504
        %v1506 = vand.u32 %v361, 4294901760
        %v1507 = vsub.f32 %v361, %v1506
        %v1508 = vand.u32 %v1507, 4294901760
        %v1509 = vsub.f32 %v1507, %v1508
        %v1510 = vand.u32 %v1509, 4294901760
        %1511 = vmatpush.msra.mxu0 %v1510
        %v1512 = vand.u32 %v352, 4294901760
        %v1513 = vsub.f32 %v352, %v1512
        %v1514 = vand.u32 %v1513, 4294901760
        %v1515 = vsub.f32 %v1513, %v1514
        %v1516 = vand.u32 %v1515, 4294901760
        %1517 = vmatpush.msra.mxu0 %v1516
        %v1518 = vand.u32 %v343, 4294901760
        %v1519 = vsub.f32 %v343, %v1518
        %v1520 = vand.u32 %v1519, 4294901760
        %v1521 = vsub.f32 %v1519, %v1520
        %v1522 = vand.u32 %v1521, 4294901760
        %1523 = vmatpush.msra.mxu0 %v1522
        %v1524 = vand.u32 %v334, 4294901760
        %v1525 = vsub.f32 %v334, %v1524
        %v1526 = vand.u32 %v1525, 4294901760
        %v1527 = vsub.f32 %v1525, %v1526
        %v1528 = vand.u32 %v1527, 4294901760
        %1529 = vmatpush.msra.mxu0 %v1528
        %v1530 = vand.u32 %v325, 4294901760
        %v1531 = vsub.f32 %v325, %v1530
        %v1532 = vand.u32 %v1531, 4294901760
        %v1533 = vsub.f32 %v1531, %v1532
        %v1534 = vand.u32 %v1533, 4294901760
        %1535 = vmatpush.msra.mxu0 %v1534
        %v1536 = vand.u32 %v316, 4294901760
        %v1537 = vsub.f32 %v316, %v1536
        %v1538 = vand.u32 %v1537, 4294901760
        %v1539 = vsub.f32 %v1537, %v1538
        %v1540 = vand.u32 %v1539, 4294901760
        %1541 = vmatpush.msra.mxu0 %v1540
        %v1542 = vand.u32 %v307, 4294901760
        %v1543 = vsub.f32 %v307, %v1542
        %v1544 = vand.u32 %v1543, 4294901760
        %v1545 = vsub.f32 %v1543, %v1544
        %v1546 = vand.u32 %v1545, 4294901760
        %1547 = vmatpush.msra.mxu0 %v1546
        %v1548 = vand.u32 %v298, 4294901760
        %v1549 = vsub.f32 %v298, %v1548
        %v1550 = vand.u32 %v1549, 4294901760
        %v1551 = vsub.f32 %v1549, %v1550
        %v1552 = vand.u32 %v1551, 4294901760
        %1553 = vmatpush.msra.mxu0 %v1552
        %v1554 = vand.u32 %v289, 4294901760
        %v1555 = vsub.f32 %v289, %v1554
        %v1556 = vand.u32 %v1555, 4294901760
        %v1557 = vsub.f32 %v1555, %v1556
        %v1558 = vand.u32 %v1557, 4294901760
        %1559 = vmatpush.msra.mxu0 %v1558
        %v1560 = vand.u32 %v280, 4294901760
        %v1561 = vsub.f32 %v280, %v1560
        %v1562 = vand.u32 %v1561, 4294901760
        %v1563 = vsub.f32 %v1561, %v1562
        %v1564 = vand.u32 %v1563, 4294901760
        %1565 = vmatpush.msra.mxu0 %v1564
        %v1566 = vand.u32 %v271, 4294901760
        %v1567 = vsub.f32 %v271, %v1566
        %v1568 = vand.u32 %v1567, 4294901760
        %v1569 = vsub.f32 %v1567, %v1568
        %v1570 = vand.u32 %v1569, 4294901760
        %1571 = vmatpush.msra.mxu0 %v1570
        %v1572 = vand.u32 %v266, 4294901760
        %1573 = vmatmul.f32.gmra.mxu0 %v1572
        %v1574 = vpop.f32.mrf.mxu0
        %v1575 = vadd.f32 %v1474, %v1574
        %1576 = vdwg.mxu0
        %v1577 = vand.u32 %v406, 4294901760
        %v1578 = vsub.f32 %v406, %v1577
        %1579 = vmatpush.msra.mxu0 %v1578
        %v1580 = vand.u32 %v397, 4294901760
        %v1581 = vsub.f32 %v397, %v1580
        %1582 = vmatpush.msra.mxu0 %v1581
        %v1583 = vand.u32 %v388, 4294901760
        %v1584 = vsub.f32 %v388, %v1583
        %1585 = vmatpush.msra.mxu0 %v1584
        %v1586 = vand.u32 %v379, 4294901760
        %v1587 = vsub.f32 %v379, %v1586
        %1588 = vmatpush.msra.mxu0 %v1587
        %v1589 = vand.u32 %v370, 4294901760
        %v1590 = vsub.f32 %v370, %v1589
        %1591 = vmatpush.msra.mxu0 %v1590
        %v1592 = vand.u32 %v361, 4294901760
        %v1593 = vsub.f32 %v361, %v1592
        %1594 = vmatpush.msra.mxu0 %v1593
        %v1595 = vand.u32 %v352, 4294901760
        %v1596 = vsub.f32 %v352, %v1595
        %1597 = vmatpush.msra.mxu0 %v1596
        %v1598 = vand.u32 %v343, 4294901760
        %v1599 = vsub.f32 %v343, %v1598
        %1600 = vmatpush.msra.mxu0 %v1599
        %v1601 = vand.u32 %v334, 4294901760
        %v1602 = vsub.f32 %v334, %v1601
        %1603 = vmatpush.msra.mxu0 %v1602
        %v1604 = vand.u32 %v325, 4294901760
        %v1605 = vsub.f32 %v325, %v1604
        %1606 = vmatpush.msra.mxu0 %v1605
        %v1607 = vand.u32 %v316, 4294901760
        %v1608 = vsub.f32 %v316, %v1607
        %1609 = vmatpush.msra.mxu0 %v1608
        %v1610 = vand.u32 %v307, 4294901760
        %v1611 = vsub.f32 %v307, %v1610
        %1612 = vmatpush.msra.mxu0 %v1611
        %v1613 = vand.u32 %v298, 4294901760
        %v1614 = vsub.f32 %v298, %v1613
        %1615 = vmatpush.msra.mxu0 %v1614
        %v1616 = vand.u32 %v289, 4294901760
        %v1617 = vsub.f32 %v289, %v1616
        %1618 = vmatpush.msra.mxu0 %v1617
        %v1619 = vand.u32 %v280, 4294901760
        %v1620 = vsub.f32 %v280, %v1619
        %1621 = vmatpush.msra.mxu0 %v1620
        %v1622 = vand.u32 %v271, 4294901760
        %v1623 = vsub.f32 %v271, %v1622
        %1624 = vmatpush.msra.mxu0 %v1623
        %v1625 = vand.u32 %v266, 4294901760
        %v1626 = vsub.f32 %v266, %v1625
        %1627 = vmatmul.f32.gmra.mxu0 %v1626
        %v1628 = vpop.f32.mrf.mxu0
        %v1629 = vadd.f32 %v1575, %v1628
        %1630 = vdwg.mxu0
        %v1631 = vand.u32 %v406, 4294901760
        %1632 = vmatpush.msra.mxu0 %v1631
        %v1633 = vand.u32 %v397, 4294901760
        %1634 = vmatpush.msra.mxu0 %v1633
        %v1635 = vand.u32 %v388, 4294901760
        %1636 = vmatpush.msra.mxu0 %v1635
        %v1637 = vand.u32 %v379, 4294901760
        %1638 = vmatpush.msra.mxu0 %v1637
        %v1639 = vand.u32 %v370, 4294901760
        %1640 = vmatpush.msra.mxu0 %v1639
        %v1641 = vand.u32 %v361, 4294901760
        %1642 = vmatpush.msra.mxu0 %v1641
        %v1643 = vand.u32 %v352, 4294901760
        %1644 = vmatpush.msra.mxu0 %v1643
        %v1645 = vand.u32 %v343, 4294901760
        %1646 = vmatpush.msra.mxu0 %v1645
        %v1647 = vand.u32 %v334, 4294901760
        %1648 = vmatpush.msra.mxu0 %v1647
        %v1649 = vand.u32 %v325, 4294901760
        %1650 = vmatpush.msra.mxu0 %v1649
        %v1651 = vand.u32 %v316, 4294901760
        %1652 = vmatpush.msra.mxu0 %v1651
        %v1653 = vand.u32 %v307, 4294901760
        %1654 = vmatpush.msra.mxu0 %v1653
        %v1655 = vand.u32 %v298, 4294901760
        %1656 = vmatpush.msra.mxu0 %v1655
        %v1657 = vand.u32 %v289, 4294901760
        %1658 = vmatpush.msra.mxu0 %v1657
        %v1659 = vand.u32 %v280, 4294901760
        %1660 = vmatpush.msra.mxu0 %v1659
        %v1661 = vand.u32 %v271, 4294901760
        %1662 = vmatpush.msra.mxu0 %v1661
        %v1663 = vand.u32 %v266, 4294901760
        %v1664 = vsub.f32 %v266, %v1663
        %v1665 = vand.u32 %v1664, 4294901760
        %1666 = vmatmul.f32.gmra.mxu0 %v1665
        %v1667 = vpop.f32.mrf.mxu0
        %v1668 = vadd.f32 %v1629, %v1667
        %1669 = vdwg.mxu0
        %v1670 = vand.u32 %v406, 4294901760
        %v1671 = vsub.f32 %v406, %v1670
        %v1672 = vand.u32 %v1671, 4294901760
        %1673 = vmatpush.msra.mxu0 %v1672
        %v1674 = vand.u32 %v397, 4294901760
        %v1675 = vsub.f32 %v397, %v1674
        %v1676 = vand.u32 %v1675, 4294901760
        %1677 = vmatpush.msra.mxu0 %v1676
        %v1678 = vand.u32 %v388, 4294901760
        %v1679 = vsub.f32 %v388, %v1678
        %v1680 = vand.u32 %v1679, 4294901760
        %1681 = vmatpush.msra.mxu0 %v1680
        %v1682 = vand.u32 %v379, 4294901760
        %v1683 = vsub.f32 %v379, %v1682
        %v1684 = vand.u32 %v1683, 4294901760
        %1685 = vmatpush.msra.mxu0 %v1684
        %v1686 = vand.u32 %v370, 4294901760
        %v1687 = vsub.f32 %v370, %v1686
        %v1688 = vand.u32 %v1687, 4294901760
        %1689 = vmatpush.msra.mxu0 %v1688
        %v1690 = vand.u32 %v361, 4294901760
        %v1691 = vsub.f32 %v361, %v1690
        %v1692 = vand.u32 %v1691, 4294901760
        %1693 = vmatpush.msra.mxu0 %v1692
        %v1694 = vand.u32 %v352, 4294901760
        %v1695 = vsub.f32 %v352, %v1694
        %v1696 = vand.u32 %v1695, 4294901760
        %1697 = vmatpush.msra.mxu0 %v1696
        %v1698 = vand.u32 %v343, 4294901760
        %v1699 = vsub.f32 %v343, %v1698
        %v1700 = vand.u32 %v1699, 4294901760
        %1701 = vmatpush.msra.mxu0 %v1700
        %v1702 = vand.u32 %v334, 4294901760
        %v1703 = vsub.f32 %v334, %v1702
        %v1704 = vand.u32 %v1703, 4294901760
        %1705 = vmatpush.msra.mxu0 %v1704
        %v1706 = vand.u32 %v325, 4294901760
        %v1707 = vsub.f32 %v325, %v1706
        %v1708 = vand.u32 %v1707, 4294901760
        %1709 = vmatpush.msra.mxu0 %v1708
        %v1710 = vand.u32 %v316, 4294901760
        %v1711 = vsub.f32 %v316, %v1710
        %v1712 = vand.u32 %v1711, 4294901760
        %1713 = vmatpush.msra.mxu0 %v1712
        %v1714 = vand.u32 %v307, 4294901760
        %v1715 = vsub.f32 %v307, %v1714
        %v1716 = vand.u32 %v1715, 4294901760
        %1717 = vmatpush.msra.mxu0 %v1716
        %v1718 = vand.u32 %v298, 4294901760
        %v1719 = vsub.f32 %v298, %v1718
        %v1720 = vand.u32 %v1719, 4294901760
        %1721 = vmatpush.msra.mxu0 %v1720
        %v1722 = vand.u32 %v289, 4294901760
        %v1723 = vsub.f32 %v289, %v1722
        %v1724 = vand.u32 %v1723, 4294901760
        %1725 = vmatpush.msra.mxu0 %v1724
        %v1726 = vand.u32 %v280, 4294901760
        %v1727 = vsub.f32 %v280, %v1726
        %v1728 = vand.u32 %v1727, 4294901760
        %1729 = vmatpush.msra.mxu0 %v1728
        %v1730 = vand.u32 %v271, 4294901760
        %v1731 = vsub.f32 %v271, %v1730
        %v1732 = vand.u32 %v1731, 4294901760
        %1733 = vmatpush.msra.mxu0 %v1732
        %v1734 = vand.u32 %v266, 4294901760
        %1735 = vmatmul.f32.gmra.mxu0 %v1734
        %v1736 = vpop.f32.mrf.mxu0
        %v1737 = vadd.f32 %v1668, %v1736
        %1738 = vdwg.mxu0
        %v1739 = vand.u32 %v406, 4294901760
        %1740 = vmatpush.msra.mxu0 %v1739
        %v1741 = vand.u32 %v397, 4294901760
        %1742 = vmatpush.msra.mxu0 %v1741
        %v1743 = vand.u32 %v388, 4294901760
        %1744 = vmatpush.msra.mxu0 %v1743
        %v1745 = vand.u32 %v379, 4294901760
        %1746 = vmatpush.msra.mxu0 %v1745
        %v1747 = vand.u32 %v370, 4294901760
        %1748 = vmatpush.msra.mxu0 %v1747
        %v1749 = vand.u32 %v361, 4294901760
        %1750 = vmatpush.msra.mxu0 %v1749
        %v1751 = vand.u32 %v352, 4294901760
        %1752 = vmatpush.msra.mxu0 %v1751
        %v1753 = vand.u32 %v343, 4294901760
        %1754 = vmatpush.msra.mxu0 %v1753
        %v1755 = vand.u32 %v334, 4294901760
        %1756 = vmatpush.msra.mxu0 %v1755
        %v1757 = vand.u32 %v325, 4294901760
        %1758 = vmatpush.msra.mxu0 %v1757
        %v1759 = vand.u32 %v316, 4294901760
        %1760 = vmatpush.msra.mxu0 %v1759
        %v1761 = vand.u32 %v307, 4294901760
        %1762 = vmatpush.msra.mxu0 %v1761
        %v1763 = vand.u32 %v298, 4294901760
        %1764 = vmatpush.msra.mxu0 %v1763
        %v1765 = vand.u32 %v289, 4294901760
        %1766 = vmatpush.msra.mxu0 %v1765
        %v1767 = vand.u32 %v280, 4294901760
        %1768 = vmatpush.msra.mxu0 %v1767
        %v1769 = vand.u32 %v271, 4294901760
        %1770 = vmatpush.msra.mxu0 %v1769
        %v1771 = vand.u32 %v266, 4294901760
        %1772 = vmatmul.f32.gmra.mxu0 %v1771
        %v1773 = vpop.f32.mrf.mxu0
        %v1774 = vadd.f32 %v1737, %v1773
        %1775 = vdwg.mxu0
        %v1776 = vand.u32 %v407, 4294901760
        %1777 = vmatpush.msra.mxu0 %v1776
        %v1778 = vand.u32 %v398, 4294901760
        %1779 = vmatpush.msra.mxu0 %v1778
        %v1780 = vand.u32 %v389, 4294901760
        %1781 = vmatpush.msra.mxu0 %v1780
        %v1782 = vand.u32 %v380, 4294901760
        %1783 = vmatpush.msra.mxu0 %v1782
        %v1784 = vand.u32 %v371, 4294901760
        %1785 = vmatpush.msra.mxu0 %v1784
        %v1786 = vand.u32 %v362, 4294901760
        %1787 = vmatpush.msra.mxu0 %v1786
        %v1788 = vand.u32 %v353, 4294901760
        %1789 = vmatpush.msra.mxu0 %v1788
        %v1790 = vand.u32 %v344, 4294901760
        %1791 = vmatpush.msra.mxu0 %v1790
        %v1792 = vand.u32 %v335, 4294901760
        %1793 = vmatpush.msra.mxu0 %v1792
        %v1794 = vand.u32 %v326, 4294901760
        %1795 = vmatpush.msra.mxu0 %v1794
        %v1796 = vand.u32 %v317, 4294901760
        %1797 = vmatpush.msra.mxu0 %v1796
        %v1798 = vand.u32 %v308, 4294901760
        %1799 = vmatpush.msra.mxu0 %v1798
        %v1800 = vand.u32 %v299, 4294901760
        %1801 = vmatpush.msra.mxu0 %v1800
        %v1802 = vand.u32 %v290, 4294901760
        %1803 = vmatpush.msra.mxu0 %v1802
        %v1804 = vand.u32 %v281, 4294901760
        %1805 = vmatpush.msra.mxu0 %v1804
        %v1806 = vand.u32 %v272, 4294901760
        %1807 = vmatpush.msra.mxu0 %v1806
        %v1808 = vand.u32 %v266, 4294901760
        %v1809 = vsub.f32 %v266, %v1808
        %v1810 = vand.u32 %v1809, 4294901760
        %v1811 = vsub.f32 %v1809, %v1810
        %v1812 = vand.u32 %v1811, 4294901760
        %1813 = vmatmul.f32.gmra.mxu0 %v1812
        %v1814 = vpop.f32.mrf.mxu0
        %v1815 = vadd.f32 0.0, %v1814
        %1816 = vdwg.mxu0
        %v1817 = vand.u32 %v407, 4294901760
        %v1818 = vsub.f32 %v407, %v1817
        %v1819 = vand.u32 %v1818, 4294901760
        %v1820 = vsub.f32 %v1818, %v1819
        %v1821 = vand.u32 %v1820, 4294901760
        %1822 = vmatpush.msra.mxu0 %v1821
        %v1823 = vand.u32 %v398, 4294901760
        %v1824 = vsub.f32 %v398, %v1823
        %v1825 = vand.u32 %v1824, 4294901760
        %v1826 = vsub.f32 %v1824, %v1825
        %v1827 = vand.u32 %v1826, 4294901760
        %1828 = vmatpush.msra.mxu0 %v1827
        %v1829 = vand.u32 %v389, 4294901760
        %v1830 = vsub.f32 %v389, %v1829
        %v1831 = vand.u32 %v1830, 4294901760
        %v1832 = vsub.f32 %v1830, %v1831
        %v1833 = vand.u32 %v1832, 4294901760
        %1834 = vmatpush.msra.mxu0 %v1833
        %v1835 = vand.u32 %v380, 4294901760
        %v1836 = vsub.f32 %v380, %v1835
        %v1837 = vand.u32 %v1836, 4294901760
        %v1838 = vsub.f32 %v1836, %v1837
        %v1839 = vand.u32 %v1838, 4294901760
        %1840 = vmatpush.msra.mxu0 %v1839
        %v1841 = vand.u32 %v371, 4294901760
        %v1842 = vsub.f32 %v371, %v1841
        %v1843 = vand.u32 %v1842, 4294901760
        %v1844 = vsub.f32 %v1842, %v1843
        %v1845 = vand.u32 %v1844, 4294901760
        %1846 = vmatpush.msra.mxu0 %v1845
        %v1847 = vand.u32 %v362, 4294901760
        %v1848 = vsub.f32 %v362, %v1847
        %v1849 = vand.u32 %v1848, 4294901760
        %v1850 = vsub.f32 %v1848, %v1849
        %v1851 = vand.u32 %v1850, 4294901760
        %1852 = vmatpush.msra.mxu0 %v1851
        %v1853 = vand.u32 %v353, 4294901760
        %v1854 = vsub.f32 %v353, %v1853
        %v1855 = vand.u32 %v1854, 4294901760
        %v1856 = vsub.f32 %v1854, %v1855
        %v1857 = vand.u32 %v1856, 4294901760
        %1858 = vmatpush.msra.mxu0 %v1857
        %v1859 = vand.u32 %v344, 4294901760
        %v1860 = vsub.f32 %v344, %v1859
        %v1861 = vand.u32 %v1860, 4294901760
        %v1862 = vsub.f32 %v1860, %v1861
        %v1863 = vand.u32 %v1862, 4294901760
        %1864 = vmatpush.msra.mxu0 %v1863
        %v1865 = vand.u32 %v335, 4294901760
        %v1866 = vsub.f32 %v335, %v1865
        %v1867 = vand.u32 %v1866, 4294901760
        %v1868 = vsub.f32 %v1866, %v1867
        %v1869 = vand.u32 %v1868, 4294901760
        %1870 = vmatpush.msra.mxu0 %v1869
        %v1871 = vand.u32 %v326, 4294901760
        %v1872 = vsub.f32 %v326, %v1871
        %v1873 = vand.u32 %v1872, 4294901760
        %v1874 = vsub.f32 %v1872, %v1873
        %v1875 = vand.u32 %v1874, 4294901760
        %1876 = vmatpush.msra.mxu0 %v1875
        %v1877 = vand.u32 %v317, 4294901760
        %v1878 = vsub.f32 %v317, %v1877
        %v1879 = vand.u32 %v1878, 4294901760
        %v1880 = vsub.f32 %v1878, %v1879
        %v1881 = vand.u32 %v1880, 4294901760
        %1882 = vmatpush.msra.mxu0 %v1881
        %v1883 = vand.u32 %v308, 4294901760
        %v1884 = vsub.f32 %v308, %v1883
        %v1885 = vand.u32 %v1884, 4294901760
        %v1886 = vsub.f32 %v1884, %v1885
        %v1887 = vand.u32 %v1886, 4294901760
        %1888 = vmatpush.msra.mxu0 %v1887
        %v1889 = vand.u32 %v299, 4294901760
        %v1890 = vsub.f32 %v299, %v1889
        %v1891 = vand.u32 %v1890, 4294901760
        %v1892 = vsub.f32 %v1890, %v1891
        %v1893 = vand.u32 %v1892, 4294901760
        %1894 = vmatpush.msra.mxu0 %v1893
        %v1895 = vand.u32 %v290, 4294901760
        %v1896 = vsub.f32 %v290, %v1895
        %v1897 = vand.u32 %v1896, 4294901760
        %v1898 = vsub.f32 %v1896, %v1897
        %v1899 = vand.u32 %v1898, 4294901760
        %1900 = vmatpush.msra.mxu0 %v1899
        %v1901 = vand.u32 %v281, 4294901760
        %v1902 = vsub.f32 %v281, %v1901
        %v1903 = vand.u32 %v1902, 4294901760
        %v1904 = vsub.f32 %v1902, %v1903
        %v1905 = vand.u32 %v1904, 4294901760
        %1906 = vmatpush.msra.mxu0 %v1905
        %v1907 = vand.u32 %v272, 4294901760
        %v1908 = vsub.f32 %v272, %v1907
        %v1909 = vand.u32 %v1908, 4294901760
        %v1910 = vsub.f32 %v1908, %v1909
        %v1911 = vand.u32 %v1910, 4294901760
        %1912 = vmatpush.msra.mxu0 %v1911
        %v1913 = vand.u32 %v266, 4294901760
        %1914 = vmatmul.f32.gmra.mxu0 %v1913
        %v1915 = vpop.f32.mrf.mxu0
        %v1916 = vadd.f32 %v1815, %v1915
        %1917 = vdwg.mxu0
        %v1918 = vand.u32 %v407, 4294901760
        %v1919 = vsub.f32 %v407, %v1918
        %1920 = vmatpush.msra.mxu0 %v1919
        %v1921 = vand.u32 %v398, 4294901760
        %v1922 = vsub.f32 %v398, %v1921
        %1923 = vmatpush.msra.mxu0 %v1922
        %v1924 = vand.u32 %v389, 4294901760
        %v1925 = vsub.f32 %v389, %v1924
        %1926 = vmatpush.msra.mxu0 %v1925
        %v1927 = vand.u32 %v380, 4294901760
        %v1928 = vsub.f32 %v380, %v1927
        %1929 = vmatpush.msra.mxu0 %v1928
        %v1930 = vand.u32 %v371, 4294901760
        %v1931 = vsub.f32 %v371, %v1930
        %1932 = vmatpush.msra.mxu0 %v1931
        %v1933 = vand.u32 %v362, 4294901760
        %v1934 = vsub.f32 %v362, %v1933
        %1935 = vmatpush.msra.mxu0 %v1934
        %v1936 = vand.u32 %v353, 4294901760
        %v1937 = vsub.f32 %v353, %v1936
        %1938 = vmatpush.msra.mxu0 %v1937
        %v1939 = vand.u32 %v344, 4294901760
        %v1940 = vsub.f32 %v344, %v1939
        %1941 = vmatpush.msra.mxu0 %v1940
        %v1942 = vand.u32 %v335, 4294901760
        %v1943 = vsub.f32 %v335, %v1942
        %1944 = vmatpush.msra.mxu0 %v1943
        %v1945 = vand.u32 %v326, 4294901760
        %v1946 = vsub.f32 %v326, %v1945
        %1947 = vmatpush.msra.mxu0 %v1946
        %v1948 = vand.u32 %v317, 4294901760
        %v1949 = vsub.f32 %v317, %v1948
        %1950 = vmatpush.msra.mxu0 %v1949
        %v1951 = vand.u32 %v308, 4294901760
        %v1952 = vsub.f32 %v308, %v1951
        %1953 = vmatpush.msra.mxu0 %v1952
        %v1954 = vand.u32 %v299, 4294901760
        %v1955 = vsub.f32 %v299, %v1954
        %1956 = vmatpush.msra.mxu0 %v1955
        %v1957 = vand.u32 %v290, 4294901760
        %v1958 = vsub.f32 %v290, %v1957
        %1959 = vmatpush.msra.mxu0 %v1958
        %v1960 = vand.u32 %v281, 4294901760
        %v1961 = vsub.f32 %v281, %v1960
        %1962 = vmatpush.msra.mxu0 %v1961
        %v1963 = vand.u32 %v272, 4294901760
        %v1964 = vsub.f32 %v272, %v1963
        %1965 = vmatpush.msra.mxu0 %v1964
        %v1966 = vand.u32 %v266, 4294901760
        %v1967 = vsub.f32 %v266, %v1966
        %1968 = vmatmul.f32.gmra.mxu0 %v1967
        %v1969 = vpop.f32.mrf.mxu0
        %v1970 = vadd.f32 %v1916, %v1969
        %1971 = vdwg.mxu0
        %v1972 = vand.u32 %v407, 4294901760
        %1973 = vmatpush.msra.mxu0 %v1972
        %v1974 = vand.u32 %v398, 4294901760
        %1975 = vmatpush.msra.mxu0 %v1974
        %v1976 = vand.u32 %v389, 4294901760
        %1977 = vmatpush.msra.mxu0 %v1976
        %v1978 = vand.u32 %v380, 4294901760
        %1979 = vmatpush.msra.mxu0 %v1978
        %v1980 = vand.u32 %v371, 4294901760
        %1981 = vmatpush.msra.mxu0 %v1980
        %v1982 = vand.u32 %v362, 4294901760
        %1983 = vmatpush.msra.mxu0 %v1982
        %v1984 = vand.u32 %v353, 4294901760
        %1985 = vmatpush.msra.mxu0 %v1984
        %v1986 = vand.u32 %v344, 4294901760
        %1987 = vmatpush.msra.mxu0 %v1986
        %v1988 = vand.u32 %v335, 4294901760
        %1989 = vmatpush.msra.mxu0 %v1988
        %v1990 = vand.u32 %v326, 4294901760
        %1991 = vmatpush.msra.mxu0 %v1990
        %v1992 = vand.u32 %v317, 4294901760
        %1993 = vmatpush.msra.mxu0 %v1992
        %v1994 = vand.u32 %v308, 4294901760
        %1995 = vmatpush.msra.mxu0 %v1994
        %v1996 = vand.u32 %v299, 4294901760
        %1997 = vmatpush.msra.mxu0 %v1996
        %v1998 = vand.u32 %v290, 4294901760
        %1999 = vmatpush.msra.mxu0 %v1998
        %v2000 = vand.u32 %v281, 4294901760
        %2001 = vmatpush.msra.mxu0 %v2000
        %v2002 = vand.u32 %v272, 4294901760
        %2003 = vmatpush.msra.mxu0 %v2002
        %v2004 = vand.u32 %v266, 4294901760
        %v2005 = vsub.f32 %v266, %v2004
        %v2006 = vand.u32 %v2005, 4294901760
        %2007 = vmatmul.f32.gmra.mxu0 %v2006
        %v2008 = vpop.f32.mrf.mxu0
        %v2009 = vadd.f32 %v1970, %v2008
        %2010 = vdwg.mxu0
        %v2011 = vand.u32 %v407, 4294901760
        %v2012 = vsub.f32 %v407, %v2011
        %v2013 = vand.u32 %v2012, 4294901760
        %2014 = vmatpush.msra.mxu0 %v2013
        %v2015 = vand.u32 %v398, 4294901760
        %v2016 = vsub.f32 %v398, %v2015
        %v2017 = vand.u32 %v2016, 4294901760
        %2018 = vmatpush.msra.mxu0 %v2017
        %v2019 = vand.u32 %v389, 4294901760
        %v2020 = vsub.f32 %v389, %v2019
        %v2021 = vand.u32 %v2020, 4294901760
        %2022 = vmatpush.msra.mxu0 %v2021
        %v2023 = vand.u32 %v380, 4294901760
        %v2024 = vsub.f32 %v380, %v2023
        %v2025 = vand.u32 %v2024, 4294901760
        %2026 = vmatpush.msra.mxu0 %v2025
        %v2027 = vand.u32 %v371, 4294901760
        %v2028 = vsub.f32 %v371, %v2027
        %v2029 = vand.u32 %v2028, 4294901760
        %2030 = vmatpush.msra.mxu0 %v2029
        %v2031 = vand.u32 %v362, 4294901760
        %v2032 = vsub.f32 %v362, %v2031
        %v2033 = vand.u32 %v2032, 4294901760
        %2034 = vmatpush.msra.mxu0 %v2033
        %v2035 = vand.u32 %v353, 4294901760
        %v2036 = vsub.f32 %v353, %v2035
        %v2037 = vand.u32 %v2036, 4294901760
        %2038 = vmatpush.msra.mxu0 %v2037
        %v2039 = vand.u32 %v344, 4294901760
        %v2040 = vsub.f32 %v344, %v2039
        %v2041 = vand.u32 %v2040, 4294901760
        %2042 = vmatpush.msra.mxu0 %v2041
        %v2043 = vand.u32 %v335, 4294901760
        %v2044 = vsub.f32 %v335, %v2043
        %v2045 = vand.u32 %v2044, 4294901760
        %2046 = vmatpush.msra.mxu0 %v2045
        %v2047 = vand.u32 %v326, 4294901760
        %v2048 = vsub.f32 %v326, %v2047
        %v2049 = vand.u32 %v2048, 4294901760
        %2050 = vmatpush.msra.mxu0 %v2049
        %v2051 = vand.u32 %v317, 4294901760
        %v2052 = vsub.f32 %v317, %v2051
        %v2053 = vand.u32 %v2052, 4294901760
        %2054 = vmatpush.msra.mxu0 %v2053
        %v2055 = vand.u32 %v308, 4294901760
        %v2056 = vsub.f32 %v308, %v2055
        %v2057 = vand.u32 %v2056, 4294901760
        %2058 = vmatpush.msra.mxu0 %v2057
        %v2059 = vand.u32 %v299, 4294901760
        %v2060 = vsub.f32 %v299, %v2059
        %v2061 = vand.u32 %v2060, 4294901760
        %2062 = vmatpush.msra.mxu0 %v2061
        %v2063 = vand.u32 %v290, 4294901760
        %v2064 = vsub.f32 %v290, %v2063
        %v2065 = vand.u32 %v2064, 4294901760
        %2066 = vmatpush.msra.mxu0 %v2065
        %v2067 = vand.u32 %v281, 4294901760
        %v2068 = vsub.f32 %v281, %v2067
        %v2069 = vand.u32 %v2068, 4294901760
        %2070 = vmatpush.msra.mxu0 %v2069
        %v2071 = vand.u32 %v272, 4294901760
        %v2072 = vsub.f32 %v272, %v2071
        %v2073 = vand.u32 %v2072, 4294901760
        %2074 = vmatpush.msra.mxu0 %v2073
        %v2075 = vand.u32 %v266, 4294901760
        %2076 = vmatmul.f32.gmra.mxu0 %v2075
        %v2077 = vpop.f32.mrf.mxu0
        %v2078 = vadd.f32 %v2009, %v2077
        %2079 = vdwg.mxu0
        %v2080 = vand.u32 %v407, 4294901760
        %2081 = vmatpush.msra.mxu0 %v2080
        %v2082 = vand.u32 %v398, 4294901760
        %2083 = vmatpush.msra.mxu0 %v2082
        %v2084 = vand.u32 %v389, 4294901760
        %2085 = vmatpush.msra.mxu0 %v2084
        %v2086 = vand.u32 %v380, 4294901760
        %2087 = vmatpush.msra.mxu0 %v2086
        %v2088 = vand.u32 %v371, 4294901760
        %2089 = vmatpush.msra.mxu0 %v2088
        %v2090 = vand.u32 %v362, 4294901760
        %2091 = vmatpush.msra.mxu0 %v2090
        %v2092 = vand.u32 %v353, 4294901760
        %2093 = vmatpush.msra.mxu0 %v2092
        %v2094 = vand.u32 %v344, 4294901760
        %2095 = vmatpush.msra.mxu0 %v2094
        %v2096 = vand.u32 %v335, 4294901760
        %2097 = vmatpush.msra.mxu0 %v2096
        %v2098 = vand.u32 %v326, 4294901760
        %2099 = vmatpush.msra.mxu0 %v2098
        %v2100 = vand.u32 %v317, 4294901760
        %2101 = vmatpush.msra.mxu0 %v2100
        %v2102 = vand.u32 %v308, 4294901760
        %2103 = vmatpush.msra.mxu0 %v2102
        %v2104 = vand.u32 %v299, 4294901760
        %2105 = vmatpush.msra.mxu0 %v2104
        %v2106 = vand.u32 %v290, 4294901760
        %2107 = vmatpush.msra.mxu0 %v2106
        %v2108 = vand.u32 %v281, 4294901760
        %2109 = vmatpush.msra.mxu0 %v2108
        %v2110 = vand.u32 %v272, 4294901760
        %2111 = vmatpush.msra.mxu0 %v2110
        %v2112 = vand.u32 %v266, 4294901760
        %2113 = vmatmul.f32.gmra.mxu0 %v2112
        %v2114 = vpop.f32.mrf.mxu0
        %v2115 = vadd.f32 %v2078, %v2114
        %2116 = vdwg.mxu0
        %v2117 = vand.u32 %v408, 4294901760
        %2118 = vmatpush.msra.mxu0 %v2117
        %v2119 = vand.u32 %v399, 4294901760
        %2120 = vmatpush.msra.mxu0 %v2119
        %v2121 = vand.u32 %v390, 4294901760
        %2122 = vmatpush.msra.mxu0 %v2121
        %v2123 = vand.u32 %v381, 4294901760
        %2124 = vmatpush.msra.mxu0 %v2123
        %v2125 = vand.u32 %v372, 4294901760
        %2126 = vmatpush.msra.mxu0 %v2125
        %v2127 = vand.u32 %v363, 4294901760
        %2128 = vmatpush.msra.mxu0 %v2127
        %v2129 = vand.u32 %v354, 4294901760
        %2130 = vmatpush.msra.mxu0 %v2129
        %v2131 = vand.u32 %v345, 4294901760
        %2132 = vmatpush.msra.mxu0 %v2131
        %v2133 = vand.u32 %v336, 4294901760
        %2134 = vmatpush.msra.mxu0 %v2133
        %v2135 = vand.u32 %v327, 4294901760
        %2136 = vmatpush.msra.mxu0 %v2135
        %v2137 = vand.u32 %v318, 4294901760
        %2138 = vmatpush.msra.mxu0 %v2137
        %v2139 = vand.u32 %v309, 4294901760
        %2140 = vmatpush.msra.mxu0 %v2139
        %v2141 = vand.u32 %v300, 4294901760
        %2142 = vmatpush.msra.mxu0 %v2141
        %v2143 = vand.u32 %v291, 4294901760
        %2144 = vmatpush.msra.mxu0 %v2143
        %v2145 = vand.u32 %v282, 4294901760
        %2146 = vmatpush.msra.mxu0 %v2145
        %v2147 = vand.u32 %v273, 4294901760
        %2148 = vmatpush.msra.mxu0 %v2147
        %v2149 = vand.u32 %v266, 4294901760
        %v2150 = vsub.f32 %v266, %v2149
        %v2151 = vand.u32 %v2150, 4294901760
        %v2152 = vsub.f32 %v2150, %v2151
        %v2153 = vand.u32 %v2152, 4294901760
        %2154 = vmatmul.f32.gmra.mxu0 %v2153
        %v2155 = vpop.f32.mrf.mxu0
        %v2156 = vadd.f32 0.0, %v2155
        %2157 = vdwg.mxu0
        %v2158 = vand.u32 %v408, 4294901760
        %v2159 = vsub.f32 %v408, %v2158
        %v2160 = vand.u32 %v2159, 4294901760
        %v2161 = vsub.f32 %v2159, %v2160
        %v2162 = vand.u32 %v2161, 4294901760
        %2163 = vmatpush.msra.mxu0 %v2162
        %v2164 = vand.u32 %v399, 4294901760
        %v2165 = vsub.f32 %v399, %v2164
        %v2166 = vand.u32 %v2165, 4294901760
        %v2167 = vsub.f32 %v2165, %v2166
        %v2168 = vand.u32 %v2167, 4294901760
        %2169 = vmatpush.msra.mxu0 %v2168
        %v2170 = vand.u32 %v390, 4294901760
        %v2171 = vsub.f32 %v390, %v2170
        %v2172 = vand.u32 %v2171, 4294901760
        %v2173 = vsub.f32 %v2171, %v2172
        %v2174 = vand.u32 %v2173, 4294901760
        %2175 = vmatpush.msra.mxu0 %v2174
        %v2176 = vand.u32 %v381, 4294901760
        %v2177 = vsub.f32 %v381, %v2176
        %v2178 = vand.u32 %v2177, 4294901760
        %v2179 = vsub.f32 %v2177, %v2178
        %v2180 = vand.u32 %v2179, 4294901760
        %2181 = vmatpush.msra.mxu0 %v2180
        %v2182 = vand.u32 %v372, 4294901760
        %v2183 = vsub.f32 %v372, %v2182
        %v2184 = vand.u32 %v2183, 4294901760
        %v2185 = vsub.f32 %v2183, %v2184
        %v2186 = vand.u32 %v2185, 4294901760
        %2187 = vmatpush.msra.mxu0 %v2186
        %v2188 = vand.u32 %v363, 4294901760
        %v2189 = vsub.f32 %v363, %v2188
        %v2190 = vand.u32 %v2189, 4294901760
        %v2191 = vsub.f32 %v2189, %v2190
        %v2192 = vand.u32 %v2191, 4294901760
        %2193 = vmatpush.msra.mxu0 %v2192
        %v2194 = vand.u32 %v354, 4294901760
        %v2195 = vsub.f32 %v354, %v2194
        %v2196 = vand.u32 %v2195, 4294901760
        %v2197 = vsub.f32 %v2195, %v2196
        %v2198 = vand.u32 %v2197, 4294901760
        %2199 = vmatpush.msra.mxu0 %v2198
        %v2200 = vand.u32 %v345, 4294901760
        %v2201 = vsub.f32 %v345, %v2200
        %v2202 = vand.u32 %v2201, 4294901760
        %v2203 = vsub.f32 %v2201, %v2202
        %v2204 = vand.u32 %v2203, 4294901760
        %2205 = vmatpush.msra.mxu0 %v2204
        %v2206 = vand.u32 %v336, 4294901760
        %v2207 = vsub.f32 %v336, %v2206
        %v2208 = vand.u32 %v2207, 4294901760
        %v2209 = vsub.f32 %v2207, %v2208
        %v2210 = vand.u32 %v2209, 4294901760
        %2211 = vmatpush.msra.mxu0 %v2210
        %v2212 = vand.u32 %v327, 4294901760
        %v2213 = vsub.f32 %v327, %v2212
        %v2214 = vand.u32 %v2213, 4294901760
        %v2215 = vsub.f32 %v2213, %v2214
        %v2216 = vand.u32 %v2215, 4294901760
        %2217 = vmatpush.msra.mxu0 %v2216
        %v2218 = vand.u32 %v318, 4294901760
        %v2219 = vsub.f32 %v318, %v2218
        %v2220 = vand.u32 %v2219, 4294901760
        %v2221 = vsub.f32 %v2219, %v2220
        %v2222 = vand.u32 %v2221, 4294901760
        %2223 = vmatpush.msra.mxu0 %v2222
        %v2224 = vand.u32 %v309, 4294901760
        %v2225 = vsub.f32 %v309, %v2224
        %v2226 = vand.u32 %v2225, 4294901760
        %v2227 = vsub.f32 %v2225, %v2226
        %v2228 = vand.u32 %v2227, 4294901760
        %2229 = vmatpush.msra.mxu0 %v2228
        %v2230 = vand.u32 %v300, 4294901760
        %v2231 = vsub.f32 %v300, %v2230
        %v2232 = vand.u32 %v2231, 4294901760
        %v2233 = vsub.f32 %v2231, %v2232
        %v2234 = vand.u32 %v2233, 4294901760
        %2235 = vmatpush.msra.mxu0 %v2234
        %v2236 = vand.u32 %v291, 4294901760
        %v2237 = vsub.f32 %v291, %v2236
        %v2238 = vand.u32 %v2237, 4294901760
        %v2239 = vsub.f32 %v2237, %v2238
        %v2240 = vand.u32 %v2239, 4294901760
        %2241 = vmatpush.msra.mxu0 %v2240
        %v2242 = vand.u32 %v282, 4294901760
        %v2243 = vsub.f32 %v282, %v2242
        %v2244 = vand.u32 %v2243, 4294901760
        %v2245 = vsub.f32 %v2243, %v2244
        %v2246 = vand.u32 %v2245, 4294901760
        %2247 = vmatpush.msra.mxu0 %v2246
        %v2248 = vand.u32 %v273, 4294901760
        %v2249 = vsub.f32 %v273, %v2248
        %v2250 = vand.u32 %v2249, 4294901760
        %v2251 = vsub.f32 %v2249, %v2250
        %v2252 = vand.u32 %v2251, 4294901760
        %2253 = vmatpush.msra.mxu0 %v2252
        %v2254 = vand.u32 %v266, 4294901760
        %2255 = vmatmul.f32.gmra.mxu0 %v2254
        %v2256 = vpop.f32.mrf.mxu0
        %v2257 = vadd.f32 %v2156, %v2256
        %2258 = vdwg.mxu0
        %v2259 = vand.u32 %v408, 4294901760
        %v2260 = vsub.f32 %v408, %v2259
        %2261 = vmatpush.msra.mxu0 %v2260
        %v2262 = vand.u32 %v399, 4294901760
        %v2263 = vsub.f32 %v399, %v2262
        %2264 = vmatpush.msra.mxu0 %v2263
        %v2265 = vand.u32 %v390, 4294901760
        %v2266 = vsub.f32 %v390, %v2265
        %2267 = vmatpush.msra.mxu0 %v2266
        %v2268 = vand.u32 %v381, 4294901760
        %v2269 = vsub.f32 %v381, %v2268
        %2270 = vmatpush.msra.mxu0 %v2269
        %v2271 = vand.u32 %v372, 4294901760
        %v2272 = vsub.f32 %v372, %v2271
        %2273 = vmatpush.msra.mxu0 %v2272
        %v2274 = vand.u32 %v363, 4294901760
        %v2275 = vsub.f32 %v363, %v2274
        %2276 = vmatpush.msra.mxu0 %v2275
        %v2277 = vand.u32 %v354, 4294901760
        %v2278 = vsub.f32 %v354, %v2277
        %2279 = vmatpush.msra.mxu0 %v2278
        %v2280 = vand.u32 %v345, 4294901760
        %v2281 = vsub.f32 %v345, %v2280
        %2282 = vmatpush.msra.mxu0 %v2281
        %v2283 = vand.u32 %v336, 4294901760
        %v2284 = vsub.f32 %v336, %v2283
        %2285 = vmatpush.msra.mxu0 %v2284
        %v2286 = vand.u32 %v327, 4294901760
        %v2287 = vsub.f32 %v327, %v2286
        %2288 = vmatpush.msra.mxu0 %v2287
        %v2289 = vand.u32 %v318, 4294901760
        %v2290 = vsub.f32 %v318, %v2289
        %2291 = vmatpush.msra.mxu0 %v2290
        %v2292 = vand.u32 %v309, 4294901760
        %v2293 = vsub.f32 %v309, %v2292
        %2294 = vmatpush.msra.mxu0 %v2293
        %v2295 = vand.u32 %v300, 4294901760
        %v2296 = vsub.f32 %v300, %v2295
        %2297 = vmatpush.msra.mxu0 %v2296
        %v2298 = vand.u32 %v291, 4294901760
        %v2299 = vsub.f32 %v291, %v2298
        %2300 = vmatpush.msra.mxu0 %v2299
        %v2301 = vand.u32 %v282, 4294901760
        %v2302 = vsub.f32 %v282, %v2301
        %2303 = vmatpush.msra.mxu0 %v2302
        %v2304 = vand.u32 %v273, 4294901760
        %v2305 = vsub.f32 %v273, %v2304
        %2306 = vmatpush.msra.mxu0 %v2305
        %v2307 = vand.u32 %v266, 4294901760
        %v2308 = vsub.f32 %v266, %v2307
        %2309 = vmatmul.f32.gmra.mxu0 %v2308
        %v2310 = vpop.f32.mrf.mxu0
        %v2311 = vadd.f32 %v2257, %v2310
        %2312 = vdwg.mxu0
        %v2313 = vand.u32 %v408, 4294901760
        %2314 = vmatpush.msra.mxu0 %v2313
        %v2315 = vand.u32 %v399, 4294901760
        %2316 = vmatpush.msra.mxu0 %v2315
        %v2317 = vand.u32 %v390, 4294901760
        %2318 = vmatpush.msra.mxu0 %v2317
        %v2319 = vand.u32 %v381, 4294901760
        %2320 = vmatpush.msra.mxu0 %v2319
        %v2321 = vand.u32 %v372, 4294901760
        %2322 = vmatpush.msra.mxu0 %v2321
        %v2323 = vand.u32 %v363, 4294901760
        %2324 = vmatpush.msra.mxu0 %v2323
        %v2325 = vand.u32 %v354, 4294901760
        %2326 = vmatpush.msra.mxu0 %v2325
        %v2327 = vand.u32 %v345, 4294901760
        %2328 = vmatpush.msra.mxu0 %v2327
        %v2329 = vand.u32 %v336, 4294901760
        %2330 = vmatpush.msra.mxu0 %v2329
        %v2331 = vand.u32 %v327, 4294901760
        %2332 = vmatpush.msra.mxu0 %v2331
        %v2333 = vand.u32 %v318, 4294901760
        %2334 = vmatpush.msra.mxu0 %v2333
        %v2335 = vand.u32 %v309, 4294901760
        %2336 = vmatpush.msra.mxu0 %v2335
        %v2337 = vand.u32 %v300, 4294901760
        %2338 = vmatpush.msra.mxu0 %v2337
        %v2339 = vand.u32 %v291, 4294901760
        %2340 = vmatpush.msra.mxu0 %v2339
        %v2341 = vand.u32 %v282, 4294901760
        %2342 = vmatpush.msra.mxu0 %v2341
        %v2343 = vand.u32 %v273, 4294901760
        %2344 = vmatpush.msra.mxu0 %v2343
        %v2345 = vand.u32 %v266, 4294901760
        %v2346 = vsub.f32 %v266, %v2345
        %v2347 = vand.u32 %v2346, 4294901760
        %2348 = vmatmul.f32.gmra.mxu0 %v2347
        %v2349 = vpop.f32.mrf.mxu0
        %v2350 = vadd.f32 %v2311, %v2349
        %2351 = vdwg.mxu0
        %v2352 = vand.u32 %v408, 4294901760
        %v2353 = vsub.f32 %v408, %v2352
        %v2354 = vand.u32 %v2353, 4294901760
        %2355 = vmatpush.msra.mxu0 %v2354
        %v2356 = vand.u32 %v399, 4294901760
        %v2357 = vsub.f32 %v399, %v2356
        %v2358 = vand.u32 %v2357, 4294901760
        %2359 = vmatpush.msra.mxu0 %v2358
        %v2360 = vand.u32 %v390, 4294901760
        %v2361 = vsub.f32 %v390, %v2360
        %v2362 = vand.u32 %v2361, 4294901760
        %2363 = vmatpush.msra.mxu0 %v2362
        %v2364 = vand.u32 %v381, 4294901760
        %v2365 = vsub.f32 %v381, %v2364
        %v2366 = vand.u32 %v2365, 4294901760
        %2367 = vmatpush.msra.mxu0 %v2366
        %v2368 = vand.u32 %v372, 4294901760
        %v2369 = vsub.f32 %v372, %v2368
        %v2370 = vand.u32 %v2369, 4294901760
        %2371 = vmatpush.msra.mxu0 %v2370
        %v2372 = vand.u32 %v363, 4294901760
        %v2373 = vsub.f32 %v363, %v2372
        %v2374 = vand.u32 %v2373, 4294901760
        %2375 = vmatpush.msra.mxu0 %v2374
        %v2376 = vand.u32 %v354, 4294901760
        %v2377 = vsub.f32 %v354, %v2376
        %v2378 = vand.u32 %v2377, 4294901760
        %2379 = vmatpush.msra.mxu0 %v2378
        %v2380 = vand.u32 %v345, 4294901760
        %v2381 = vsub.f32 %v345, %v2380
        %v2382 = vand.u32 %v2381, 4294901760
        %2383 = vmatpush.msra.mxu0 %v2382
        %v2384 = vand.u32 %v336, 4294901760
        %v2385 = vsub.f32 %v336, %v2384
        %v2386 = vand.u32 %v2385, 4294901760
        %2387 = vmatpush.msra.mxu0 %v2386
        %v2388 = vand.u32 %v327, 4294901760
        %v2389 = vsub.f32 %v327, %v2388
        %v2390 = vand.u32 %v2389, 4294901760
        %2391 = vmatpush.msra.mxu0 %v2390
        %v2392 = vand.u32 %v318, 4294901760
        %v2393 = vsub.f32 %v318, %v2392
        %v2394 = vand.u32 %v2393, 4294901760
        %2395 = vmatpush.msra.mxu0 %v2394
        %v2396 = vand.u32 %v309, 4294901760
        %v2397 = vsub.f32 %v309, %v2396
        %v2398 = vand.u32 %v2397, 4294901760
        %2399 = vmatpush.msra.mxu0 %v2398
        %v2400 = vand.u32 %v300, 4294901760
        %v2401 = vsub.f32 %v300, %v2400
        %v2402 = vand.u32 %v2401, 4294901760
        %2403 = vmatpush.msra.mxu0 %v2402
        %v2404 = vand.u32 %v291, 4294901760
        %v2405 = vsub.f32 %v291, %v2404
        %v2406 = vand.u32 %v2405, 4294901760
        %2407 = vmatpush.msra.mxu0 %v2406
        %v2408 = vand.u32 %v282, 4294901760
        %v2409 = vsub.f32 %v282, %v2408
        %v2410 = vand.u32 %v2409, 4294901760
        %2411 = vmatpush.msra.mxu0 %v2410
        %v2412 = vand.u32 %v273, 4294901760
        %v2413 = vsub.f32 %v273, %v2412
        %v2414 = vand.u32 %v2413, 4294901760
        %2415 = vmatpush.msra.mxu0 %v2414
        %v2416 = vand.u32 %v266, 4294901760
        %2417 = vmatmul.f32.gmra.mxu0 %v2416
        %v2418 = vpop.f32.mrf.mxu0
        %v2419 = vadd.f32 %v2350, %v2418
        %2420 = vdwg.mxu0
        %v2421 = vand.u32 %v408, 4294901760
        %2422 = vmatpush.msra.mxu0 %v2421
        %v2423 = vand.u32 %v399, 4294901760
        %2424 = vmatpush.msra.mxu0 %v2423
        %v2425 = vand.u32 %v390, 4294901760
        %2426 = vmatpush.msra.mxu0 %v2425
        %v2427 = vand.u32 %v381, 4294901760
        %2428 = vmatpush.msra.mxu0 %v2427
        %v2429 = vand.u32 %v372, 4294901760
        %2430 = vmatpush.msra.mxu0 %v2429
        %v2431 = vand.u32 %v363, 4294901760
        %2432 = vmatpush.msra.mxu0 %v2431
        %v2433 = vand.u32 %v354, 4294901760
        %2434 = vmatpush.msra.mxu0 %v2433
        %v2435 = vand.u32 %v345, 4294901760
        %2436 = vmatpush.msra.mxu0 %v2435
        %v2437 = vand.u32 %v336, 4294901760
        %2438 = vmatpush.msra.mxu0 %v2437
        %v2439 = vand.u32 %v327, 4294901760
        %2440 = vmatpush.msra.mxu0 %v2439
        %v2441 = vand.u32 %v318, 4294901760
        %2442 = vmatpush.msra.mxu0 %v2441
        %v2443 = vand.u32 %v309, 4294901760
        %2444 = vmatpush.msra.mxu0 %v2443
        %v2445 = vand.u32 %v300, 4294901760
        %2446 = vmatpush.msra.mxu0 %v2445
        %v2447 = vand.u32 %v291, 4294901760
        %2448 = vmatpush.msra.mxu0 %v2447
        %v2449 = vand.u32 %v282, 4294901760
        %2450 = vmatpush.msra.mxu0 %v2449
        %v2451 = vand.u32 %v273, 4294901760
        %2452 = vmatpush.msra.mxu0 %v2451
        %v2453 = vand.u32 %v266, 4294901760
        %2454 = vmatmul.f32.gmra.mxu0 %v2453
        %v2455 = vpop.f32.mrf.mxu0
        %v2456 = vadd.f32 %v2419, %v2455
        %2457 = vdwg.mxu0
        %v2458 = vand.u32 %v409, 4294901760
        %2459 = vmatpush.msra.mxu0 %v2458
        %v2460 = vand.u32 %v400, 4294901760
        %2461 = vmatpush.msra.mxu0 %v2460
        %v2462 = vand.u32 %v391, 4294901760
        %2463 = vmatpush.msra.mxu0 %v2462
        %v2464 = vand.u32 %v382, 4294901760
        %2465 = vmatpush.msra.mxu0 %v2464
        %v2466 = vand.u32 %v373, 4294901760
        %2467 = vmatpush.msra.mxu0 %v2466
        %v2468 = vand.u32 %v364, 4294901760
        %2469 = vmatpush.msra.mxu0 %v2468
        %v2470 = vand.u32 %v355, 4294901760
        %2471 = vmatpush.msra.mxu0 %v2470
        %v2472 = vand.u32 %v346, 4294901760
        %2473 = vmatpush.msra.mxu0 %v2472
        %v2474 = vand.u32 %v337, 4294901760
        %2475 = vmatpush.msra.mxu0 %v2474
        %v2476 = vand.u32 %v328, 4294901760
        %2477 = vmatpush.msra.mxu0 %v2476
        %v2478 = vand.u32 %v319, 4294901760
        %2479 = vmatpush.msra.mxu0 %v2478
        %v2480 = vand.u32 %v310, 4294901760
        %2481 = vmatpush.msra.mxu0 %v2480
        %v2482 = vand.u32 %v301, 4294901760
        %2483 = vmatpush.msra.mxu0 %v2482
        %v2484 = vand.u32 %v292, 4294901760
        %2485 = vmatpush.msra.mxu0 %v2484
        %v2486 = vand.u32 %v283, 4294901760
        %2487 = vmatpush.msra.mxu0 %v2486
        %v2488 = vand.u32 %v274, 4294901760
        %2489 = vmatpush.msra.mxu0 %v2488
        %v2490 = vand.u32 %v266, 4294901760
        %v2491 = vsub.f32 %v266, %v2490
        %v2492 = vand.u32 %v2491, 4294901760
        %v2493 = vsub.f32 %v2491, %v2492
        %v2494 = vand.u32 %v2493, 4294901760
        %2495 = vmatmul.f32.gmra.mxu0 %v2494
        %v2496 = vpop.f32.mrf.mxu0
        %v2497 = vadd.f32 0.0, %v2496
        %2498 = vdwg.mxu0
        %v2499 = vand.u32 %v409, 4294901760
        %v2500 = vsub.f32 %v409, %v2499
        %v2501 = vand.u32 %v2500, 4294901760
        %v2502 = vsub.f32 %v2500, %v2501
        %v2503 = vand.u32 %v2502, 4294901760
        %2504 = vmatpush.msra.mxu0 %v2503
        %v2505 = vand.u32 %v400, 4294901760
        %v2506 = vsub.f32 %v400, %v2505
        %v2507 = vand.u32 %v2506, 4294901760
        %v2508 = vsub.f32 %v2506, %v2507
        %v2509 = vand.u32 %v2508, 4294901760
        %2510 = vmatpush.msra.mxu0 %v2509
        %v2511 = vand.u32 %v391, 4294901760
        %v2512 = vsub.f32 %v391, %v2511
        %v2513 = vand.u32 %v2512, 4294901760
        %v2514 = vsub.f32 %v2512, %v2513
        %v2515 = vand.u32 %v2514, 4294901760
        %2516 = vmatpush.msra.mxu0 %v2515
        %v2517 = vand.u32 %v382, 4294901760
        %v2518 = vsub.f32 %v382, %v2517
        %v2519 = vand.u32 %v2518, 4294901760
        %v2520 = vsub.f32 %v2518, %v2519
        %v2521 = vand.u32 %v2520, 4294901760
        %2522 = vmatpush.msra.mxu0 %v2521
        %v2523 = vand.u32 %v373, 4294901760
        %v2524 = vsub.f32 %v373, %v2523
        %v2525 = vand.u32 %v2524, 4294901760
        %v2526 = vsub.f32 %v2524, %v2525
        %v2527 = vand.u32 %v2526, 4294901760
        %2528 = vmatpush.msra.mxu0 %v2527
        %v2529 = vand.u32 %v364, 4294901760
        %v2530 = vsub.f32 %v364, %v2529
        %v2531 = vand.u32 %v2530, 4294901760
        %v2532 = vsub.f32 %v2530, %v2531
        %v2533 = vand.u32 %v2532, 4294901760
        %2534 = vmatpush.msra.mxu0 %v2533
        %v2535 = vand.u32 %v355, 4294901760
        %v2536 = vsub.f32 %v355, %v2535
        %v2537 = vand.u32 %v2536, 4294901760
        %v2538 = vsub.f32 %v2536, %v2537
        %v2539 = vand.u32 %v2538, 4294901760
        %2540 = vmatpush.msra.mxu0 %v2539
        %v2541 = vand.u32 %v346, 4294901760
        %v2542 = vsub.f32 %v346, %v2541
        %v2543 = vand.u32 %v2542, 4294901760
        %v2544 = vsub.f32 %v2542, %v2543
        %v2545 = vand.u32 %v2544, 4294901760
        %2546 = vmatpush.msra.mxu0 %v2545
        %v2547 = vand.u32 %v337, 4294901760
        %v2548 = vsub.f32 %v337, %v2547
        %v2549 = vand.u32 %v2548, 4294901760
        %v2550 = vsub.f32 %v2548, %v2549
        %v2551 = vand.u32 %v2550, 4294901760
        %2552 = vmatpush.msra.mxu0 %v2551
        %v2553 = vand.u32 %v328, 4294901760
        %v2554 = vsub.f32 %v328, %v2553
        %v2555 = vand.u32 %v2554, 4294901760
        %v2556 = vsub.f32 %v2554, %v2555
        %v2557 = vand.u32 %v2556, 4294901760
        %2558 = vmatpush.msra.mxu0 %v2557
        %v2559 = vand.u32 %v319, 4294901760
        %v2560 = vsub.f32 %v319, %v2559
        %v2561 = vand.u32 %v2560, 4294901760
        %v2562 = vsub.f32 %v2560, %v2561
        %v2563 = vand.u32 %v2562, 4294901760
        %2564 = vmatpush.msra.mxu0 %v2563
        %v2565 = vand.u32 %v310, 4294901760
        %v2566 = vsub.f32 %v310, %v2565
        %v2567 = vand.u32 %v2566, 4294901760
        %v2568 = vsub.f32 %v2566, %v2567
        %v2569 = vand.u32 %v2568, 4294901760
        %2570 = vmatpush.msra.mxu0 %v2569
        %v2571 = vand.u32 %v301, 4294901760
        %v2572 = vsub.f32 %v301, %v2571
        %v2573 = vand.u32 %v2572, 4294901760
        %v2574 = vsub.f32 %v2572, %v2573
        %v2575 = vand.u32 %v2574, 4294901760
        %2576 = vmatpush.msra.mxu0 %v2575
        %v2577 = vand.u32 %v292, 4294901760
        %v2578 = vsub.f32 %v292, %v2577
        %v2579 = vand.u32 %v2578, 4294901760
        %v2580 = vsub.f32 %v2578, %v2579
        %v2581 = vand.u32 %v2580, 4294901760
        %2582 = vmatpush.msra.mxu0 %v2581
        %v2583 = vand.u32 %v283, 4294901760
        %v2584 = vsub.f32 %v283, %v2583
        %v2585 = vand.u32 %v2584, 4294901760
        %v2586 = vsub.f32 %v2584, %v2585
        %v2587 = vand.u32 %v2586, 4294901760
        %2588 = vmatpush.msra.mxu0 %v2587
        %v2589 = vand.u32 %v274, 4294901760
        %v2590 = vsub.f32 %v274, %v2589
        %v2591 = vand.u32 %v2590, 4294901760
        %v2592 = vsub.f32 %v2590, %v2591
        %v2593 = vand.u32 %v2592, 4294901760
        %2594 = vmatpush.msra.mxu0 %v2593
        %v2595 = vand.u32 %v266, 4294901760
        %2596 = vmatmul.f32.gmra.mxu0 %v2595
        %v2597 = vpop.f32.mrf.mxu0
        %v2598 = vadd.f32 %v2497, %v2597
        %2599 = vdwg.mxu0
        %v2600 = vand.u32 %v409, 4294901760
        %v2601 = vsub.f32 %v409, %v2600
        %2602 = vmatpush.msra.mxu0 %v2601
        %v2603 = vand.u32 %v400, 4294901760
        %v2604 = vsub.f32 %v400, %v2603
        %2605 = vmatpush.msra.mxu0 %v2604
        %v2606 = vand.u32 %v391, 4294901760
        %v2607 = vsub.f32 %v391, %v2606
        %2608 = vmatpush.msra.mxu0 %v2607
        %v2609 = vand.u32 %v382, 4294901760
        %v2610 = vsub.f32 %v382, %v2609
        %2611 = vmatpush.msra.mxu0 %v2610
        %v2612 = vand.u32 %v373, 4294901760
        %v2613 = vsub.f32 %v373, %v2612
        %2614 = vmatpush.msra.mxu0 %v2613
        %v2615 = vand.u32 %v364, 4294901760
        %v2616 = vsub.f32 %v364, %v2615
        %2617 = vmatpush.msra.mxu0 %v2616
        %v2618 = vand.u32 %v355, 4294901760
        %v2619 = vsub.f32 %v355, %v2618
        %2620 = vmatpush.msra.mxu0 %v2619
        %v2621 = vand.u32 %v346, 4294901760
        %v2622 = vsub.f32 %v346, %v2621
        %2623 = vmatpush.msra.mxu0 %v2622
        %v2624 = vand.u32 %v337, 4294901760
        %v2625 = vsub.f32 %v337, %v2624
        %2626 = vmatpush.msra.mxu0 %v2625
        %v2627 = vand.u32 %v328, 4294901760
        %v2628 = vsub.f32 %v328, %v2627
        %2629 = vmatpush.msra.mxu0 %v2628
        %v2630 = vand.u32 %v319, 4294901760
        %v2631 = vsub.f32 %v319, %v2630
        %2632 = vmatpush.msra.mxu0 %v2631
        %v2633 = vand.u32 %v310, 4294901760
        %v2634 = vsub.f32 %v310, %v2633
        %2635 = vmatpush.msra.mxu0 %v2634
        %v2636 = vand.u32 %v301, 4294901760
        %v2637 = vsub.f32 %v301, %v2636
        %2638 = vmatpush.msra.mxu0 %v2637
        %v2639 = vand.u32 %v292, 4294901760
        %v2640 = vsub.f32 %v292, %v2639
        %2641 = vmatpush.msra.mxu0 %v2640
        %v2642 = vand.u32 %v283, 4294901760
        %v2643 = vsub.f32 %v283, %v2642
        %2644 = vmatpush.msra.mxu0 %v2643
        %v2645 = vand.u32 %v274, 4294901760
        %v2646 = vsub.f32 %v274, %v2645
        %2647 = vmatpush.msra.mxu0 %v2646
        %v2648 = vand.u32 %v266, 4294901760
        %v2649 = vsub.f32 %v266, %v2648
        %2650 = vmatmul.f32.gmra.mxu0 %v2649
        %v2651 = vpop.f32.mrf.mxu0
        %v2652 = vadd.f32 %v2598, %v2651
        %2653 = vdwg.mxu0
        %v2654 = vand.u32 %v409, 4294901760
        %2655 = vmatpush.msra.mxu0 %v2654
        %v2656 = vand.u32 %v400, 4294901760
        %2657 = vmatpush.msra.mxu0 %v2656
        %v2658 = vand.u32 %v391, 4294901760
        %2659 = vmatpush.msra.mxu0 %v2658
        %v2660 = vand.u32 %v382, 4294901760
        %2661 = vmatpush.msra.mxu0 %v2660
        %v2662 = vand.u32 %v373, 4294901760
        %2663 = vmatpush.msra.mxu0 %v2662
        %v2664 = vand.u32 %v364, 4294901760
        %2665 = vmatpush.msra.mxu0 %v2664
        %v2666 = vand.u32 %v355, 4294901760
        %2667 = vmatpush.msra.mxu0 %v2666
        %v2668 = vand.u32 %v346, 4294901760
        %2669 = vmatpush.msra.mxu0 %v2668
        %v2670 = vand.u32 %v337, 4294901760
        %2671 = vmatpush.msra.mxu0 %v2670
        %v2672 = vand.u32 %v328, 4294901760
        %2673 = vmatpush.msra.mxu0 %v2672
        %v2674 = vand.u32 %v319, 4294901760
        %2675 = vmatpush.msra.mxu0 %v2674
        %v2676 = vand.u32 %v310, 4294901760
        %2677 = vmatpush.msra.mxu0 %v2676
        %v2678 = vand.u32 %v301, 4294901760
        %2679 = vmatpush.msra.mxu0 %v2678
        %v2680 = vand.u32 %v292, 4294901760
        %2681 = vmatpush.msra.mxu0 %v2680
        %v2682 = vand.u32 %v283, 4294901760
        %2683 = vmatpush.msra.mxu0 %v2682
        %v2684 = vand.u32 %v274, 4294901760
        %2685 = vmatpush.msra.mxu0 %v2684
        %v2686 = vand.u32 %v266, 4294901760
        %v2687 = vsub.f32 %v266, %v2686
        %v2688 = vand.u32 %v2687, 4294901760
        %2689 = vmatmul.f32.gmra.mxu0 %v2688
        %v2690 = vpop.f32.mrf.mxu0
        %v2691 = vadd.f32 %v2652, %v2690
        %2692 = vdwg.mxu0
        %v2693 = vand.u32 %v409, 4294901760
        %v2694 = vsub.f32 %v409, %v2693
        %v2695 = vand.u32 %v2694, 4294901760
        %2696 = vmatpush.msra.mxu0 %v2695
        %v2697 = vand.u32 %v400, 4294901760
        %v2698 = vsub.f32 %v400, %v2697
        %v2699 = vand.u32 %v2698, 4294901760
        %2700 = vmatpush.msra.mxu0 %v2699
        %v2701 = vand.u32 %v391, 4294901760
        %v2702 = vsub.f32 %v391, %v2701
        %v2703 = vand.u32 %v2702, 4294901760
        %2704 = vmatpush.msra.mxu0 %v2703
        %v2705 = vand.u32 %v382, 4294901760
        %v2706 = vsub.f32 %v382, %v2705
        %v2707 = vand.u32 %v2706, 4294901760
        %2708 = vmatpush.msra.mxu0 %v2707
        %v2709 = vand.u32 %v373, 4294901760
        %v2710 = vsub.f32 %v373, %v2709
        %v2711 = vand.u32 %v2710, 4294901760
        %2712 = vmatpush.msra.mxu0 %v2711
        %v2713 = vand.u32 %v364, 4294901760
        %v2714 = vsub.f32 %v364, %v2713
        %v2715 = vand.u32 %v2714, 4294901760
        %2716 = vmatpush.msra.mxu0 %v2715
        %v2717 = vand.u32 %v355, 4294901760
        %v2718 = vsub.f32 %v355, %v2717
        %v2719 = vand.u32 %v2718, 4294901760
        %2720 = vmatpush.msra.mxu0 %v2719
        %v2721 = vand.u32 %v346, 4294901760
        %v2722 = vsub.f32 %v346, %v2721
        %v2723 = vand.u32 %v2722, 4294901760
        %2724 = vmatpush.msra.mxu0 %v2723
        %v2725 = vand.u32 %v337, 4294901760
        %v2726 = vsub.f32 %v337, %v2725
        %v2727 = vand.u32 %v2726, 4294901760
        %2728 = vmatpush.msra.mxu0 %v2727
        %v2729 = vand.u32 %v328, 4294901760
        %v2730 = vsub.f32 %v328, %v2729
        %v2731 = vand.u32 %v2730, 4294901760
        %2732 = vmatpush.msra.mxu0 %v2731
        %v2733 = vand.u32 %v319, 4294901760
        %v2734 = vsub.f32 %v319, %v2733
        %v2735 = vand.u32 %v2734, 4294901760
        %2736 = vmatpush.msra.mxu0 %v2735
        %v2737 = vand.u32 %v310, 4294901760
        %v2738 = vsub.f32 %v310, %v2737
        %v2739 = vand.u32 %v2738, 4294901760
        %2740 = vmatpush.msra.mxu0 %v2739
        %v2741 = vand.u32 %v301, 4294901760
        %v2742 = vsub.f32 %v301, %v2741
        %v2743 = vand.u32 %v2742, 4294901760
        %2744 = vmatpush.msra.mxu0 %v2743
        %v2745 = vand.u32 %v292, 4294901760
        %v2746 = vsub.f32 %v292, %v2745
        %v2747 = vand.u32 %v2746, 4294901760
        %2748 = vmatpush.msra.mxu0 %v2747
        %v2749 = vand.u32 %v283, 4294901760
        %v2750 = vsub.f32 %v283, %v2749
        %v2751 = vand.u32 %v2750, 4294901760
        %2752 = vmatpush.msra.mxu0 %v2751
        %v2753 = vand.u32 %v274, 4294901760
        %v2754 = vsub.f32 %v274, %v2753
        %v2755 = vand.u32 %v2754, 4294901760
        %2756 = vmatpush.msra.mxu0 %v2755
        %v2757 = vand.u32 %v266, 4294901760
        %2758 = vmatmul.f32.gmra.mxu0 %v2757
        %v2759 = vpop.f32.mrf.mxu0
        %v2760 = vadd.f32 %v2691, %v2759
        %2761 = vdwg.mxu0
        %v2762 = vand.u32 %v409, 4294901760
        %2763 = vmatpush.msra.mxu0 %v2762
        %v2764 = vand.u32 %v400, 4294901760
        %2765 = vmatpush.msra.mxu0 %v2764
        %v2766 = vand.u32 %v391, 4294901760
        %2767 = vmatpush.msra.mxu0 %v2766
        %v2768 = vand.u32 %v382, 4294901760
        %2769 = vmatpush.msra.mxu0 %v2768
        %v2770 = vand.u32 %v373, 4294901760
        %2771 = vmatpush.msra.mxu0 %v2770
        %v2772 = vand.u32 %v364, 4294901760
        %2773 = vmatpush.msra.mxu0 %v2772
        %v2774 = vand.u32 %v355, 4294901760
        %2775 = vmatpush.msra.mxu0 %v2774
        %v2776 = vand.u32 %v346, 4294901760
        %2777 = vmatpush.msra.mxu0 %v2776
        %v2778 = vand.u32 %v337, 4294901760
        %2779 = vmatpush.msra.mxu0 %v2778
        %v2780 = vand.u32 %v328, 4294901760
        %2781 = vmatpush.msra.mxu0 %v2780
        %v2782 = vand.u32 %v319, 4294901760
        %2783 = vmatpush.msra.mxu0 %v2782
        %v2784 = vand.u32 %v310, 4294901760
        %2785 = vmatpush.msra.mxu0 %v2784
        %v2786 = vand.u32 %v301, 4294901760
        %2787 = vmatpush.msra.mxu0 %v2786
        %v2788 = vand.u32 %v292, 4294901760
        %2789 = vmatpush.msra.mxu0 %v2788
        %v2790 = vand.u32 %v283, 4294901760
        %2791 = vmatpush.msra.mxu0 %v2790
        %v2792 = vand.u32 %v274, 4294901760
        %2793 = vmatpush.msra.mxu0 %v2792
        %v2794 = vand.u32 %v266, 4294901760
        %2795 = vmatmul.f32.gmra.mxu0 %v2794
        %v2796 = vpop.f32.mrf.mxu0
        %v2797 = vadd.f32 %v2760, %v2796
        %2798 = vdwg.mxu0
        %v2799 = vand.u32 %v410, 4294901760
        %2800 = vmatpush.msra.mxu0 %v2799
        %v2801 = vand.u32 %v401, 4294901760
        %2802 = vmatpush.msra.mxu0 %v2801
        %v2803 = vand.u32 %v392, 4294901760
        %2804 = vmatpush.msra.mxu0 %v2803
        %v2805 = vand.u32 %v383, 4294901760
        %2806 = vmatpush.msra.mxu0 %v2805
        %v2807 = vand.u32 %v374, 4294901760
        %2808 = vmatpush.msra.mxu0 %v2807
        %v2809 = vand.u32 %v365, 4294901760
        %2810 = vmatpush.msra.mxu0 %v2809
        %v2811 = vand.u32 %v356, 4294901760
        %2812 = vmatpush.msra.mxu0 %v2811
        %v2813 = vand.u32 %v347, 4294901760
        %2814 = vmatpush.msra.mxu0 %v2813
        %v2815 = vand.u32 %v338, 4294901760
        %2816 = vmatpush.msra.mxu0 %v2815
        %v2817 = vand.u32 %v329, 4294901760
        %2818 = vmatpush.msra.mxu0 %v2817
        %v2819 = vand.u32 %v320, 4294901760
        %2820 = vmatpush.msra.mxu0 %v2819
        %v2821 = vand.u32 %v311, 4294901760
        %2822 = vmatpush.msra.mxu0 %v2821
        %v2823 = vand.u32 %v302, 4294901760
        %2824 = vmatpush.msra.mxu0 %v2823
        %v2825 = vand.u32 %v293, 4294901760
        %2826 = vmatpush.msra.mxu0 %v2825
        %v2827 = vand.u32 %v284, 4294901760
        %2828 = vmatpush.msra.mxu0 %v2827
        %v2829 = vand.u32 %v275, 4294901760
        %2830 = vmatpush.msra.mxu0 %v2829
        %v2831 = vand.u32 %v266, 4294901760
        %v2832 = vsub.f32 %v266, %v2831
        %v2833 = vand.u32 %v2832, 4294901760
        %v2834 = vsub.f32 %v2832, %v2833
        %v2835 = vand.u32 %v2834, 4294901760
        %2836 = vmatmul.f32.gmra.mxu0 %v2835
        %v2837 = vpop.f32.mrf.mxu0
        %v2838 = vadd.f32 0.0, %v2837
        %2839 = vdwg.mxu0
        %v2840 = vand.u32 %v410, 4294901760
        %v2841 = vsub.f32 %v410, %v2840
        %v2842 = vand.u32 %v2841, 4294901760
        %v2843 = vsub.f32 %v2841, %v2842
        %v2844 = vand.u32 %v2843, 4294901760
        %2845 = vmatpush.msra.mxu0 %v2844
        %v2846 = vand.u32 %v401, 4294901760
        %v2847 = vsub.f32 %v401, %v2846
        %v2848 = vand.u32 %v2847, 4294901760
        %v2849 = vsub.f32 %v2847, %v2848
        %v2850 = vand.u32 %v2849, 4294901760
        %2851 = vmatpush.msra.mxu0 %v2850
        %v2852 = vand.u32 %v392, 4294901760
        %v2853 = vsub.f32 %v392, %v2852
        %v2854 = vand.u32 %v2853, 4294901760
        %v2855 = vsub.f32 %v2853, %v2854
        %v2856 = vand.u32 %v2855, 4294901760
        %2857 = vmatpush.msra.mxu0 %v2856
        %v2858 = vand.u32 %v383, 4294901760
        %v2859 = vsub.f32 %v383, %v2858
        %v2860 = vand.u32 %v2859, 4294901760
        %v2861 = vsub.f32 %v2859, %v2860
        %v2862 = vand.u32 %v2861, 4294901760
        %2863 = vmatpush.msra.mxu0 %v2862
        %v2864 = vand.u32 %v374, 4294901760
        %v2865 = vsub.f32 %v374, %v2864
        %v2866 = vand.u32 %v2865, 4294901760
        %v2867 = vsub.f32 %v2865, %v2866
        %v2868 = vand.u32 %v2867, 4294901760
        %2869 = vmatpush.msra.mxu0 %v2868
        %v2870 = vand.u32 %v365, 4294901760
        %v2871 = vsub.f32 %v365, %v2870
        %v2872 = vand.u32 %v2871, 4294901760
        %v2873 = vsub.f32 %v2871, %v2872
        %v2874 = vand.u32 %v2873, 4294901760
        %2875 = vmatpush.msra.mxu0 %v2874
        %v2876 = vand.u32 %v356, 4294901760
        %v2877 = vsub.f32 %v356, %v2876
        %v2878 = vand.u32 %v2877, 4294901760
        %v2879 = vsub.f32 %v2877, %v2878
        %v2880 = vand.u32 %v2879, 4294901760
        %2881 = vmatpush.msra.mxu0 %v2880
        %v2882 = vand.u32 %v347, 4294901760
        %v2883 = vsub.f32 %v347, %v2882
        %v2884 = vand.u32 %v2883, 4294901760
        %v2885 = vsub.f32 %v2883, %v2884
        %v2886 = vand.u32 %v2885, 4294901760
        %2887 = vmatpush.msra.mxu0 %v2886
        %v2888 = vand.u32 %v338, 4294901760
        %v2889 = vsub.f32 %v338, %v2888
        %v2890 = vand.u32 %v2889, 4294901760
        %v2891 = vsub.f32 %v2889, %v2890
        %v2892 = vand.u32 %v2891, 4294901760
        %2893 = vmatpush.msra.mxu0 %v2892
        %v2894 = vand.u32 %v329, 4294901760
        %v2895 = vsub.f32 %v329, %v2894
        %v2896 = vand.u32 %v2895, 4294901760
        %v2897 = vsub.f32 %v2895, %v2896
        %v2898 = vand.u32 %v2897, 4294901760
        %2899 = vmatpush.msra.mxu0 %v2898
        %v2900 = vand.u32 %v320, 4294901760
        %v2901 = vsub.f32 %v320, %v2900
        %v2902 = vand.u32 %v2901, 4294901760
        %v2903 = vsub.f32 %v2901, %v2902
        %v2904 = vand.u32 %v2903, 4294901760
        %2905 = vmatpush.msra.mxu0 %v2904
        %v2906 = vand.u32 %v311, 4294901760
        %v2907 = vsub.f32 %v311, %v2906
        %v2908 = vand.u32 %v2907, 4294901760
        %v2909 = vsub.f32 %v2907, %v2908
        %v2910 = vand.u32 %v2909, 4294901760
        %2911 = vmatpush.msra.mxu0 %v2910
        %v2912 = vand.u32 %v302, 4294901760
        %v2913 = vsub.f32 %v302, %v2912
        %v2914 = vand.u32 %v2913, 4294901760
        %v2915 = vsub.f32 %v2913, %v2914
        %v2916 = vand.u32 %v2915, 4294901760
        %2917 = vmatpush.msra.mxu0 %v2916
        %v2918 = vand.u32 %v293, 4294901760
        %v2919 = vsub.f32 %v293, %v2918
        %v2920 = vand.u32 %v2919, 4294901760
        %v2921 = vsub.f32 %v2919, %v2920
        %v2922 = vand.u32 %v2921, 4294901760
        %2923 = vmatpush.msra.mxu0 %v2922
        %v2924 = vand.u32 %v284, 4294901760
        %v2925 = vsub.f32 %v284, %v2924
        %v2926 = vand.u32 %v2925, 4294901760
        %v2927 = vsub.f32 %v2925, %v2926
        %v2928 = vand.u32 %v2927, 4294901760
        %2929 = vmatpush.msra.mxu0 %v2928
        %v2930 = vand.u32 %v275, 4294901760
        %v2931 = vsub.f32 %v275, %v2930
        %v2932 = vand.u32 %v2931, 4294901760
        %v2933 = vsub.f32 %v2931, %v2932
        %v2934 = vand.u32 %v2933, 4294901760
        %2935 = vmatpush.msra.mxu0 %v2934
        %v2936 = vand.u32 %v266, 4294901760
        %2937 = vmatmul.f32.gmra.mxu0 %v2936
        %v2938 = vpop.f32.mrf.mxu0
        %v2939 = vadd.f32 %v2838, %v2938
        %2940 = vdwg.mxu0
        %v2941 = vand.u32 %v410, 4294901760
        %v2942 = vsub.f32 %v410, %v2941
        %2943 = vmatpush.msra.mxu0 %v2942
        %v2944 = vand.u32 %v401, 4294901760
        %v2945 = vsub.f32 %v401, %v2944
        %2946 = vmatpush.msra.mxu0 %v2945
        %v2947 = vand.u32 %v392, 4294901760
        %v2948 = vsub.f32 %v392, %v2947
        %2949 = vmatpush.msra.mxu0 %v2948
        %v2950 = vand.u32 %v383, 4294901760
        %v2951 = vsub.f32 %v383, %v2950
        %2952 = vmatpush.msra.mxu0 %v2951
        %v2953 = vand.u32 %v374, 4294901760
        %v2954 = vsub.f32 %v374, %v2953
        %2955 = vmatpush.msra.mxu0 %v2954
        %v2956 = vand.u32 %v365, 4294901760
        %v2957 = vsub.f32 %v365, %v2956
        %2958 = vmatpush.msra.mxu0 %v2957
        %v2959 = vand.u32 %v356, 4294901760
        %v2960 = vsub.f32 %v356, %v2959
        %2961 = vmatpush.msra.mxu0 %v2960
        %v2962 = vand.u32 %v347, 4294901760
        %v2963 = vsub.f32 %v347, %v2962
        %2964 = vmatpush.msra.mxu0 %v2963
        %v2965 = vand.u32 %v338, 4294901760
        %v2966 = vsub.f32 %v338, %v2965
        %2967 = vmatpush.msra.mxu0 %v2966
        %v2968 = vand.u32 %v329, 4294901760
        %v2969 = vsub.f32 %v329, %v2968
        %2970 = vmatpush.msra.mxu0 %v2969
        %v2971 = vand.u32 %v320, 4294901760
        %v2972 = vsub.f32 %v320, %v2971
        %2973 = vmatpush.msra.mxu0 %v2972
        %v2974 = vand.u32 %v311, 4294901760
        %v2975 = vsub.f32 %v311, %v2974
        %2976 = vmatpush.msra.mxu0 %v2975
        %v2977 = vand.u32 %v302, 4294901760
        %v2978 = vsub.f32 %v302, %v2977
        %2979 = vmatpush.msra.mxu0 %v2978
        %v2980 = vand.u32 %v293, 4294901760
        %v2981 = vsub.f32 %v293, %v2980
        %2982 = vmatpush.msra.mxu0 %v2981
        %v2983 = vand.u32 %v284, 4294901760
        %v2984 = vsub.f32 %v284, %v2983
        %2985 = vmatpush.msra.mxu0 %v2984
        %v2986 = vand.u32 %v275, 4294901760
        %v2987 = vsub.f32 %v275, %v2986
        %2988 = vmatpush.msra.mxu0 %v2987
        %v2989 = vand.u32 %v266, 4294901760
        %v2990 = vsub.f32 %v266, %v2989
        %2991 = vmatmul.f32.gmra.mxu0 %v2990
        %v2992 = vpop.f32.mrf.mxu0
        %v2993 = vadd.f32 %v2939, %v2992
        %2994 = vdwg.mxu0
        %v2995 = vand.u32 %v410, 4294901760
        %2996 = vmatpush.msra.mxu0 %v2995
        %v2997 = vand.u32 %v401, 4294901760
        %2998 = vmatpush.msra.mxu0 %v2997
        %v2999 = vand.u32 %v392, 4294901760
        %3000 = vmatpush.msra.mxu0 %v2999
        %v3001 = vand.u32 %v383, 4294901760
        %3002 = vmatpush.msra.mxu0 %v3001
        %v3003 = vand.u32 %v374, 4294901760
        %3004 = vmatpush.msra.mxu0 %v3003
        %v3005 = vand.u32 %v365, 4294901760
        %3006 = vmatpush.msra.mxu0 %v3005
        %v3007 = vand.u32 %v356, 4294901760
        %3008 = vmatpush.msra.mxu0 %v3007
        %v3009 = vand.u32 %v347, 4294901760
        %3010 = vmatpush.msra.mxu0 %v3009
        %v3011 = vand.u32 %v338, 4294901760
        %3012 = vmatpush.msra.mxu0 %v3011
        %v3013 = vand.u32 %v329, 4294901760
        %3014 = vmatpush.msra.mxu0 %v3013
        %v3015 = vand.u32 %v320, 4294901760
        %3016 = vmatpush.msra.mxu0 %v3015
        %v3017 = vand.u32 %v311, 4294901760
        %3018 = vmatpush.msra.mxu0 %v3017
        %v3019 = vand.u32 %v302, 4294901760
        %3020 = vmatpush.msra.mxu0 %v3019
        %v3021 = vand.u32 %v293, 4294901760
        %3022 = vmatpush.msra.mxu0 %v3021
        %v3023 = vand.u32 %v284, 4294901760
        %3024 = vmatpush.msra.mxu0 %v3023
        %v3025 = vand.u32 %v275, 4294901760
        %3026 = vmatpush.msra.mxu0 %v3025
        %v3027 = vand.u32 %v266, 4294901760
        %v3028 = vsub.f32 %v266, %v3027
        %v3029 = vand.u32 %v3028, 4294901760
        %3030 = vmatmul.f32.gmra.mxu0 %v3029
        %v3031 = vpop.f32.mrf.mxu0
        %v3032 = vadd.f32 %v2993, %v3031
        %3033 = vdwg.mxu0
        %v3034 = vand.u32 %v410, 4294901760
        %v3035 = vsub.f32 %v410, %v3034
        %v3036 = vand.u32 %v3035, 4294901760
        %3037 = vmatpush.msra.mxu0 %v3036
        %v3038 = vand.u32 %v401, 4294901760
        %v3039 = vsub.f32 %v401, %v3038
        %v3040 = vand.u32 %v3039, 4294901760
        %3041 = vmatpush.msra.mxu0 %v3040
        %v3042 = vand.u32 %v392, 4294901760
        %v3043 = vsub.f32 %v392, %v3042
        %v3044 = vand.u32 %v3043, 4294901760
        %3045 = vmatpush.msra.mxu0 %v3044
        %v3046 = vand.u32 %v383, 4294901760
        %v3047 = vsub.f32 %v383, %v3046
        %v3048 = vand.u32 %v3047, 4294901760
        %3049 = vmatpush.msra.mxu0 %v3048
        %v3050 = vand.u32 %v374, 4294901760
        %v3051 = vsub.f32 %v374, %v3050
        %v3052 = vand.u32 %v3051, 4294901760
        %3053 = vmatpush.msra.mxu0 %v3052
        %v3054 = vand.u32 %v365, 4294901760
        %v3055 = vsub.f32 %v365, %v3054
        %v3056 = vand.u32 %v3055, 4294901760
        %3057 = vmatpush.msra.mxu0 %v3056
        %v3058 = vand.u32 %v356, 4294901760
        %v3059 = vsub.f32 %v356, %v3058
        %v3060 = vand.u32 %v3059, 4294901760
        %3061 = vmatpush.msra.mxu0 %v3060
        %v3062 = vand.u32 %v347, 4294901760
        %v3063 = vsub.f32 %v347, %v3062
        %v3064 = vand.u32 %v3063, 4294901760
        %3065 = vmatpush.msra.mxu0 %v3064
        %v3066 = vand.u32 %v338, 4294901760
        %v3067 = vsub.f32 %v338, %v3066
        %v3068 = vand.u32 %v3067, 4294901760
        %3069 = vmatpush.msra.mxu0 %v3068
        %v3070 = vand.u32 %v329, 4294901760
        %v3071 = vsub.f32 %v329, %v3070
        %v3072 = vand.u32 %v3071, 4294901760
        %3073 = vmatpush.msra.mxu0 %v3072
        %v3074 = vand.u32 %v320, 4294901760
        %v3075 = vsub.f32 %v320, %v3074
        %v3076 = vand.u32 %v3075, 4294901760
        %3077 = vmatpush.msra.mxu0 %v3076
        %v3078 = vand.u32 %v311, 4294901760
        %v3079 = vsub.f32 %v311, %v3078
        %v3080 = vand.u32 %v3079, 4294901760
        %3081 = vmatpush.msra.mxu0 %v3080
        %v3082 = vand.u32 %v302, 4294901760
        %v3083 = vsub.f32 %v302, %v3082
        %v3084 = vand.u32 %v3083, 4294901760
        %3085 = vmatpush.msra.mxu0 %v3084
        %v3086 = vand.u32 %v293, 4294901760
        %v3087 = vsub.f32 %v293, %v3086
        %v3088 = vand.u32 %v3087, 4294901760
        %3089 = vmatpush.msra.mxu0 %v3088
        %v3090 = vand.u32 %v284, 4294901760
        %v3091 = vsub.f32 %v284, %v3090
        %v3092 = vand.u32 %v3091, 4294901760
        %3093 = vmatpush.msra.mxu0 %v3092
        %v3094 = vand.u32 %v275, 4294901760
        %v3095 = vsub.f32 %v275, %v3094
        %v3096 = vand.u32 %v3095, 4294901760
        %3097 = vmatpush.msra.mxu0 %v3096
        %v3098 = vand.u32 %v266, 4294901760
        %3099 = vmatmul.f32.gmra.mxu0 %v3098
        %v3100 = vpop.f32.mrf.mxu0
        %v3101 = vadd.f32 %v3032, %v3100
        %3102 = vdwg.mxu0
        %v3103 = vand.u32 %v410, 4294901760
        %3104 = vmatpush.msra.mxu0 %v3103
        %v3105 = vand.u32 %v401, 4294901760
        %3106 = vmatpush.msra.mxu0 %v3105
        %v3107 = vand.u32 %v392, 4294901760
        %3108 = vmatpush.msra.mxu0 %v3107
        %v3109 = vand.u32 %v383, 4294901760
        %3110 = vmatpush.msra.mxu0 %v3109
        %v3111 = vand.u32 %v374, 4294901760
        %3112 = vmatpush.msra.mxu0 %v3111
        %v3113 = vand.u32 %v365, 4294901760
        %3114 = vmatpush.msra.mxu0 %v3113
        %v3115 = vand.u32 %v356, 4294901760
        %3116 = vmatpush.msra.mxu0 %v3115
        %v3117 = vand.u32 %v347, 4294901760
        %3118 = vmatpush.msra.mxu0 %v3117
        %v3119 = vand.u32 %v338, 4294901760
        %3120 = vmatpush.msra.mxu0 %v3119
        %v3121 = vand.u32 %v329, 4294901760
        %3122 = vmatpush.msra.mxu0 %v3121
        %v3123 = vand.u32 %v320, 4294901760
        %3124 = vmatpush.msra.mxu0 %v3123
        %v3125 = vand.u32 %v311, 4294901760
        %3126 = vmatpush.msra.mxu0 %v3125
        %v3127 = vand.u32 %v302, 4294901760
        %3128 = vmatpush.msra.mxu0 %v3127
        %v3129 = vand.u32 %v293, 4294901760
        %3130 = vmatpush.msra.mxu0 %v3129
        %v3131 = vand.u32 %v284, 4294901760
        %3132 = vmatpush.msra.mxu0 %v3131
        %v3133 = vand.u32 %v275, 4294901760
        %3134 = vmatpush.msra.mxu0 %v3133
        %v3135 = vand.u32 %v266, 4294901760
        %3136 = vmatmul.f32.gmra.mxu0 %v3135
        %v3137 = vpop.f32.mrf.mxu0
        %v3138 = vadd.f32 %v3101, %v3137
        %3139 = vdwg.mxu0
        %v3140 = vand.u32 %v411, 4294901760
        %3141 = vmatpush.msra.mxu0 %v3140
        %v3142 = vand.u32 %v402, 4294901760
        %3143 = vmatpush.msra.mxu0 %v3142
        %v3144 = vand.u32 %v393, 4294901760
        %3145 = vmatpush.msra.mxu0 %v3144
        %v3146 = vand.u32 %v384, 4294901760
        %3147 = vmatpush.msra.mxu0 %v3146
        %v3148 = vand.u32 %v375, 4294901760
        %3149 = vmatpush.msra.mxu0 %v3148
        %v3150 = vand.u32 %v366, 4294901760
        %3151 = vmatpush.msra.mxu0 %v3150
        %v3152 = vand.u32 %v357, 4294901760
        %3153 = vmatpush.msra.mxu0 %v3152
        %v3154 = vand.u32 %v348, 4294901760
        %3155 = vmatpush.msra.mxu0 %v3154
        %v3156 = vand.u32 %v339, 4294901760
        %3157 = vmatpush.msra.mxu0 %v3156
        %v3158 = vand.u32 %v330, 4294901760
        %3159 = vmatpush.msra.mxu0 %v3158
        %v3160 = vand.u32 %v321, 4294901760
        %3161 = vmatpush.msra.mxu0 %v3160
        %v3162 = vand.u32 %v312, 4294901760
        %3163 = vmatpush.msra.mxu0 %v3162
        %v3164 = vand.u32 %v303, 4294901760
        %3165 = vmatpush.msra.mxu0 %v3164
        %v3166 = vand.u32 %v294, 4294901760
        %3167 = vmatpush.msra.mxu0 %v3166
        %v3168 = vand.u32 %v285, 4294901760
        %3169 = vmatpush.msra.mxu0 %v3168
        %v3170 = vand.u32 %v276, 4294901760
        %3171 = vmatpush.msra.mxu0 %v3170
        %v3172 = vand.u32 %v266, 4294901760
        %v3173 = vsub.f32 %v266, %v3172
        %v3174 = vand.u32 %v3173, 4294901760
        %v3175 = vsub.f32 %v3173, %v3174
        %v3176 = vand.u32 %v3175, 4294901760
        %3177 = vmatmul.f32.gmra.mxu0 %v3176
        %v3178 = vpop.f32.mrf.mxu0
        %v3179 = vadd.f32 0.0, %v3178
        %3180 = vdwg.mxu0
        %v3181 = vand.u32 %v411, 4294901760
        %v3182 = vsub.f32 %v411, %v3181
        %v3183 = vand.u32 %v3182, 4294901760
        %v3184 = vsub.f32 %v3182, %v3183
        %v3185 = vand.u32 %v3184, 4294901760
        %3186 = vmatpush.msra.mxu0 %v3185
        %v3187 = vand.u32 %v402, 4294901760
        %v3188 = vsub.f32 %v402, %v3187
        %v3189 = vand.u32 %v3188, 4294901760
        %v3190 = vsub.f32 %v3188, %v3189
        %v3191 = vand.u32 %v3190, 4294901760
        %3192 = vmatpush.msra.mxu0 %v3191
        %v3193 = vand.u32 %v393, 4294901760
        %v3194 = vsub.f32 %v393, %v3193
        %v3195 = vand.u32 %v3194, 4294901760
        %v3196 = vsub.f32 %v3194, %v3195
        %v3197 = vand.u32 %v3196, 4294901760
        %3198 = vmatpush.msra.mxu0 %v3197
        %v3199 = vand.u32 %v384, 4294901760
        %v3200 = vsub.f32 %v384, %v3199
        %v3201 = vand.u32 %v3200, 4294901760
        %v3202 = vsub.f32 %v3200, %v3201
        %v3203 = vand.u32 %v3202, 4294901760
        %3204 = vmatpush.msra.mxu0 %v3203
        %v3205 = vand.u32 %v375, 4294901760
        %v3206 = vsub.f32 %v375, %v3205
        %v3207 = vand.u32 %v3206, 4294901760
        %v3208 = vsub.f32 %v3206, %v3207
        %v3209 = vand.u32 %v3208, 4294901760
        %3210 = vmatpush.msra.mxu0 %v3209
        %v3211 = vand.u32 %v366, 4294901760
        %v3212 = vsub.f32 %v366, %v3211
        %v3213 = vand.u32 %v3212, 4294901760
        %v3214 = vsub.f32 %v3212, %v3213
        %v3215 = vand.u32 %v3214, 4294901760
        %3216 = vmatpush.msra.mxu0 %v3215
        %v3217 = vand.u32 %v357, 4294901760
        %v3218 = vsub.f32 %v357, %v3217
        %v3219 = vand.u32 %v3218, 4294901760
        %v3220 = vsub.f32 %v3218, %v3219
        %v3221 = vand.u32 %v3220, 4294901760
        %3222 = vmatpush.msra.mxu0 %v3221
        %v3223 = vand.u32 %v348, 4294901760
        %v3224 = vsub.f32 %v348, %v3223
        %v3225 = vand.u32 %v3224, 4294901760
        %v3226 = vsub.f32 %v3224, %v3225
        %v3227 = vand.u32 %v3226, 4294901760
        %3228 = vmatpush.msra.mxu0 %v3227
        %v3229 = vand.u32 %v339, 4294901760
        %v3230 = vsub.f32 %v339, %v3229
        %v3231 = vand.u32 %v3230, 4294901760
        %v3232 = vsub.f32 %v3230, %v3231
        %v3233 = vand.u32 %v3232, 4294901760
        %3234 = vmatpush.msra.mxu0 %v3233
        %v3235 = vand.u32 %v330, 4294901760
        %v3236 = vsub.f32 %v330, %v3235
        %v3237 = vand.u32 %v3236, 4294901760
        %v3238 = vsub.f32 %v3236, %v3237
        %v3239 = vand.u32 %v3238, 4294901760
        %3240 = vmatpush.msra.mxu0 %v3239
        %v3241 = vand.u32 %v321, 4294901760
        %v3242 = vsub.f32 %v321, %v3241
        %v3243 = vand.u32 %v3242, 4294901760
        %v3244 = vsub.f32 %v3242, %v3243
        %v3245 = vand.u32 %v3244, 4294901760
        %3246 = vmatpush.msra.mxu0 %v3245
        %v3247 = vand.u32 %v312, 4294901760
        %v3248 = vsub.f32 %v312, %v3247
        %v3249 = vand.u32 %v3248, 4294901760
        %v3250 = vsub.f32 %v3248, %v3249
        %v3251 = vand.u32 %v3250, 4294901760
        %3252 = vmatpush.msra.mxu0 %v3251
        %v3253 = vand.u32 %v303, 4294901760
        %v3254 = vsub.f32 %v303, %v3253
        %v3255 = vand.u32 %v3254, 4294901760
        %v3256 = vsub.f32 %v3254, %v3255
        %v3257 = vand.u32 %v3256, 4294901760
        %3258 = vmatpush.msra.mxu0 %v3257
        %v3259 = vand.u32 %v294, 4294901760
        %v3260 = vsub.f32 %v294, %v3259
        %v3261 = vand.u32 %v3260, 4294901760
        %v3262 = vsub.f32 %v3260, %v3261
        %v3263 = vand.u32 %v3262, 4294901760
        %3264 = vmatpush.msra.mxu0 %v3263
        %v3265 = vand.u32 %v285, 4294901760
        %v3266 = vsub.f32 %v285, %v3265
        %v3267 = vand.u32 %v3266, 4294901760
        %v3268 = vsub.f32 %v3266, %v3267
        %v3269 = vand.u32 %v3268, 4294901760
        %3270 = vmatpush.msra.mxu0 %v3269
        %v3271 = vand.u32 %v276, 4294901760
        %v3272 = vsub.f32 %v276, %v3271
        %v3273 = vand.u32 %v3272, 4294901760
        %v3274 = vsub.f32 %v3272, %v3273
        %v3275 = vand.u32 %v3274, 4294901760
        %3276 = vmatpush.msra.mxu0 %v3275
        %v3277 = vand.u32 %v266, 4294901760
        %3278 = vmatmul.f32.gmra.mxu0 %v3277
        %v3279 = vpop.f32.mrf.mxu0
        %v3280 = vadd.f32 %v3179, %v3279
        %3281 = vdwg.mxu0
        %v3282 = vand.u32 %v411, 4294901760
        %v3283 = vsub.f32 %v411, %v3282
        %3284 = vmatpush.msra.mxu0 %v3283
        %v3285 = vand.u32 %v402, 4294901760
        %v3286 = vsub.f32 %v402, %v3285
        %3287 = vmatpush.msra.mxu0 %v3286
        %v3288 = vand.u32 %v393, 4294901760
        %v3289 = vsub.f32 %v393, %v3288
        %3290 = vmatpush.msra.mxu0 %v3289
        %v3291 = vand.u32 %v384, 4294901760
        %v3292 = vsub.f32 %v384, %v3291
        %3293 = vmatpush.msra.mxu0 %v3292
        %v3294 = vand.u32 %v375, 4294901760
        %v3295 = vsub.f32 %v375, %v3294
        %3296 = vmatpush.msra.mxu0 %v3295
        %v3297 = vand.u32 %v366, 4294901760
        %v3298 = vsub.f32 %v366, %v3297
        %3299 = vmatpush.msra.mxu0 %v3298
        %v3300 = vand.u32 %v357, 4294901760
        %v3301 = vsub.f32 %v357, %v3300
        %3302 = vmatpush.msra.mxu0 %v3301
        %v3303 = vand.u32 %v348, 4294901760
        %v3304 = vsub.f32 %v348, %v3303
        %3305 = vmatpush.msra.mxu0 %v3304
        %v3306 = vand.u32 %v339, 4294901760
        %v3307 = vsub.f32 %v339, %v3306
        %3308 = vmatpush.msra.mxu0 %v3307
        %v3309 = vand.u32 %v330, 4294901760
        %v3310 = vsub.f32 %v330, %v3309
        %3311 = vmatpush.msra.mxu0 %v3310
        %v3312 = vand.u32 %v321, 4294901760
        %v3313 = vsub.f32 %v321, %v3312
        %3314 = vmatpush.msra.mxu0 %v3313
        %v3315 = vand.u32 %v312, 4294901760
        %v3316 = vsub.f32 %v312, %v3315
        %3317 = vmatpush.msra.mxu0 %v3316
        %v3318 = vand.u32 %v303, 4294901760
        %v3319 = vsub.f32 %v303, %v3318
        %3320 = vmatpush.msra.mxu0 %v3319
        %v3321 = vand.u32 %v294, 4294901760
        %v3322 = vsub.f32 %v294, %v3321
        %3323 = vmatpush.msra.mxu0 %v3322
        %v3324 = vand.u32 %v285, 4294901760
        %v3325 = vsub.f32 %v285, %v3324
        %3326 = vmatpush.msra.mxu0 %v3325
        %v3327 = vand.u32 %v276, 4294901760
        %v3328 = vsub.f32 %v276, %v3327
        %3329 = vmatpush.msra.mxu0 %v3328
        %v3330 = vand.u32 %v266, 4294901760
        %v3331 = vsub.f32 %v266, %v3330
        %3332 = vmatmul.f32.gmra.mxu0 %v3331
        %v3333 = vpop.f32.mrf.mxu0
        %v3334 = vadd.f32 %v3280, %v3333
        %3335 = vdwg.mxu0
        %v3336 = vand.u32 %v411, 4294901760
        %3337 = vmatpush.msra.mxu0 %v3336
        %v3338 = vand.u32 %v402, 4294901760
        %3339 = vmatpush.msra.mxu0 %v3338
        %v3340 = vand.u32 %v393, 4294901760
        %3341 = vmatpush.msra.mxu0 %v3340
        %v3342 = vand.u32 %v384, 4294901760
        %3343 = vmatpush.msra.mxu0 %v3342
        %v3344 = vand.u32 %v375, 4294901760
        %3345 = vmatpush.msra.mxu0 %v3344
        %v3346 = vand.u32 %v366, 4294901760
        %3347 = vmatpush.msra.mxu0 %v3346
        %v3348 = vand.u32 %v357, 4294901760
        %3349 = vmatpush.msra.mxu0 %v3348
        %v3350 = vand.u32 %v348, 4294901760
        %3351 = vmatpush.msra.mxu0 %v3350
        %v3352 = vand.u32 %v339, 4294901760
        %3353 = vmatpush.msra.mxu0 %v3352
        %v3354 = vand.u32 %v330, 4294901760
        %3355 = vmatpush.msra.mxu0 %v3354
        %v3356 = vand.u32 %v321, 4294901760
        %3357 = vmatpush.msra.mxu0 %v3356
        %v3358 = vand.u32 %v312, 4294901760
        %3359 = vmatpush.msra.mxu0 %v3358
        %v3360 = vand.u32 %v303, 4294901760
        %3361 = vmatpush.msra.mxu0 %v3360
        %v3362 = vand.u32 %v294, 4294901760
        %3363 = vmatpush.msra.mxu0 %v3362
        %v3364 = vand.u32 %v285, 4294901760
        %3365 = vmatpush.msra.mxu0 %v3364
        %v3366 = vand.u32 %v276, 4294901760
        %3367 = vmatpush.msra.mxu0 %v3366
        %v3368 = vand.u32 %v266, 4294901760
        %v3369 = vsub.f32 %v266, %v3368
        %v3370 = vand.u32 %v3369, 4294901760
        %3371 = vmatmul.f32.gmra.mxu0 %v3370
        %v3372 = vpop.f32.mrf.mxu0
        %v3373 = vadd.f32 %v3334, %v3372
        %3374 = vdwg.mxu0
        %v3375 = vand.u32 %v411, 4294901760
        %v3376 = vsub.f32 %v411, %v3375
        %v3377 = vand.u32 %v3376, 4294901760
        %3378 = vmatpush.msra.mxu0 %v3377
        %v3379 = vand.u32 %v402, 4294901760
        %v3380 = vsub.f32 %v402, %v3379
        %v3381 = vand.u32 %v3380, 4294901760
        %3382 = vmatpush.msra.mxu0 %v3381
        %v3383 = vand.u32 %v393, 4294901760
        %v3384 = vsub.f32 %v393, %v3383
        %v3385 = vand.u32 %v3384, 4294901760
        %3386 = vmatpush.msra.mxu0 %v3385
        %v3387 = vand.u32 %v384, 4294901760
        %v3388 = vsub.f32 %v384, %v3387
        %v3389 = vand.u32 %v3388, 4294901760
        %3390 = vmatpush.msra.mxu0 %v3389
        %v3391 = vand.u32 %v375, 4294901760
        %v3392 = vsub.f32 %v375, %v3391
        %v3393 = vand.u32 %v3392, 4294901760
        %3394 = vmatpush.msra.mxu0 %v3393
        %v3395 = vand.u32 %v366, 4294901760
        %v3396 = vsub.f32 %v366, %v3395
        %v3397 = vand.u32 %v3396, 4294901760
        %3398 = vmatpush.msra.mxu0 %v3397
        %v3399 = vand.u32 %v357, 4294901760
        %v3400 = vsub.f32 %v357, %v3399
        %v3401 = vand.u32 %v3400, 4294901760
        %3402 = vmatpush.msra.mxu0 %v3401
        %v3403 = vand.u32 %v348, 4294901760
        %v3404 = vsub.f32 %v348, %v3403
        %v3405 = vand.u32 %v3404, 4294901760
        %3406 = vmatpush.msra.mxu0 %v3405
        %v3407 = vand.u32 %v339, 4294901760
        %v3408 = vsub.f32 %v339, %v3407
        %v3409 = vand.u32 %v3408, 4294901760
        %3410 = vmatpush.msra.mxu0 %v3409
        %v3411 = vand.u32 %v330, 4294901760
        %v3412 = vsub.f32 %v330, %v3411
        %v3413 = vand.u32 %v3412, 4294901760
        %3414 = vmatpush.msra.mxu0 %v3413
        %v3415 = vand.u32 %v321, 4294901760
        %v3416 = vsub.f32 %v321, %v3415
        %v3417 = vand.u32 %v3416, 4294901760
        %3418 = vmatpush.msra.mxu0 %v3417
        %v3419 = vand.u32 %v312, 4294901760
        %v3420 = vsub.f32 %v312, %v3419
        %v3421 = vand.u32 %v3420, 4294901760
        %3422 = vmatpush.msra.mxu0 %v3421
        %v3423 = vand.u32 %v303, 4294901760
        %v3424 = vsub.f32 %v303, %v3423
        %v3425 = vand.u32 %v3424, 4294901760
        %3426 = vmatpush.msra.mxu0 %v3425
        %v3427 = vand.u32 %v294, 4294901760
        %v3428 = vsub.f32 %v294, %v3427
        %v3429 = vand.u32 %v3428, 4294901760
        %3430 = vmatpush.msra.mxu0 %v3429
        %v3431 = vand.u32 %v285, 4294901760
        %v3432 = vsub.f32 %v285, %v3431
        %v3433 = vand.u32 %v3432, 4294901760
        %3434 = vmatpush.msra.mxu0 %v3433
        %v3435 = vand.u32 %v276, 4294901760
        %v3436 = vsub.f32 %v276, %v3435
        %v3437 = vand.u32 %v3436, 4294901760
        %3438 = vmatpush.msra.mxu0 %v3437
        %v3439 = vand.u32 %v266, 4294901760
        %3440 = vmatmul.f32.gmra.mxu0 %v3439
        %v3441 = vpop.f32.mrf.mxu0
        %v3442 = vadd.f32 %v3373, %v3441
        %3443 = vdwg.mxu0
        %v3444 = vand.u32 %v411, 4294901760
        %3445 = vmatpush.msra.mxu0 %v3444
        %v3446 = vand.u32 %v402, 4294901760
        %3447 = vmatpush.msra.mxu0 %v3446
        %v3448 = vand.u32 %v393, 4294901760
        %3449 = vmatpush.msra.mxu0 %v3448
        %v3450 = vand.u32 %v384, 4294901760
        %3451 = vmatpush.msra.mxu0 %v3450
        %v3452 = vand.u32 %v375, 4294901760
        %3453 = vmatpush.msra.mxu0 %v3452
        %v3454 = vand.u32 %v366, 4294901760
        %3455 = vmatpush.msra.mxu0 %v3454
        %v3456 = vand.u32 %v357, 4294901760
        %3457 = vmatpush.msra.mxu0 %v3456
        %v3458 = vand.u32 %v348, 4294901760
        %3459 = vmatpush.msra.mxu0 %v3458
        %v3460 = vand.u32 %v339, 4294901760
        %3461 = vmatpush.msra.mxu0 %v3460
        %v3462 = vand.u32 %v330, 4294901760
        %3463 = vmatpush.msra.mxu0 %v3462
        %v3464 = vand.u32 %v321, 4294901760
        %3465 = vmatpush.msra.mxu0 %v3464
        %v3466 = vand.u32 %v312, 4294901760
        %3467 = vmatpush.msra.mxu0 %v3466
        %v3468 = vand.u32 %v303, 4294901760
        %3469 = vmatpush.msra.mxu0 %v3468
        %v3470 = vand.u32 %v294, 4294901760
        %3471 = vmatpush.msra.mxu0 %v3470
        %v3472 = vand.u32 %v285, 4294901760
        %3473 = vmatpush.msra.mxu0 %v3472
        %v3474 = vand.u32 %v276, 4294901760
        %3475 = vmatpush.msra.mxu0 %v3474
        %v3476 = vand.u32 %v266, 4294901760
        %3477 = vmatmul.f32.gmra.mxu0 %v3476
        %v3478 = vpop.f32.mrf.mxu0
        %v3479 = vadd.f32 %v3442, %v3478
        %3480 = vdwg.mxu0
        %v3481 = vld [vmem:[%s3] sm:$0xff]
        %v3482 = vld [vmem:[%s3 + $0x8] sm:$0xff]
        %v3483 = vld [vmem:[%s3 + $0x10] sm:$0xff]
        %v3484 = vld [vmem:[%s3 + $0x18] sm:$0xff]
        %v3485 = vld [vmem:[%s3 + $0x20] sm:$0xff]
        %v3486 = vld [vmem:[%s3 + $0x28] sm:$0xff]
        %v3487 = vld [vmem:[%s3 + $0x30] sm:$0xff]
        %v3488 = vld [vmem:[%s3 + $0x38] sm:$0xff]
        %v3489 = vld [vmem:[%s3 + $0x40] sm:$0xff]
        %v3490 = vld [vmem:[%s3 + $0x48] sm:$0xff]
        %v3491 = vld [vmem:[%s3 + $0x50] sm:$0xff]
        %v3492 = vld [vmem:[%s3 + $0x58] sm:$0xff]
        %v3493 = vld [vmem:[%s3 + $0x60] sm:$0xff]
        %v3494 = vld [vmem:[%s3 + $0x68] sm:$0xff]
        %v3495 = vld [vmem:[%s3 + $0x70] sm:$0xff]
        %v3496 = vld [vmem:[%s3 + $0x78] sm:$0xff]
        %v3497 = vand.u32 %v3496, 4294901760
        %3498 = vmatpush.msra.mxu0 %v3497
        %v3499 = vand.u32 %v3495, 4294901760
        %3500 = vmatpush.msra.mxu0 %v3499
        %v3501 = vand.u32 %v3494, 4294901760
        %3502 = vmatpush.msra.mxu0 %v3501
        %v3503 = vand.u32 %v3493, 4294901760
        %3504 = vmatpush.msra.mxu0 %v3503
        %v3505 = vand.u32 %v3492, 4294901760
        %3506 = vmatpush.msra.mxu0 %v3505
        %v3507 = vand.u32 %v3491, 4294901760
        %3508 = vmatpush.msra.mxu0 %v3507
        %v3509 = vand.u32 %v3490, 4294901760
        %3510 = vmatpush.msra.mxu0 %v3509
        %v3511 = vand.u32 %v3489, 4294901760
        %3512 = vmatpush.msra.mxu0 %v3511
        %v3513 = vand.u32 %v3488, 4294901760
        %3514 = vmatpush.msra.mxu0 %v3513
        %v3515 = vand.u32 %v3487, 4294901760
        %3516 = vmatpush.msra.mxu0 %v3515
        %v3517 = vand.u32 %v3486, 4294901760
        %3518 = vmatpush.msra.mxu0 %v3517
        %v3519 = vand.u32 %v3485, 4294901760
        %3520 = vmatpush.msra.mxu0 %v3519
        %v3521 = vand.u32 %v3484, 4294901760
        %3522 = vmatpush.msra.mxu0 %v3521
        %v3523 = vand.u32 %v3483, 4294901760
        %3524 = vmatpush.msra.mxu0 %v3523
        %v3525 = vand.u32 %v3482, 4294901760
        %3526 = vmatpush.msra.mxu0 %v3525
        %v3527 = vand.u32 %v3481, 4294901760
        %3528 = vmatpush.msra.mxu0 %v3527
        %v3529 = vand.u32 %v267, 4294901760
        %v3530 = vsub.f32 %v267, %v3529
        %v3531 = vand.u32 %v3530, 4294901760
        %v3532 = vsub.f32 %v3530, %v3531
        %v3533 = vand.u32 %v3532, 4294901760
        %3534 = vmatmul.f32.gmra.mxu0 %v3533
        %v3535 = vpop.f32.mrf.mxu0
        %v3536 = vadd.f32 0.0, %v3535
        %3537 = vdwg.mxu0
        %v3538 = vand.u32 %v3496, 4294901760
        %v3539 = vsub.f32 %v3496, %v3538
        %v3540 = vand.u32 %v3539, 4294901760
        %v3541 = vsub.f32 %v3539, %v3540
        %v3542 = vand.u32 %v3541, 4294901760
        %3543 = vmatpush.msra.mxu0 %v3542
        %v3544 = vand.u32 %v3495, 4294901760
        %v3545 = vsub.f32 %v3495, %v3544
        %v3546 = vand.u32 %v3545, 4294901760
        %v3547 = vsub.f32 %v3545, %v3546
        %v3548 = vand.u32 %v3547, 4294901760
        %3549 = vmatpush.msra.mxu0 %v3548
        %v3550 = vand.u32 %v3494, 4294901760
        %v3551 = vsub.f32 %v3494, %v3550
        %v3552 = vand.u32 %v3551, 4294901760
        %v3553 = vsub.f32 %v3551, %v3552
        %v3554 = vand.u32 %v3553, 4294901760
        %3555 = vmatpush.msra.mxu0 %v3554
        %v3556 = vand.u32 %v3493, 4294901760
        %v3557 = vsub.f32 %v3493, %v3556
        %v3558 = vand.u32 %v3557, 4294901760
        %v3559 = vsub.f32 %v3557, %v3558
        %v3560 = vand.u32 %v3559, 4294901760
        %3561 = vmatpush.msra.mxu0 %v3560
        %v3562 = vand.u32 %v3492, 4294901760
        %v3563 = vsub.f32 %v3492, %v3562
        %v3564 = vand.u32 %v3563, 4294901760
        %v3565 = vsub.f32 %v3563, %v3564
        %v3566 = vand.u32 %v3565, 4294901760
        %3567 = vmatpush.msra.mxu0 %v3566
        %v3568 = vand.u32 %v3491, 4294901760
        %v3569 = vsub.f32 %v3491, %v3568
        %v3570 = vand.u32 %v3569, 4294901760
        %v3571 = vsub.f32 %v3569, %v3570
        %v3572 = vand.u32 %v3571, 4294901760
        %3573 = vmatpush.msra.mxu0 %v3572
        %v3574 = vand.u32 %v3490, 4294901760
        %v3575 = vsub.f32 %v3490, %v3574
        %v3576 = vand.u32 %v3575, 4294901760
        %v3577 = vsub.f32 %v3575, %v3576
        %v3578 = vand.u32 %v3577, 4294901760
        %3579 = vmatpush.msra.mxu0 %v3578
        %v3580 = vand.u32 %v3489, 4294901760
        %v3581 = vsub.f32 %v3489, %v3580
        %v3582 = vand.u32 %v3581, 4294901760
        %v3583 = vsub.f32 %v3581, %v3582
        %v3584 = vand.u32 %v3583, 4294901760
        %3585 = vmatpush.msra.mxu0 %v3584
        %v3586 = vand.u32 %v3488, 4294901760
        %v3587 = vsub.f32 %v3488, %v3586
        %v3588 = vand.u32 %v3587, 4294901760
        %v3589 = vsub.f32 %v3587, %v3588
        %v3590 = vand.u32 %v3589, 4294901760
        %3591 = vmatpush.msra.mxu0 %v3590
        %v3592 = vand.u32 %v3487, 4294901760
        %v3593 = vsub.f32 %v3487, %v3592
        %v3594 = vand.u32 %v3593, 4294901760
        %v3595 = vsub.f32 %v3593, %v3594
        %v3596 = vand.u32 %v3595, 4294901760
        %3597 = vmatpush.msra.mxu0 %v3596
        %v3598 = vand.u32 %v3486, 4294901760
        %v3599 = vsub.f32 %v3486, %v3598
        %v3600 = vand.u32 %v3599, 4294901760
        %v3601 = vsub.f32 %v3599, %v3600
        %v3602 = vand.u32 %v3601, 4294901760
        %3603 = vmatpush.msra.mxu0 %v3602
        %v3604 = vand.u32 %v3485, 4294901760
        %v3605 = vsub.f32 %v3485, %v3604
        %v3606 = vand.u32 %v3605, 4294901760
        %v3607 = vsub.f32 %v3605, %v3606
        %v3608 = vand.u32 %v3607, 4294901760
        %3609 = vmatpush.msra.mxu0 %v3608
        %v3610 = vand.u32 %v3484, 4294901760
        %v3611 = vsub.f32 %v3484, %v3610
        %v3612 = vand.u32 %v3611, 4294901760
        %v3613 = vsub.f32 %v3611, %v3612
        %v3614 = vand.u32 %v3613, 4294901760
        %3615 = vmatpush.msra.mxu0 %v3614
        %v3616 = vand.u32 %v3483, 4294901760
        %v3617 = vsub.f32 %v3483, %v3616
        %v3618 = vand.u32 %v3617, 4294901760
        %v3619 = vsub.f32 %v3617, %v3618
        %v3620 = vand.u32 %v3619, 4294901760
        %3621 = vmatpush.msra.mxu0 %v3620
        %v3622 = vand.u32 %v3482, 4294901760
        %v3623 = vsub.f32 %v3482, %v3622
        %v3624 = vand.u32 %v3623, 4294901760
        %v3625 = vsub.f32 %v3623, %v3624
        %v3626 = vand.u32 %v3625, 4294901760
        %3627 = vmatpush.msra.mxu0 %v3626
        %v3628 = vand.u32 %v3481, 4294901760
        %v3629 = vsub.f32 %v3481, %v3628
        %v3630 = vand.u32 %v3629, 4294901760
        %v3631 = vsub.f32 %v3629, %v3630
        %v3632 = vand.u32 %v3631, 4294901760
        %3633 = vmatpush.msra.mxu0 %v3632
        %v3634 = vand.u32 %v267, 4294901760
        %3635 = vmatmul.f32.gmra.mxu0 %v3634
        %v3636 = vpop.f32.mrf.mxu0
        %v3637 = vadd.f32 %v3536, %v3636
        %3638 = vdwg.mxu0
        %v3639 = vand.u32 %v3496, 4294901760
        %v3640 = vsub.f32 %v3496, %v3639
        %3641 = vmatpush.msra.mxu0 %v3640
        %v3642 = vand.u32 %v3495, 4294901760
        %v3643 = vsub.f32 %v3495, %v3642
        %3644 = vmatpush.msra.mxu0 %v3643
        %v3645 = vand.u32 %v3494, 4294901760
        %v3646 = vsub.f32 %v3494, %v3645
        %3647 = vmatpush.msra.mxu0 %v3646
        %v3648 = vand.u32 %v3493, 4294901760
        %v3649 = vsub.f32 %v3493, %v3648
        %3650 = vmatpush.msra.mxu0 %v3649
        %v3651 = vand.u32 %v3492, 4294901760
        %v3652 = vsub.f32 %v3492, %v3651
        %3653 = vmatpush.msra.mxu0 %v3652
        %v3654 = vand.u32 %v3491, 4294901760
        %v3655 = vsub.f32 %v3491, %v3654
        %3656 = vmatpush.msra.mxu0 %v3655
        %v3657 = vand.u32 %v3490, 4294901760
        %v3658 = vsub.f32 %v3490, %v3657
        %3659 = vmatpush.msra.mxu0 %v3658
        %v3660 = vand.u32 %v3489, 4294901760
        %v3661 = vsub.f32 %v3489, %v3660
        %3662 = vmatpush.msra.mxu0 %v3661
        %v3663 = vand.u32 %v3488, 4294901760
        %v3664 = vsub.f32 %v3488, %v3663
        %3665 = vmatpush.msra.mxu0 %v3664
        %v3666 = vand.u32 %v3487, 4294901760
        %v3667 = vsub.f32 %v3487, %v3666
        %3668 = vmatpush.msra.mxu0 %v3667
        %v3669 = vand.u32 %v3486, 4294901760
        %v3670 = vsub.f32 %v3486, %v3669
        %3671 = vmatpush.msra.mxu0 %v3670
        %v3672 = vand.u32 %v3485, 4294901760
        %v3673 = vsub.f32 %v3485, %v3672
        %3674 = vmatpush.msra.mxu0 %v3673
        %v3675 = vand.u32 %v3484, 4294901760
        %v3676 = vsub.f32 %v3484, %v3675
        %3677 = vmatpush.msra.mxu0 %v3676
        %v3678 = vand.u32 %v3483, 4294901760
        %v3679 = vsub.f32 %v3483, %v3678
        %3680 = vmatpush.msra.mxu0 %v3679
        %v3681 = vand.u32 %v3482, 4294901760
        %v3682 = vsub.f32 %v3482, %v3681
        %3683 = vmatpush.msra.mxu0 %v3682
        %v3684 = vand.u32 %v3481, 4294901760
        %v3685 = vsub.f32 %v3481, %v3684
        %3686 = vmatpush.msra.mxu0 %v3685
        %v3687 = vand.u32 %v267, 4294901760
        %v3688 = vsub.f32 %v267, %v3687
        %3689 = vmatmul.f32.gmra.mxu0 %v3688
        %v3690 = vpop.f32.mrf.mxu0
        %v3691 = vadd.f32 %v3637, %v3690
        %3692 = vdwg.mxu0
        %v3693 = vand.u32 %v3496, 4294901760
        %3694 = vmatpush.msra.mxu0 %v3693
        %v3695 = vand.u32 %v3495, 4294901760
        %3696 = vmatpush.msra.mxu0 %v3695
        %v3697 = vand.u32 %v3494, 4294901760
        %3698 = vmatpush.msra.mxu0 %v3697
        %v3699 = vand.u32 %v3493, 4294901760
        %3700 = vmatpush.msra.mxu0 %v3699
        %v3701 = vand.u32 %v3492, 4294901760
        %3702 = vmatpush.msra.mxu0 %v3701
        %v3703 = vand.u32 %v3491, 4294901760
        %3704 = vmatpush.msra.mxu0 %v3703
        %v3705 = vand.u32 %v3490, 4294901760
        %3706 = vmatpush.msra.mxu0 %v3705
        %v3707 = vand.u32 %v3489, 4294901760
        %3708 = vmatpush.msra.mxu0 %v3707
        %v3709 = vand.u32 %v3488, 4294901760
        %3710 = vmatpush.msra.mxu0 %v3709
        %v3711 = vand.u32 %v3487, 4294901760
        %3712 = vmatpush.msra.mxu0 %v3711
        %v3713 = vand.u32 %v3486, 4294901760
        %3714 = vmatpush.msra.mxu0 %v3713
        %v3715 = vand.u32 %v3485, 4294901760
        %3716 = vmatpush.msra.mxu0 %v3715
        %v3717 = vand.u32 %v3484, 4294901760
        %3718 = vmatpush.msra.mxu0 %v3717
        %v3719 = vand.u32 %v3483, 4294901760
        %3720 = vmatpush.msra.mxu0 %v3719
        %v3721 = vand.u32 %v3482, 4294901760
        %3722 = vmatpush.msra.mxu0 %v3721
        %v3723 = vand.u32 %v3481, 4294901760
        %3724 = vmatpush.msra.mxu0 %v3723
        %v3725 = vand.u32 %v267, 4294901760
        %v3726 = vsub.f32 %v267, %v3725
        %v3727 = vand.u32 %v3726, 4294901760
        %3728 = vmatmul.f32.gmra.mxu0 %v3727
        %v3729 = vpop.f32.mrf.mxu0
        %v3730 = vadd.f32 %v3691, %v3729
        %3731 = vdwg.mxu0
        %v3732 = vand.u32 %v3496, 4294901760
        %v3733 = vsub.f32 %v3496, %v3732
        %v3734 = vand.u32 %v3733, 4294901760
        %3735 = vmatpush.msra.mxu0 %v3734
        %v3736 = vand.u32 %v3495, 4294901760
        %v3737 = vsub.f32 %v3495, %v3736
        %v3738 = vand.u32 %v3737, 4294901760
        %3739 = vmatpush.msra.mxu0 %v3738
        %v3740 = vand.u32 %v3494, 4294901760
        %v3741 = vsub.f32 %v3494, %v3740
        %v3742 = vand.u32 %v3741, 4294901760
        %3743 = vmatpush.msra.mxu0 %v3742
        %v3744 = vand.u32 %v3493, 4294901760
        %v3745 = vsub.f32 %v3493, %v3744
        %v3746 = vand.u32 %v3745, 4294901760
        %3747 = vmatpush.msra.mxu0 %v3746
        %v3748 = vand.u32 %v3492, 4294901760
        %v3749 = vsub.f32 %v3492, %v3748
        %v3750 = vand.u32 %v3749, 4294901760
        %3751 = vmatpush.msra.mxu0 %v3750
        %v3752 = vand.u32 %v3491, 4294901760
        %v3753 = vsub.f32 %v3491, %v3752
        %v3754 = vand.u32 %v3753, 4294901760
        %3755 = vmatpush.msra.mxu0 %v3754
        %v3756 = vand.u32 %v3490, 4294901760
        %v3757 = vsub.f32 %v3490, %v3756
        %v3758 = vand.u32 %v3757, 4294901760
        %3759 = vmatpush.msra.mxu0 %v3758
        %v3760 = vand.u32 %v3489, 4294901760
        %v3761 = vsub.f32 %v3489, %v3760
        %v3762 = vand.u32 %v3761, 4294901760
        %3763 = vmatpush.msra.mxu0 %v3762
        %v3764 = vand.u32 %v3488, 4294901760
        %v3765 = vsub.f32 %v3488, %v3764
        %v3766 = vand.u32 %v3765, 4294901760
        %3767 = vmatpush.msra.mxu0 %v3766
        %v3768 = vand.u32 %v3487, 4294901760
        %v3769 = vsub.f32 %v3487, %v3768
        %v3770 = vand.u32 %v3769, 4294901760
        %3771 = vmatpush.msra.mxu0 %v3770
        %v3772 = vand.u32 %v3486, 4294901760
        %v3773 = vsub.f32 %v3486, %v3772
        %v3774 = vand.u32 %v3773, 4294901760
        %3775 = vmatpush.msra.mxu0 %v3774
        %v3776 = vand.u32 %v3485, 4294901760
        %v3777 = vsub.f32 %v3485, %v3776
        %v3778 = vand.u32 %v3777, 4294901760
        %3779 = vmatpush.msra.mxu0 %v3778
        %v3780 = vand.u32 %v3484, 4294901760
        %v3781 = vsub.f32 %v3484, %v3780
        %v3782 = vand.u32 %v3781, 4294901760
        %3783 = vmatpush.msra.mxu0 %v3782
        %v3784 = vand.u32 %v3483, 4294901760
        %v3785 = vsub.f32 %v3483, %v3784
        %v3786 = vand.u32 %v3785, 4294901760
        %3787 = vmatpush.msra.mxu0 %v3786
        %v3788 = vand.u32 %v3482, 4294901760
        %v3789 = vsub.f32 %v3482, %v3788
        %v3790 = vand.u32 %v3789, 4294901760
        %3791 = vmatpush.msra.mxu0 %v3790
        %v3792 = vand.u32 %v3481, 4294901760
        %v3793 = vsub.f32 %v3481, %v3792
        %v3794 = vand.u32 %v3793, 4294901760
        %3795 = vmatpush.msra.mxu0 %v3794
        %v3796 = vand.u32 %v267, 4294901760
        %3797 = vmatmul.f32.gmra.mxu0 %v3796
        %v3798 = vpop.f32.mrf.mxu0
        %v3799 = vadd.f32 %v3730, %v3798
        %3800 = vdwg.mxu0
        %v3801 = vand.u32 %v3496, 4294901760
        %3802 = vmatpush.msra.mxu0 %v3801
        %v3803 = vand.u32 %v3495, 4294901760
        %3804 = vmatpush.msra.mxu0 %v3803
        %v3805 = vand.u32 %v3494, 4294901760
        %3806 = vmatpush.msra.mxu0 %v3805
        %v3807 = vand.u32 %v3493, 4294901760
        %3808 = vmatpush.msra.mxu0 %v3807
        %v3809 = vand.u32 %v3492, 4294901760
        %3810 = vmatpush.msra.mxu0 %v3809
        %v3811 = vand.u32 %v3491, 4294901760
        %3812 = vmatpush.msra.mxu0 %v3811
        %v3813 = vand.u32 %v3490, 4294901760
        %3814 = vmatpush.msra.mxu0 %v3813
        %v3815 = vand.u32 %v3489, 4294901760
        %3816 = vmatpush.msra.mxu0 %v3815
        %v3817 = vand.u32 %v3488, 4294901760
        %3818 = vmatpush.msra.mxu0 %v3817
        %v3819 = vand.u32 %v3487, 4294901760
        %3820 = vmatpush.msra.mxu0 %v3819
        %v3821 = vand.u32 %v3486, 4294901760
        %3822 = vmatpush.msra.mxu0 %v3821
        %v3823 = vand.u32 %v3485, 4294901760
        %3824 = vmatpush.msra.mxu0 %v3823
        %v3825 = vand.u32 %v3484, 4294901760
        %3826 = vmatpush.msra.mxu0 %v3825
        %v3827 = vand.u32 %v3483, 4294901760
        %3828 = vmatpush.msra.mxu0 %v3827
        %v3829 = vand.u32 %v3482, 4294901760
        %3830 = vmatpush.msra.mxu0 %v3829
        %v3831 = vand.u32 %v3481, 4294901760
        %3832 = vmatpush.msra.mxu0 %v3831
        %v3833 = vand.u32 %v267, 4294901760
        %3834 = vmatmul.f32.gmra.mxu0 %v3833
        %v3835 = vpop.f32.mrf.mxu0
        %v3836 = vadd.f32 %v3799, %v3835
        %3837 = vdwg.mxu0
        %v3838 = vadd.f32 %v3479, %v3836
        %v3839 = vmul.f32 %v751, %v267
        %v3840 = vmul.f32 %v1092, %v267
        %v3841 = vmul.f32 %v1433, %v267
        %v3842 = vmul.f32 %v1774, %v267
        %v3843 = vmul.f32 %v2115, %v267
        %v3844 = vmul.f32 %v2456, %v267
        %v3845 = vmul.f32 %v2797, %v267
        %v3846 = vmul.f32 %v3138, %v267
        %v3847 = vld [vmem:[%s4] sm:$0xff]
        %v3848 = vld [vmem:[%s4 + $0x8] sm:$0xff]
        %v3849 = vld [vmem:[%s4 + $0x10] sm:$0xff]
        %v3850 = vld [vmem:[%s4 + $0x18] sm:$0xff]
        %v3851 = vld [vmem:[%s4 + $0x20] sm:$0xff]
        %v3852 = vld [vmem:[%s4 + $0x28] sm:$0xff]
        %v3853 = vld [vmem:[%s4 + $0x30] sm:$0xff]
        %v3854 = vld [vmem:[%s4 + $0x38] sm:$0xff]
        %v3855 = vld [vmem:[#allocation2] sm:$0x1]
        %v3857 = vperm.slane %v3855, 0
        %3858 = vset.pattern.permute.xlu0 0
        %3859 = vperm.xlu0 %3858, %v3857
        %v3860 = vpop.permute.xlu0 %3859
        %3862 = vmatpush.xpose.msra.mxu0 0.0
        %3863 = vmatpush.xpose.msra.mxu0 0.0
        %3864 = vmatpush.xpose.msra.mxu0 0.0
        %3865 = vmatpush.xpose.msra.mxu0 0.0
        %3866 = vmatpush.xpose.msra.mxu0 0.0
        %3867 = vmatpush.xpose.msra.mxu0 0.0
        %3868 = vmatpush.xpose.msra.mxu0 0.0
        %3869 = vmatpush.xpose.msra.mxu0 0.0
        %3870 = vmatpush.xpose.msra.mxu0 0.0
        %3871 = vmatpush.xpose.msra.mxu0 0.0
        %3872 = vmatpush.xpose.msra.mxu0 0.0
        %3873 = vmatpush.xpose.msra.mxu0 0.0
        %3874 = vmatpush.xpose.msra.mxu0 0.0
        %3875 = vmatpush.xpose.msra.mxu0 0.0
        %3876 = vmatpush.xpose.msra.mxu0 0.0
        %v3877 = vand.u32 %v3839, 4294901760
        %3878 = vmatpush.xpose.msra.mxu0 %v3877
        %v3879 = vand.u32 %v3847, 4294901760
        %v3880 = vsub.f32 %v3847, %v3879
        %v3881 = vand.u32 %v3880, 4294901760
        %v3882 = vsub.f32 %v3880, %v3881
        %v3883 = vand.u32 %v3882, 4294901760
        %3884 = vmatmul.f32.gmra.mxu0 %v3883
        %v3885 = vpop.f32.mrf.mxu0
        %v3886 = vadd.f32 %v3860, %v3885
        %3887 = vdwg.mxu0
        %3888 = vmatpush.xpose.msra.mxu0 0.0
        %3889 = vmatpush.xpose.msra.mxu0 0.0
        %3890 = vmatpush.xpose.msra.mxu0 0.0
        %3891 = vmatpush.xpose.msra.mxu0 0.0
        %3892 = vmatpush.xpose.msra.mxu0 0.0
        %3893 = vmatpush.xpose.msra.mxu0 0.0
        %3894 = vmatpush.xpose.msra.mxu0 0.0
        %3895 = vmatpush.xpose.msra.mxu0 0.0
        %3896 = vmatpush.xpose.msra.mxu0 0.0
        %3897 = vmatpush.xpose.msra.mxu0 0.0
        %3898 = vmatpush.xpose.msra.mxu0 0.0
        %3899 = vmatpush.xpose.msra.mxu0 0.0
        %3900 = vmatpush.xpose.msra.mxu0 0.0
        %3901 = vmatpush.xpose.msra.mxu0 0.0
        %3902 = vmatpush.xpose.msra.mxu0 0.0
        %v3903 = vand.u32 %v3839, 4294901760
        %v3904 = vsub.f32 %v3839, %v3903
        %v3905 = vand.u32 %v3904, 4294901760
        %v3906 = vsub.f32 %v3904, %v3905
        %v3907 = vand.u32 %v3906, 4294901760
        %3908 = vmatpush.xpose.msra.mxu0 %v3907
        %v3909 = vand.u32 %v3847, 4294901760
        %3910 = vmatmul.f32.gmra.mxu0 %v3909
        %v3911 = vpop.f32.mrf.mxu0
        %v3912 = vadd.f32 %v3886, %v3911
        %3913 = vdwg.mxu0
        %3914 = vmatpush.xpose.msra.mxu0 0.0
        %3915 = vmatpush.xpose.msra.mxu0 0.0
        %3916 = vmatpush.xpose.msra.mxu0 0.0
        %3917 = vmatpush.xpose.msra.mxu0 0.0
        %3918 = vmatpush.xpose.msra.mxu0 0.0
        %3919 = vmatpush.xpose.msra.mxu0 0.0
        %3920 = vmatpush.xpose.msra.mxu0 0.0
        %3921 = vmatpush.xpose.msra.mxu0 0.0
        %3922 = vmatpush.xpose.msra.mxu0 0.0
        %3923 = vmatpush.xpose.msra.mxu0 0.0
        %3924 = vmatpush.xpose.msra.mxu0 0.0
        %3925 = vmatpush.xpose.msra.mxu0 0.0
        %3926 = vmatpush.xpose.msra.mxu0 0.0
        %3927 = vmatpush.xpose.msra.mxu0 0.0
        %3928 = vmatpush.xpose.msra.mxu0 0.0
        %v3929 = vand.u32 %v3839, 4294901760
        %v3930 = vsub.f32 %v3839, %v3929
        %3931 = vmatpush.xpose.msra.mxu0 %v3930
        %v3932 = vand.u32 %v3847, 4294901760
        %v3933 = vsub.f32 %v3847, %v3932
        %3934 = vmatmul.f32.gmra.mxu0 %v3933
        %v3935 = vpop.f32.mrf.mxu0
        %v3936 = vadd.f32 %v3912, %v3935
        %3937 = vdwg.mxu0
        %3938 = vmatpush.xpose.msra.mxu0 0.0
        %3939 = vmatpush.xpose.msra.mxu0 0.0
        %3940 = vmatpush.xpose.msra.mxu0 0.0
        %3941 = vmatpush.xpose.msra.mxu0 0.0
        %3942 = vmatpush.xpose.msra.mxu0 0.0
        %3943 = vmatpush.xpose.msra.mxu0 0.0
        %3944 = vmatpush.xpose.msra.mxu0 0.0
        %3945 = vmatpush.xpose.msra.mxu0 0.0
        %3946 = vmatpush.xpose.msra.mxu0 0.0
        %3947 = vmatpush.xpose.msra.mxu0 0.0
        %3948 = vmatpush.xpose.msra.mxu0 0.0
        %3949 = vmatpush.xpose.msra.mxu0 0.0
        %3950 = vmatpush.xpose.msra.mxu0 0.0
        %3951 = vmatpush.xpose.msra.mxu0 0.0
        %3952 = vmatpush.xpose.msra.mxu0 0.0
        %v3953 = vand.u32 %v3839, 4294901760
        %3954 = vmatpush.xpose.msra.mxu0 %v3953
        %v3955 = vand.u32 %v3847, 4294901760
        %v3956 = vsub.f32 %v3847, %v3955
        %v3957 = vand.u32 %v3956, 4294901760
        %3958 = vmatmul.f32.gmra.mxu0 %v3957
        %v3959 = vpop.f32.mrf.mxu0
        %v3960 = vadd.f32 %v3936, %v3959
        %3961 = vdwg.mxu0
        %3962 = vmatpush.xpose.msra.mxu0 0.0
        %3963 = vmatpush.xpose.msra.mxu0 0.0
        %3964 = vmatpush.xpose.msra.mxu0 0.0
        %3965 = vmatpush.xpose.msra.mxu0 0.0
        %3966 = vmatpush.xpose.msra.mxu0 0.0
        %3967 = vmatpush.xpose.msra.mxu0 0.0
        %3968 = vmatpush.xpose.msra.mxu0 0.0
        %3969 = vmatpush.xpose.msra.mxu0 0.0
        %3970 = vmatpush.xpose.msra.mxu0 0.0
        %3971 = vmatpush.xpose.msra.mxu0 0.0
        %3972 = vmatpush.xpose.msra.mxu0 0.0
        %3973 = vmatpush.xpose.msra.mxu0 0.0
        %3974 = vmatpush.xpose.msra.mxu0 0.0
        %3975 = vmatpush.xpose.msra.mxu0 0.0
        %3976 = vmatpush.xpose.msra.mxu0 0.0
        %v3977 = vand.u32 %v3839, 4294901760
        %v3978 = vsub.f32 %v3839, %v3977
        %v3979 = vand.u32 %v3978, 4294901760
        %3980 = vmatpush.xpose.msra.mxu0 %v3979
        %v3981 = vand.u32 %v3847, 4294901760
        %3982 = vmatmul.f32.gmra.mxu0 %v3981
        %v3983 = vpop.f32.mrf.mxu0
        %v3984 = vadd.f32 %v3960, %v3983
        %3985 = vdwg.mxu0
        %3986 = vmatpush.xpose.msra.mxu0 0.0
        %3987 = vmatpush.xpose.msra.mxu0 0.0
        %3988 = vmatpush.xpose.msra.mxu0 0.0
        %3989 = vmatpush.xpose.msra.mxu0 0.0
        %3990 = vmatpush.xpose.msra.mxu0 0.0
        %3991 = vmatpush.xpose.msra.mxu0 0.0
        %3992 = vmatpush.xpose.msra.mxu0 0.0
        %3993 = vmatpush.xpose.msra.mxu0 0.0
        %3994 = vmatpush.xpose.msra.mxu0 0.0
        %3995 = vmatpush.xpose.msra.mxu0 0.0
        %3996 = vmatpush.xpose.msra.mxu0 0.0
        %3997 = vmatpush.xpose.msra.mxu0 0.0
        %3998 = vmatpush.xpose.msra.mxu0 0.0
        %3999 = vmatpush.xpose.msra.mxu0 0.0
        %4000 = vmatpush.xpose.msra.mxu0 0.0
        %v4001 = vand.u32 %v3839, 4294901760
        %4002 = vmatpush.xpose.msra.mxu0 %v4001
        %v4003 = vand.u32 %v3847, 4294901760
        %4004 = vmatmul.f32.gmra.mxu0 %v4003
        %v4005 = vpop.f32.mrf.mxu0
        %v4006 = vadd.f32 %v3984, %v4005
        %4007 = vdwg.mxu0
        %4008 = vmatpush.xpose.msra.mxu0 0.0
        %4009 = vmatpush.xpose.msra.mxu0 0.0
        %4010 = vmatpush.xpose.msra.mxu0 0.0
        %4011 = vmatpush.xpose.msra.mxu0 0.0
        %4012 = vmatpush.xpose.msra.mxu0 0.0
        %4013 = vmatpush.xpose.msra.mxu0 0.0
        %4014 = vmatpush.xpose.msra.mxu0 0.0
        %4015 = vmatpush.xpose.msra.mxu0 0.0
        %4016 = vmatpush.xpose.msra.mxu0 0.0
        %4017 = vmatpush.xpose.msra.mxu0 0.0
        %4018 = vmatpush.xpose.msra.mxu0 0.0
        %4019 = vmatpush.xpose.msra.mxu0 0.0
        %4020 = vmatpush.xpose.msra.mxu0 0.0
        %4021 = vmatpush.xpose.msra.mxu0 0.0
        %4022 = vmatpush.xpose.msra.mxu0 0.0
        %v4023 = vand.u32 %v3840, 4294901760
        %4024 = vmatpush.xpose.msra.mxu0 %v4023
        %v4025 = vand.u32 %v3848, 4294901760
        %v4026 = vsub.f32 %v3848, %v4025
        %v4027 = vand.u32 %v4026, 4294901760
        %v4028 = vsub.f32 %v4026, %v4027
        %v4029 = vand.u32 %v4028, 4294901760
        %4030 = vmatmul.f32.gmra.mxu0 %v4029
        %v4031 = vpop.f32.mrf.mxu0
        %v4032 = vadd.f32 %v4006, %v4031
        %4033 = vdwg.mxu0
        %4034 = vmatpush.xpose.msra.mxu0 0.0
        %4035 = vmatpush.xpose.msra.mxu0 0.0
        %4036 = vmatpush.xpose.msra.mxu0 0.0
        %4037 = vmatpush.xpose.msra.mxu0 0.0
        %4038 = vmatpush.xpose.msra.mxu0 0.0
        %4039 = vmatpush.xpose.msra.mxu0 0.0
        %4040 = vmatpush.xpose.msra.mxu0 0.0
        %4041 = vmatpush.xpose.msra.mxu0 0.0
        %4042 = vmatpush.xpose.msra.mxu0 0.0
        %4043 = vmatpush.xpose.msra.mxu0 0.0
        %4044 = vmatpush.xpose.msra.mxu0 0.0
        %4045 = vmatpush.xpose.msra.mxu0 0.0
        %4046 = vmatpush.xpose.msra.mxu0 0.0
        %4047 = vmatpush.xpose.msra.mxu0 0.0
        %4048 = vmatpush.xpose.msra.mxu0 0.0
        %v4049 = vand.u32 %v3840, 4294901760
        %v4050 = vsub.f32 %v3840, %v4049
        %v4051 = vand.u32 %v4050, 4294901760
        %v4052 = vsub.f32 %v4050, %v4051
        %v4053 = vand.u32 %v4052, 4294901760
        %4054 = vmatpush.xpose.msra.mxu0 %v4053
        %v4055 = vand.u32 %v3848, 4294901760
        %4056 = vmatmul.f32.gmra.mxu0 %v4055
        %v4057 = vpop.f32.mrf.mxu0
        %v4058 = vadd.f32 %v4032, %v4057
        %4059 = vdwg.mxu0
        %4060 = vmatpush.xpose.msra.mxu0 0.0
        %4061 = vmatpush.xpose.msra.mxu0 0.0
        %4062 = vmatpush.xpose.msra.mxu0 0.0
        %4063 = vmatpush.xpose.msra.mxu0 0.0
        %4064 = vmatpush.xpose.msra.mxu0 0.0
        %4065 = vmatpush.xpose.msra.mxu0 0.0
        %4066 = vmatpush.xpose.msra.mxu0 0.0
        %4067 = vmatpush.xpose.msra.mxu0 0.0
        %4068 = vmatpush.xpose.msra.mxu0 0.0
        %4069 = vmatpush.xpose.msra.mxu0 0.0
        %4070 = vmatpush.xpose.msra.mxu0 0.0
        %4071 = vmatpush.xpose.msra.mxu0 0.0
        %4072 = vmatpush.xpose.msra.mxu0 0.0
        %4073 = vmatpush.xpose.msra.mxu0 0.0
        %4074 = vmatpush.xpose.msra.mxu0 0.0
        %v4075 = vand.u32 %v3840, 4294901760
        %v4076 = vsub.f32 %v3840, %v4075
        %4077 = vmatpush.xpose.msra.mxu0 %v4076
        %v4078 = vand.u32 %v3848, 4294901760
        %v4079 = vsub.f32 %v3848, %v4078
        %4080 = vmatmul.f32.gmra.mxu0 %v4079
        %v4081 = vpop.f32.mrf.mxu0
        %v4082 = vadd.f32 %v4058, %v4081
        %4083 = vdwg.mxu0
        %4084 = vmatpush.xpose.msra.mxu0 0.0
        %4085 = vmatpush.xpose.msra.mxu0 0.0
        %4086 = vmatpush.xpose.msra.mxu0 0.0
        %4087 = vmatpush.xpose.msra.mxu0 0.0
        %4088 = vmatpush.xpose.msra.mxu0 0.0
        %4089 = vmatpush.xpose.msra.mxu0 0.0
        %4090 = vmatpush.xpose.msra.mxu0 0.0
        %4091 = vmatpush.xpose.msra.mxu0 0.0
        %4092 = vmatpush.xpose.msra.mxu0 0.0
        %4093 = vmatpush.xpose.msra.mxu0 0.0
        %4094 = vmatpush.xpose.msra.mxu0 0.0
        %4095 = vmatpush.xpose.msra.mxu0 0.0
        %4096 = vmatpush.xpose.msra.mxu0 0.0
        %4097 = vmatpush.xpose.msra.mxu0 0.0
        %4098 = vmatpush.xpose.msra.mxu0 0.0
        %v4099 = vand.u32 %v3840, 4294901760
        %4100 = vmatpush.xpose.msra.mxu0 %v4099
        %v4101 = vand.u32 %v3848, 4294901760
        %v4102 = vsub.f32 %v3848, %v4101
        %v4103 = vand.u32 %v4102, 4294901760
        %4104 = vmatmul.f32.gmra.mxu0 %v4103
        %v4105 = vpop.f32.mrf.mxu0
        %v4106 = vadd.f32 %v4082, %v4105
        %4107 = vdwg.mxu0
        %4108 = vmatpush.xpose.msra.mxu0 0.0
        %4109 = vmatpush.xpose.msra.mxu0 0.0
        %4110 = vmatpush.xpose.msra.mxu0 0.0
        %4111 = vmatpush.xpose.msra.mxu0 0.0
        %4112 = vmatpush.xpose.msra.mxu0 0.0
        %4113 = vmatpush.xpose.msra.mxu0 0.0
        %4114 = vmatpush.xpose.msra.mxu0 0.0
        %4115 = vmatpush.xpose.msra.mxu0 0.0
        %4116 = vmatpush.xpose.msra.mxu0 0.0
        %4117 = vmatpush.xpose.msra.mxu0 0.0
        %4118 = vmatpush.xpose.msra.mxu0 0.0
        %4119 = vmatpush.xpose.msra.mxu0 0.0
        %4120 = vmatpush.xpose.msra.mxu0 0.0
        %4121 = vmatpush.xpose.msra.mxu0 0.0
        %4122 = vmatpush.xpose.msra.mxu0 0.0
        %v4123 = vand.u32 %v3840, 4294901760
        %v4124 = vsub.f32 %v3840, %v4123
        %v4125 = vand.u32 %v4124, 4294901760
        %4126 = vmatpush.xpose.msra.mxu0 %v4125
        %v4127 = vand.u32 %v3848, 4294901760
        %4128 = vmatmul.f32.gmra.mxu0 %v4127
        %v4129 = vpop.f32.mrf.mxu0
        %v4130 = vadd.f32 %v4106, %v4129
        %4131 = vdwg.mxu0
        %4132 = vmatpush.xpose.msra.mxu0 0.0
        %4133 = vmatpush.xpose.msra.mxu0 0.0
        %4134 = vmatpush.xpose.msra.mxu0 0.0
        %4135 = vmatpush.xpose.msra.mxu0 0.0
        %4136 = vmatpush.xpose.msra.mxu0 0.0
        %4137 = vmatpush.xpose.msra.mxu0 0.0
        %4138 = vmatpush.xpose.msra.mxu0 0.0
        %4139 = vmatpush.xpose.msra.mxu0 0.0
        %4140 = vmatpush.xpose.msra.mxu0 0.0
        %4141 = vmatpush.xpose.msra.mxu0 0.0
        %4142 = vmatpush.xpose.msra.mxu0 0.0
        %4143 = vmatpush.xpose.msra.mxu0 0.0
        %4144 = vmatpush.xpose.msra.mxu0 0.0
        %4145 = vmatpush.xpose.msra.mxu0 0.0
        %4146 = vmatpush.xpose.msra.mxu0 0.0
        %v4147 = vand.u32 %v3840, 4294901760
        %4148 = vmatpush.xpose.msra.mxu0 %v4147
        %v4149 = vand.u32 %v3848, 4294901760
        %4150 = vmatmul.f32.gmra.mxu0 %v4149
        %v4151 = vpop.f32.mrf.mxu0
        %v4152 = vadd.f32 %v4130, %v4151
        %4153 = vdwg.mxu0
        %4154 = vmatpush.xpose.msra.mxu0 0.0
        %4155 = vmatpush.xpose.msra.mxu0 0.0
        %4156 = vmatpush.xpose.msra.mxu0 0.0
        %4157 = vmatpush.xpose.msra.mxu0 0.0
        %4158 = vmatpush.xpose.msra.mxu0 0.0
        %4159 = vmatpush.xpose.msra.mxu0 0.0
        %4160 = vmatpush.xpose.msra.mxu0 0.0
        %4161 = vmatpush.xpose.msra.mxu0 0.0
        %4162 = vmatpush.xpose.msra.mxu0 0.0
        %4163 = vmatpush.xpose.msra.mxu0 0.0
        %4164 = vmatpush.xpose.msra.mxu0 0.0
        %4165 = vmatpush.xpose.msra.mxu0 0.0
        %4166 = vmatpush.xpose.msra.mxu0 0.0
        %4167 = vmatpush.xpose.msra.mxu0 0.0
        %4168 = vmatpush.xpose.msra.mxu0 0.0
        %v4169 = vand.u32 %v3841, 4294901760
        %4170 = vmatpush.xpose.msra.mxu0 %v4169
        %v4171 = vand.u32 %v3849, 4294901760
        %v4172 = vsub.f32 %v3849, %v4171
        %v4173 = vand.u32 %v4172, 4294901760
        %v4174 = vsub.f32 %v4172, %v4173
        %v4175 = vand.u32 %v4174, 4294901760
        %4176 = vmatmul.f32.gmra.mxu0 %v4175
        %v4177 = vpop.f32.mrf.mxu0
        %v4178 = vadd.f32 %v4152, %v4177
        %4179 = vdwg.mxu0
        %4180 = vmatpush.xpose.msra.mxu0 0.0
        %4181 = vmatpush.xpose.msra.mxu0 0.0
        %4182 = vmatpush.xpose.msra.mxu0 0.0
        %4183 = vmatpush.xpose.msra.mxu0 0.0
        %4184 = vmatpush.xpose.msra.mxu0 0.0
        %4185 = vmatpush.xpose.msra.mxu0 0.0
        %4186 = vmatpush.xpose.msra.mxu0 0.0
        %4187 = vmatpush.xpose.msra.mxu0 0.0
        %4188 = vmatpush.xpose.msra.mxu0 0.0
        %4189 = vmatpush.xpose.msra.mxu0 0.0
        %4190 = vmatpush.xpose.msra.mxu0 0.0
        %4191 = vmatpush.xpose.msra.mxu0 0.0
        %4192 = vmatpush.xpose.msra.mxu0 0.0
        %4193 = vmatpush.xpose.msra.mxu0 0.0
        %4194 = vmatpush.xpose.msra.mxu0 0.0
        %v4195 = vand.u32 %v3841, 4294901760
        %v4196 = vsub.f32 %v3841, %v4195
        %v4197 = vand.u32 %v4196, 4294901760
        %v4198 = vsub.f32 %v4196, %v4197
        %v4199 = vand.u32 %v4198, 4294901760
        %4200 = vmatpush.xpose.msra.mxu0 %v4199
        %v4201 = vand.u32 %v3849, 4294901760
        %4202 = vmatmul.f32.gmra.mxu0 %v4201
        %v4203 = vpop.f32.mrf.mxu0
        %v4204 = vadd.f32 %v4178, %v4203
        %4205 = vdwg.mxu0
        %4206 = vmatpush.xpose.msra.mxu0 0.0
        %4207 = vmatpush.xpose.msra.mxu0 0.0
        %4208 = vmatpush.xpose.msra.mxu0 0.0
        %4209 = vmatpush.xpose.msra.mxu0 0.0
        %4210 = vmatpush.xpose.msra.mxu0 0.0
        %4211 = vmatpush.xpose.msra.mxu0 0.0
        %4212 = vmatpush.xpose.msra.mxu0 0.0
        %4213 = vmatpush.xpose.msra.mxu0 0.0
        %4214 = vmatpush.xpose.msra.mxu0 0.0
        %4215 = vmatpush.xpose.msra.mxu0 0.0
        %4216 = vmatpush.xpose.msra.mxu0 0.0
        %4217 = vmatpush.xpose.msra.mxu0 0.0
        %4218 = vmatpush.xpose.msra.mxu0 0.0
        %4219 = vmatpush.xpose.msra.mxu0 0.0
        %4220 = vmatpush.xpose.msra.mxu0 0.0
        %v4221 = vand.u32 %v3841, 4294901760
        %v4222 = vsub.f32 %v3841, %v4221
        %4223 = vmatpush.xpose.msra.mxu0 %v4222
        %v4224 = vand.u32 %v3849, 4294901760
        %v4225 = vsub.f32 %v3849, %v4224
        %4226 = vmatmul.f32.gmra.mxu0 %v4225
        %v4227 = vpop.f32.mrf.mxu0
        %v4228 = vadd.f32 %v4204, %v4227
        %4229 = vdwg.mxu0
        %4230 = vmatpush.xpose.msra.mxu0 0.0
        %4231 = vmatpush.xpose.msra.mxu0 0.0
        %4232 = vmatpush.xpose.msra.mxu0 0.0
        %4233 = vmatpush.xpose.msra.mxu0 0.0
        %4234 = vmatpush.xpose.msra.mxu0 0.0
        %4235 = vmatpush.xpose.msra.mxu0 0.0
        %4236 = vmatpush.xpose.msra.mxu0 0.0
        %4237 = vmatpush.xpose.msra.mxu0 0.0
        %4238 = vmatpush.xpose.msra.mxu0 0.0
        %4239 = vmatpush.xpose.msra.mxu0 0.0
        %4240 = vmatpush.xpose.msra.mxu0 0.0
        %4241 = vmatpush.xpose.msra.mxu0 0.0
        %4242 = vmatpush.xpose.msra.mxu0 0.0
        %4243 = vmatpush.xpose.msra.mxu0 0.0
        %4244 = vmatpush.xpose.msra.mxu0 0.0
        %v4245 = vand.u32 %v3841, 4294901760
        %4246 = vmatpush.xpose.msra.mxu0 %v4245
        %v4247 = vand.u32 %v3849, 4294901760
        %v4248 = vsub.f32 %v3849, %v4247
        %v4249 = vand.u32 %v4248, 4294901760
        %4250 = vmatmul.f32.gmra.mxu0 %v4249
        %v4251 = vpop.f32.mrf.mxu0
        %v4252 = vadd.f32 %v4228, %v4251
        %4253 = vdwg.mxu0
        %4254 = vmatpush.xpose.msra.mxu0 0.0
        %4255 = vmatpush.xpose.msra.mxu0 0.0
        %4256 = vmatpush.xpose.msra.mxu0 0.0
        %4257 = vmatpush.xpose.msra.mxu0 0.0
        %4258 = vmatpush.xpose.msra.mxu0 0.0
        %4259 = vmatpush.xpose.msra.mxu0 0.0
        %4260 = vmatpush.xpose.msra.mxu0 0.0
        %4261 = vmatpush.xpose.msra.mxu0 0.0
        %4262 = vmatpush.xpose.msra.mxu0 0.0
        %4263 = vmatpush.xpose.msra.mxu0 0.0
        %4264 = vmatpush.xpose.msra.mxu0 0.0
        %4265 = vmatpush.xpose.msra.mxu0 0.0
        %4266 = vmatpush.xpose.msra.mxu0 0.0
        %4267 = vmatpush.xpose.msra.mxu0 0.0
        %4268 = vmatpush.xpose.msra.mxu0 0.0
        %v4269 = vand.u32 %v3841, 4294901760
        %v4270 = vsub.f32 %v3841, %v4269
        %v4271 = vand.u32 %v4270, 4294901760
        %4272 = vmatpush.xpose.msra.mxu0 %v4271
        %v4273 = vand.u32 %v3849, 4294901760
        %4274 = vmatmul.f32.gmra.mxu0 %v4273
        %v4275 = vpop.f32.mrf.mxu0
        %v4276 = vadd.f32 %v4252, %v4275
        %4277 = vdwg.mxu0
        %4278 = vmatpush.xpose.msra.mxu0 0.0
        %4279 = vmatpush.xpose.msra.mxu0 0.0
        %4280 = vmatpush.xpose.msra.mxu0 0.0
        %4281 = vmatpush.xpose.msra.mxu0 0.0
        %4282 = vmatpush.xpose.msra.mxu0 0.0
        %4283 = vmatpush.xpose.msra.mxu0 0.0
        %4284 = vmatpush.xpose.msra.mxu0 0.0
        %4285 = vmatpush.xpose.msra.mxu0 0.0
        %4286 = vmatpush.xpose.msra.mxu0 0.0
        %4287 = vmatpush.xpose.msra.mxu0 0.0
        %4288 = vmatpush.xpose.msra.mxu0 0.0
        %4289 = vmatpush.xpose.msra.mxu0 0.0
        %4290 = vmatpush.xpose.msra.mxu0 0.0
        %4291 = vmatpush.xpose.msra.mxu0 0.0
        %4292 = vmatpush.xpose.msra.mxu0 0.0
        %v4293 = vand.u32 %v3841, 4294901760
        %4294 = vmatpush.xpose.msra.mxu0 %v4293
        %v4295 = vand.u32 %v3849, 4294901760
        %4296 = vmatmul.f32.gmra.mxu0 %v4295
        %v4297 = vpop.f32.mrf.mxu0
        %v4298 = vadd.f32 %v4276, %v4297
        %4299 = vdwg.mxu0
        %4300 = vmatpush.xpose.msra.mxu0 0.0
        %4301 = vmatpush.xpose.msra.mxu0 0.0
        %4302 = vmatpush.xpose.msra.mxu0 0.0
        %4303 = vmatpush.xpose.msra.mxu0 0.0
        %4304 = vmatpush.xpose.msra.mxu0 0.0
        %4305 = vmatpush.xpose.msra.mxu0 0.0
        %4306 = vmatpush.xpose.msra.mxu0 0.0
        %4307 = vmatpush.xpose.msra.mxu0 0.0
        %4308 = vmatpush.xpose.msra.mxu0 0.0
        %4309 = vmatpush.xpose.msra.mxu0 0.0
        %4310 = vmatpush.xpose.msra.mxu0 0.0
        %4311 = vmatpush.xpose.msra.mxu0 0.0
        %4312 = vmatpush.xpose.msra.mxu0 0.0
        %4313 = vmatpush.xpose.msra.mxu0 0.0
        %4314 = vmatpush.xpose.msra.mxu0 0.0
        %v4315 = vand.u32 %v3842, 4294901760
        %4316 = vmatpush.xpose.msra.mxu0 %v4315
        %v4317 = vand.u32 %v3850, 4294901760
        %v4318 = vsub.f32 %v3850, %v4317
        %v4319 = vand.u32 %v4318, 4294901760
        %v4320 = vsub.f32 %v4318, %v4319
        %v4321 = vand.u32 %v4320, 4294901760
        %4322 = vmatmul.f32.gmra.mxu0 %v4321
        %v4323 = vpop.f32.mrf.mxu0
        %v4324 = vadd.f32 %v4298, %v4323
        %4325 = vdwg.mxu0
        %4326 = vmatpush.xpose.msra.mxu0 0.0
        %4327 = vmatpush.xpose.msra.mxu0 0.0
        %4328 = vmatpush.xpose.msra.mxu0 0.0
        %4329 = vmatpush.xpose.msra.mxu0 0.0
        %4330 = vmatpush.xpose.msra.mxu0 0.0
        %4331 = vmatpush.xpose.msra.mxu0 0.0
        %4332 = vmatpush.xpose.msra.mxu0 0.0
        %4333 = vmatpush.xpose.msra.mxu0 0.0
        %4334 = vmatpush.xpose.msra.mxu0 0.0
        %4335 = vmatpush.xpose.msra.mxu0 0.0
        %4336 = vmatpush.xpose.msra.mxu0 0.0
        %4337 = vmatpush.xpose.msra.mxu0 0.0
        %4338 = vmatpush.xpose.msra.mxu0 0.0
        %4339 = vmatpush.xpose.msra.mxu0 0.0
        %4340 = vmatpush.xpose.msra.mxu0 0.0
        %v4341 = vand.u32 %v3842, 4294901760
        %v4342 = vsub.f32 %v3842, %v4341
        %v4343 = vand.u32 %v4342, 4294901760
        %v4344 = vsub.f32 %v4342, %v4343
        %v4345 = vand.u32 %v4344, 4294901760
        %4346 = vmatpush.xpose.msra.mxu0 %v4345
        %v4347 = vand.u32 %v3850, 4294901760
        %4348 = vmatmul.f32.gmra.mxu0 %v4347
        %v4349 = vpop.f32.mrf.mxu0
        %v4350 = vadd.f32 %v4324, %v4349
        %4351 = vdwg.mxu0
        %4352 = vmatpush.xpose.msra.mxu0 0.0
        %4353 = vmatpush.xpose.msra.mxu0 0.0
        %4354 = vmatpush.xpose.msra.mxu0 0.0
        %4355 = vmatpush.xpose.msra.mxu0 0.0
        %4356 = vmatpush.xpose.msra.mxu0 0.0
        %4357 = vmatpush.xpose.msra.mxu0 0.0
        %4358 = vmatpush.xpose.msra.mxu0 0.0
        %4359 = vmatpush.xpose.msra.mxu0 0.0
        %4360 = vmatpush.xpose.msra.mxu0 0.0
        %4361 = vmatpush.xpose.msra.mxu0 0.0
        %4362 = vmatpush.xpose.msra.mxu0 0.0
        %4363 = vmatpush.xpose.msra.mxu0 0.0
        %4364 = vmatpush.xpose.msra.mxu0 0.0
        %4365 = vmatpush.xpose.msra.mxu0 0.0
        %4366 = vmatpush.xpose.msra.mxu0 0.0
        %v4367 = vand.u32 %v3842, 4294901760
        %v4368 = vsub.f32 %v3842, %v4367
        %4369 = vmatpush.xpose.msra.mxu0 %v4368
        %v4370 = vand.u32 %v3850, 4294901760
        %v4371 = vsub.f32 %v3850, %v4370
        %4372 = vmatmul.f32.gmra.mxu0 %v4371
        %v4373 = vpop.f32.mrf.mxu0
        %v4374 = vadd.f32 %v4350, %v4373
        %4375 = vdwg.mxu0
        %4376 = vmatpush.xpose.msra.mxu0 0.0
        %4377 = vmatpush.xpose.msra.mxu0 0.0
        %4378 = vmatpush.xpose.msra.mxu0 0.0
        %4379 = vmatpush.xpose.msra.mxu0 0.0
        %4380 = vmatpush.xpose.msra.mxu0 0.0
        %4381 = vmatpush.xpose.msra.mxu0 0.0
        %4382 = vmatpush.xpose.msra.mxu0 0.0
        %4383 = vmatpush.xpose.msra.mxu0 0.0
        %4384 = vmatpush.xpose.msra.mxu0 0.0
        %4385 = vmatpush.xpose.msra.mxu0 0.0
        %4386 = vmatpush.xpose.msra.mxu0 0.0
        %4387 = vmatpush.xpose.msra.mxu0 0.0
        %4388 = vmatpush.xpose.msra.mxu0 0.0
        %4389 = vmatpush.xpose.msra.mxu0 0.0
        %4390 = vmatpush.xpose.msra.mxu0 0.0
        %v4391 = vand.u32 %v3842, 4294901760
        %4392 = vmatpush.xpose.msra.mxu0 %v4391
        %v4393 = vand.u32 %v3850, 4294901760
        %v4394 = vsub.f32 %v3850, %v4393
        %v4395 = vand.u32 %v4394, 4294901760
        %4396 = vmatmul.f32.gmra.mxu0 %v4395
        %v4397 = vpop.f32.mrf.mxu0
        %v4398 = vadd.f32 %v4374, %v4397
        %4399 = vdwg.mxu0
        %4400 = vmatpush.xpose.msra.mxu0 0.0
        %4401 = vmatpush.xpose.msra.mxu0 0.0
        %4402 = vmatpush.xpose.msra.mxu0 0.0
        %4403 = vmatpush.xpose.msra.mxu0 0.0
        %4404 = vmatpush.xpose.msra.mxu0 0.0
        %4405 = vmatpush.xpose.msra.mxu0 0.0
        %4406 = vmatpush.xpose.msra.mxu0 0.0
        %4407 = vmatpush.xpose.msra.mxu0 0.0
        %4408 = vmatpush.xpose.msra.mxu0 0.0
        %4409 = vmatpush.xpose.msra.mxu0 0.0
        %4410 = vmatpush.xpose.msra.mxu0 0.0
        %4411 = vmatpush.xpose.msra.mxu0 0.0
        %4412 = vmatpush.xpose.msra.mxu0 0.0
        %4413 = vmatpush.xpose.msra.mxu0 0.0
        %4414 = vmatpush.xpose.msra.mxu0 0.0
        %v4415 = vand.u32 %v3842, 4294901760
        %v4416 = vsub.f32 %v3842, %v4415
        %v4417 = vand.u32 %v4416, 4294901760
        %4418 = vmatpush.xpose.msra.mxu0 %v4417
        %v4419 = vand.u32 %v3850, 4294901760
        %4420 = vmatmul.f32.gmra.mxu0 %v4419
        %v4421 = vpop.f32.mrf.mxu0
        %v4422 = vadd.f32 %v4398, %v4421
        %4423 = vdwg.mxu0
        %4424 = vmatpush.xpose.msra.mxu0 0.0
        %4425 = vmatpush.xpose.msra.mxu0 0.0
        %4426 = vmatpush.xpose.msra.mxu0 0.0
        %4427 = vmatpush.xpose.msra.mxu0 0.0
        %4428 = vmatpush.xpose.msra.mxu0 0.0
        %4429 = vmatpush.xpose.msra.mxu0 0.0
        %4430 = vmatpush.xpose.msra.mxu0 0.0
        %4431 = vmatpush.xpose.msra.mxu0 0.0
        %4432 = vmatpush.xpose.msra.mxu0 0.0
        %4433 = vmatpush.xpose.msra.mxu0 0.0
        %4434 = vmatpush.xpose.msra.mxu0 0.0
        %4435 = vmatpush.xpose.msra.mxu0 0.0
        %4436 = vmatpush.xpose.msra.mxu0 0.0
        %4437 = vmatpush.xpose.msra.mxu0 0.0
        %4438 = vmatpush.xpose.msra.mxu0 0.0
        %v4439 = vand.u32 %v3842, 4294901760
        %4440 = vmatpush.xpose.msra.mxu0 %v4439
        %v4441 = vand.u32 %v3850, 4294901760
        %4442 = vmatmul.f32.gmra.mxu0 %v4441
        %v4443 = vpop.f32.mrf.mxu0
        %v4444 = vadd.f32 %v4422, %v4443
        %4445 = vdwg.mxu0
        %4446 = vmatpush.xpose.msra.mxu0 0.0
        %4447 = vmatpush.xpose.msra.mxu0 0.0
        %4448 = vmatpush.xpose.msra.mxu0 0.0
        %4449 = vmatpush.xpose.msra.mxu0 0.0
        %4450 = vmatpush.xpose.msra.mxu0 0.0
        %4451 = vmatpush.xpose.msra.mxu0 0.0
        %4452 = vmatpush.xpose.msra.mxu0 0.0
        %4453 = vmatpush.xpose.msra.mxu0 0.0
        %4454 = vmatpush.xpose.msra.mxu0 0.0
        %4455 = vmatpush.xpose.msra.mxu0 0.0
        %4456 = vmatpush.xpose.msra.mxu0 0.0
        %4457 = vmatpush.xpose.msra.mxu0 0.0
        %4458 = vmatpush.xpose.msra.mxu0 0.0
        %4459 = vmatpush.xpose.msra.mxu0 0.0
        %4460 = vmatpush.xpose.msra.mxu0 0.0
        %v4461 = vand.u32 %v3843, 4294901760
        %4462 = vmatpush.xpose.msra.mxu0 %v4461
        %v4463 = vand.u32 %v3851, 4294901760
        %v4464 = vsub.f32 %v3851, %v4463
        %v4465 = vand.u32 %v4464, 4294901760
        %v4466 = vsub.f32 %v4464, %v4465
        %v4467 = vand.u32 %v4466, 4294901760
        %4468 = vmatmul.f32.gmra.mxu0 %v4467
        %v4469 = vpop.f32.mrf.mxu0
        %v4470 = vadd.f32 %v4444, %v4469
        %4471 = vdwg.mxu0
        %4472 = vmatpush.xpose.msra.mxu0 0.0
        %4473 = vmatpush.xpose.msra.mxu0 0.0
        %4474 = vmatpush.xpose.msra.mxu0 0.0
        %4475 = vmatpush.xpose.msra.mxu0 0.0
        %4476 = vmatpush.xpose.msra.mxu0 0.0
        %4477 = vmatpush.xpose.msra.mxu0 0.0
        %4478 = vmatpush.xpose.msra.mxu0 0.0
        %4479 = vmatpush.xpose.msra.mxu0 0.0
        %4480 = vmatpush.xpose.msra.mxu0 0.0
        %4481 = vmatpush.xpose.msra.mxu0 0.0
        %4482 = vmatpush.xpose.msra.mxu0 0.0
        %4483 = vmatpush.xpose.msra.mxu0 0.0
        %4484 = vmatpush.xpose.msra.mxu0 0.0
        %4485 = vmatpush.xpose.msra.mxu0 0.0
        %4486 = vmatpush.xpose.msra.mxu0 0.0
        %v4487 = vand.u32 %v3843, 4294901760
        %v4488 = vsub.f32 %v3843, %v4487
        %v4489 = vand.u32 %v4488, 4294901760
        %v4490 = vsub.f32 %v4488, %v4489
        %v4491 = vand.u32 %v4490, 4294901760
        %4492 = vmatpush.xpose.msra.mxu0 %v4491
        %v4493 = vand.u32 %v3851, 4294901760
        %4494 = vmatmul.f32.gmra.mxu0 %v4493
        %v4495 = vpop.f32.mrf.mxu0
        %v4496 = vadd.f32 %v4470, %v4495
        %4497 = vdwg.mxu0
        %4498 = vmatpush.xpose.msra.mxu0 0.0
        %4499 = vmatpush.xpose.msra.mxu0 0.0
        %4500 = vmatpush.xpose.msra.mxu0 0.0
        %4501 = vmatpush.xpose.msra.mxu0 0.0
        %4502 = vmatpush.xpose.msra.mxu0 0.0
        %4503 = vmatpush.xpose.msra.mxu0 0.0
        %4504 = vmatpush.xpose.msra.mxu0 0.0
        %4505 = vmatpush.xpose.msra.mxu0 0.0
        %4506 = vmatpush.xpose.msra.mxu0 0.0
        %4507 = vmatpush.xpose.msra.mxu0 0.0
        %4508 = vmatpush.xpose.msra.mxu0 0.0
        %4509 = vmatpush.xpose.msra.mxu0 0.0
        %4510 = vmatpush.xpose.msra.mxu0 0.0
        %4511 = vmatpush.xpose.msra.mxu0 0.0
        %4512 = vmatpush.xpose.msra.mxu0 0.0
        %v4513 = vand.u32 %v3843, 4294901760
        %v4514 = vsub.f32 %v3843, %v4513
        %4515 = vmatpush.xpose.msra.mxu0 %v4514
        %v4516 = vand.u32 %v3851, 4294901760
        %v4517 = vsub.f32 %v3851, %v4516
        %4518 = vmatmul.f32.gmra.mxu0 %v4517
        %v4519 = vpop.f32.mrf.mxu0
        %v4520 = vadd.f32 %v4496, %v4519
        %4521 = vdwg.mxu0
        %4522 = vmatpush.xpose.msra.mxu0 0.0
        %4523 = vmatpush.xpose.msra.mxu0 0.0
        %4524 = vmatpush.xpose.msra.mxu0 0.0
        %4525 = vmatpush.xpose.msra.mxu0 0.0
        %4526 = vmatpush.xpose.msra.mxu0 0.0
        %4527 = vmatpush.xpose.msra.mxu0 0.0
        %4528 = vmatpush.xpose.msra.mxu0 0.0
        %4529 = vmatpush.xpose.msra.mxu0 0.0
        %4530 = vmatpush.xpose.msra.mxu0 0.0
        %4531 = vmatpush.xpose.msra.mxu0 0.0
        %4532 = vmatpush.xpose.msra.mxu0 0.0
        %4533 = vmatpush.xpose.msra.mxu0 0.0
        %4534 = vmatpush.xpose.msra.mxu0 0.0
        %4535 = vmatpush.xpose.msra.mxu0 0.0
        %4536 = vmatpush.xpose.msra.mxu0 0.0
        %v4537 = vand.u32 %v3843, 4294901760
        %4538 = vmatpush.xpose.msra.mxu0 %v4537
        %v4539 = vand.u32 %v3851, 4294901760
        %v4540 = vsub.f32 %v3851, %v4539
        %v4541 = vand.u32 %v4540, 4294901760
        %4542 = vmatmul.f32.gmra.mxu0 %v4541
        %v4543 = vpop.f32.mrf.mxu0
        %v4544 = vadd.f32 %v4520, %v4543
        %4545 = vdwg.mxu0
        %4546 = vmatpush.xpose.msra.mxu0 0.0
        %4547 = vmatpush.xpose.msra.mxu0 0.0
        %4548 = vmatpush.xpose.msra.mxu0 0.0
        %4549 = vmatpush.xpose.msra.mxu0 0.0
        %4550 = vmatpush.xpose.msra.mxu0 0.0
        %4551 = vmatpush.xpose.msra.mxu0 0.0
        %4552 = vmatpush.xpose.msra.mxu0 0.0
        %4553 = vmatpush.xpose.msra.mxu0 0.0
        %4554 = vmatpush.xpose.msra.mxu0 0.0
        %4555 = vmatpush.xpose.msra.mxu0 0.0
        %4556 = vmatpush.xpose.msra.mxu0 0.0
        %4557 = vmatpush.xpose.msra.mxu0 0.0
        %4558 = vmatpush.xpose.msra.mxu0 0.0
        %4559 = vmatpush.xpose.msra.mxu0 0.0
        %4560 = vmatpush.xpose.msra.mxu0 0.0
        %v4561 = vand.u32 %v3843, 4294901760
        %v4562 = vsub.f32 %v3843, %v4561
        %v4563 = vand.u32 %v4562, 4294901760
        %4564 = vmatpush.xpose.msra.mxu0 %v4563
        %v4565 = vand.u32 %v3851, 4294901760
        %4566 = vmatmul.f32.gmra.mxu0 %v4565
        %v4567 = vpop.f32.mrf.mxu0
        %v4568 = vadd.f32 %v4544, %v4567
        %4569 = vdwg.mxu0
        %4570 = vmatpush.xpose.msra.mxu0 0.0
        %4571 = vmatpush.xpose.msra.mxu0 0.0
        %4572 = vmatpush.xpose.msra.mxu0 0.0
        %4573 = vmatpush.xpose.msra.mxu0 0.0
        %4574 = vmatpush.xpose.msra.mxu0 0.0
        %4575 = vmatpush.xpose.msra.mxu0 0.0
        %4576 = vmatpush.xpose.msra.mxu0 0.0
        %4577 = vmatpush.xpose.msra.mxu0 0.0
        %4578 = vmatpush.xpose.msra.mxu0 0.0
        %4579 = vmatpush.xpose.msra.mxu0 0.0
        %4580 = vmatpush.xpose.msra.mxu0 0.0
        %4581 = vmatpush.xpose.msra.mxu0 0.0
        %4582 = vmatpush.xpose.msra.mxu0 0.0
        %4583 = vmatpush.xpose.msra.mxu0 0.0
        %4584 = vmatpush.xpose.msra.mxu0 0.0
        %v4585 = vand.u32 %v3843, 4294901760
        %4586 = vmatpush.xpose.msra.mxu0 %v4585
        %v4587 = vand.u32 %v3851, 4294901760
        %4588 = vmatmul.f32.gmra.mxu0 %v4587
        %v4589 = vpop.f32.mrf.mxu0
        %v4590 = vadd.f32 %v4568, %v4589
        %4591 = vdwg.mxu0
        %4592 = vmatpush.xpose.msra.mxu0 0.0
        %4593 = vmatpush.xpose.msra.mxu0 0.0
        %4594 = vmatpush.xpose.msra.mxu0 0.0
        %4595 = vmatpush.xpose.msra.mxu0 0.0
        %4596 = vmatpush.xpose.msra.mxu0 0.0
        %4597 = vmatpush.xpose.msra.mxu0 0.0
        %4598 = vmatpush.xpose.msra.mxu0 0.0
        %4599 = vmatpush.xpose.msra.mxu0 0.0
        %4600 = vmatpush.xpose.msra.mxu0 0.0
        %4601 = vmatpush.xpose.msra.mxu0 0.0
        %4602 = vmatpush.xpose.msra.mxu0 0.0
        %4603 = vmatpush.xpose.msra.mxu0 0.0
        %4604 = vmatpush.xpose.msra.mxu0 0.0
        %4605 = vmatpush.xpose.msra.mxu0 0.0
        %4606 = vmatpush.xpose.msra.mxu0 0.0
        %v4607 = vand.u32 %v3844, 4294901760
        %4608 = vmatpush.xpose.msra.mxu0 %v4607
        %v4609 = vand.u32 %v3852, 4294901760
        %v4610 = vsub.f32 %v3852, %v4609
        %v4611 = vand.u32 %v4610, 4294901760
        %v4612 = vsub.f32 %v4610, %v4611
        %v4613 = vand.u32 %v4612, 4294901760
        %4614 = vmatmul.f32.gmra.mxu0 %v4613
        %v4615 = vpop.f32.mrf.mxu0
        %v4616 = vadd.f32 %v4590, %v4615
        %4617 = vdwg.mxu0
        %4618 = vmatpush.xpose.msra.mxu0 0.0
        %4619 = vmatpush.xpose.msra.mxu0 0.0
        %4620 = vmatpush.xpose.msra.mxu0 0.0
        %4621 = vmatpush.xpose.msra.mxu0 0.0
        %4622 = vmatpush.xpose.msra.mxu0 0.0
        %4623 = vmatpush.xpose.msra.mxu0 0.0
        %4624 = vmatpush.xpose.msra.mxu0 0.0
        %4625 = vmatpush.xpose.msra.mxu0 0.0
        %4626 = vmatpush.xpose.msra.mxu0 0.0
        %4627 = vmatpush.xpose.msra.mxu0 0.0
        %4628 = vmatpush.xpose.msra.mxu0 0.0
        %4629 = vmatpush.xpose.msra.mxu0 0.0
        %4630 = vmatpush.xpose.msra.mxu0 0.0
        %4631 = vmatpush.xpose.msra.mxu0 0.0
        %4632 = vmatpush.xpose.msra.mxu0 0.0
        %v4633 = vand.u32 %v3844, 4294901760
        %v4634 = vsub.f32 %v3844, %v4633
        %v4635 = vand.u32 %v4634, 4294901760
        %v4636 = vsub.f32 %v4634, %v4635
        %v4637 = vand.u32 %v4636, 4294901760
        %4638 = vmatpush.xpose.msra.mxu0 %v4637
        %v4639 = vand.u32 %v3852, 4294901760
        %4640 = vmatmul.f32.gmra.mxu0 %v4639
        %v4641 = vpop.f32.mrf.mxu0
        %v4642 = vadd.f32 %v4616, %v4641
        %4643 = vdwg.mxu0
        %4644 = vmatpush.xpose.msra.mxu0 0.0
        %4645 = vmatpush.xpose.msra.mxu0 0.0
        %4646 = vmatpush.xpose.msra.mxu0 0.0
        %4647 = vmatpush.xpose.msra.mxu0 0.0
        %4648 = vmatpush.xpose.msra.mxu0 0.0
        %4649 = vmatpush.xpose.msra.mxu0 0.0
        %4650 = vmatpush.xpose.msra.mxu0 0.0
        %4651 = vmatpush.xpose.msra.mxu0 0.0
        %4652 = vmatpush.xpose.msra.mxu0 0.0
        %4653 = vmatpush.xpose.msra.mxu0 0.0
        %4654 = vmatpush.xpose.msra.mxu0 0.0
        %4655 = vmatpush.xpose.msra.mxu0 0.0
        %4656 = vmatpush.xpose.msra.mxu0 0.0
        %4657 = vmatpush.xpose.msra.mxu0 0.0
        %4658 = vmatpush.xpose.msra.mxu0 0.0
        %v4659 = vand.u32 %v3844, 4294901760
        %v4660 = vsub.f32 %v3844, %v4659
        %4661 = vmatpush.xpose.msra.mxu0 %v4660
        %v4662 = vand.u32 %v3852, 4294901760
        %v4663 = vsub.f32 %v3852, %v4662
        %4664 = vmatmul.f32.gmra.mxu0 %v4663
        %v4665 = vpop.f32.mrf.mxu0
        %v4666 = vadd.f32 %v4642, %v4665
        %4667 = vdwg.mxu0
        %4668 = vmatpush.xpose.msra.mxu0 0.0
        %4669 = vmatpush.xpose.msra.mxu0 0.0
        %4670 = vmatpush.xpose.msra.mxu0 0.0
        %4671 = vmatpush.xpose.msra.mxu0 0.0
        %4672 = vmatpush.xpose.msra.mxu0 0.0
        %4673 = vmatpush.xpose.msra.mxu0 0.0
        %4674 = vmatpush.xpose.msra.mxu0 0.0
        %4675 = vmatpush.xpose.msra.mxu0 0.0
        %4676 = vmatpush.xpose.msra.mxu0 0.0
        %4677 = vmatpush.xpose.msra.mxu0 0.0
        %4678 = vmatpush.xpose.msra.mxu0 0.0
        %4679 = vmatpush.xpose.msra.mxu0 0.0
        %4680 = vmatpush.xpose.msra.mxu0 0.0
        %4681 = vmatpush.xpose.msra.mxu0 0.0
        %4682 = vmatpush.xpose.msra.mxu0 0.0
        %v4683 = vand.u32 %v3844, 4294901760
        %4684 = vmatpush.xpose.msra.mxu0 %v4683
        %v4685 = vand.u32 %v3852, 4294901760
        %v4686 = vsub.f32 %v3852, %v4685
        %v4687 = vand.u32 %v4686, 4294901760
        %4688 = vmatmul.f32.gmra.mxu0 %v4687
        %v4689 = vpop.f32.mrf.mxu0
        %v4690 = vadd.f32 %v4666, %v4689
        %4691 = vdwg.mxu0
        %4692 = vmatpush.xpose.msra.mxu0 0.0
        %4693 = vmatpush.xpose.msra.mxu0 0.0
        %4694 = vmatpush.xpose.msra.mxu0 0.0
        %4695 = vmatpush.xpose.msra.mxu0 0.0
        %4696 = vmatpush.xpose.msra.mxu0 0.0
        %4697 = vmatpush.xpose.msra.mxu0 0.0
        %4698 = vmatpush.xpose.msra.mxu0 0.0
        %4699 = vmatpush.xpose.msra.mxu0 0.0
        %4700 = vmatpush.xpose.msra.mxu0 0.0
        %4701 = vmatpush.xpose.msra.mxu0 0.0
        %4702 = vmatpush.xpose.msra.mxu0 0.0
        %4703 = vmatpush.xpose.msra.mxu0 0.0
        %4704 = vmatpush.xpose.msra.mxu0 0.0
        %4705 = vmatpush.xpose.msra.mxu0 0.0
        %4706 = vmatpush.xpose.msra.mxu0 0.0
        %v4707 = vand.u32 %v3844, 4294901760
        %v4708 = vsub.f32 %v3844, %v4707
        %v4709 = vand.u32 %v4708, 4294901760
        %4710 = vmatpush.xpose.msra.mxu0 %v4709
        %v4711 = vand.u32 %v3852, 4294901760
        %4712 = vmatmul.f32.gmra.mxu0 %v4711
        %v4713 = vpop.f32.mrf.mxu0
        %v4714 = vadd.f32 %v4690, %v4713
        %4715 = vdwg.mxu0
        %4716 = vmatpush.xpose.msra.mxu0 0.0
        %4717 = vmatpush.xpose.msra.mxu0 0.0
        %4718 = vmatpush.xpose.msra.mxu0 0.0
        %4719 = vmatpush.xpose.msra.mxu0 0.0
        %4720 = vmatpush.xpose.msra.mxu0 0.0
        %4721 = vmatpush.xpose.msra.mxu0 0.0
        %4722 = vmatpush.xpose.msra.mxu0 0.0
        %4723 = vmatpush.xpose.msra.mxu0 0.0
        %4724 = vmatpush.xpose.msra.mxu0 0.0
        %4725 = vmatpush.xpose.msra.mxu0 0.0
        %4726 = vmatpush.xpose.msra.mxu0 0.0
        %4727 = vmatpush.xpose.msra.mxu0 0.0
        %4728 = vmatpush.xpose.msra.mxu0 0.0
        %4729 = vmatpush.xpose.msra.mxu0 0.0
        %4730 = vmatpush.xpose.msra.mxu0 0.0
        %v4731 = vand.u32 %v3844, 4294901760
        %4732 = vmatpush.xpose.msra.mxu0 %v4731
        %v4733 = vand.u32 %v3852, 4294901760
        %4734 = vmatmul.f32.gmra.mxu0 %v4733
        %v4735 = vpop.f32.mrf.mxu0
        %v4736 = vadd.f32 %v4714, %v4735
        %4737 = vdwg.mxu0
        %4738 = vmatpush.xpose.msra.mxu0 0.0
        %4739 = vmatpush.xpose.msra.mxu0 0.0
        %4740 = vmatpush.xpose.msra.mxu0 0.0
        %4741 = vmatpush.xpose.msra.mxu0 0.0
        %4742 = vmatpush.xpose.msra.mxu0 0.0
        %4743 = vmatpush.xpose.msra.mxu0 0.0
        %4744 = vmatpush.xpose.msra.mxu0 0.0
        %4745 = vmatpush.xpose.msra.mxu0 0.0
        %4746 = vmatpush.xpose.msra.mxu0 0.0
        %4747 = vmatpush.xpose.msra.mxu0 0.0
        %4748 = vmatpush.xpose.msra.mxu0 0.0
        %4749 = vmatpush.xpose.msra.mxu0 0.0
        %4750 = vmatpush.xpose.msra.mxu0 0.0
        %4751 = vmatpush.xpose.msra.mxu0 0.0
        %4752 = vmatpush.xpose.msra.mxu0 0.0
        %v4753 = vand.u32 %v3845, 4294901760
        %4754 = vmatpush.xpose.msra.mxu0 %v4753
        %v4755 = vand.u32 %v3853, 4294901760
        %v4756 = vsub.f32 %v3853, %v4755
        %v4757 = vand.u32 %v4756, 4294901760
        %v4758 = vsub.f32 %v4756, %v4757
        %v4759 = vand.u32 %v4758, 4294901760
        %4760 = vmatmul.f32.gmra.mxu0 %v4759
        %v4761 = vpop.f32.mrf.mxu0
        %v4762 = vadd.f32 %v4736, %v4761
        %4763 = vdwg.mxu0
        %4764 = vmatpush.xpose.msra.mxu0 0.0
        %4765 = vmatpush.xpose.msra.mxu0 0.0
        %4766 = vmatpush.xpose.msra.mxu0 0.0
        %4767 = vmatpush.xpose.msra.mxu0 0.0
        %4768 = vmatpush.xpose.msra.mxu0 0.0
        %4769 = vmatpush.xpose.msra.mxu0 0.0
        %4770 = vmatpush.xpose.msra.mxu0 0.0
        %4771 = vmatpush.xpose.msra.mxu0 0.0
        %4772 = vmatpush.xpose.msra.mxu0 0.0
        %4773 = vmatpush.xpose.msra.mxu0 0.0
        %4774 = vmatpush.xpose.msra.mxu0 0.0
        %4775 = vmatpush.xpose.msra.mxu0 0.0
        %4776 = vmatpush.xpose.msra.mxu0 0.0
        %4777 = vmatpush.xpose.msra.mxu0 0.0
        %4778 = vmatpush.xpose.msra.mxu0 0.0
        %v4779 = vand.u32 %v3845, 4294901760
        %v4780 = vsub.f32 %v3845, %v4779
        %v4781 = vand.u32 %v4780, 4294901760
        %v4782 = vsub.f32 %v4780, %v4781
        %v4783 = vand.u32 %v4782, 4294901760
        %4784 = vmatpush.xpose.msra.mxu0 %v4783
        %v4785 = vand.u32 %v3853, 4294901760
        %4786 = vmatmul.f32.gmra.mxu0 %v4785
        %v4787 = vpop.f32.mrf.mxu0
        %v4788 = vadd.f32 %v4762, %v4787
        %4789 = vdwg.mxu0
        %4790 = vmatpush.xpose.msra.mxu0 0.0
        %4791 = vmatpush.xpose.msra.mxu0 0.0
        %4792 = vmatpush.xpose.msra.mxu0 0.0
        %4793 = vmatpush.xpose.msra.mxu0 0.0
        %4794 = vmatpush.xpose.msra.mxu0 0.0
        %4795 = vmatpush.xpose.msra.mxu0 0.0
        %4796 = vmatpush.xpose.msra.mxu0 0.0
        %4797 = vmatpush.xpose.msra.mxu0 0.0
        %4798 = vmatpush.xpose.msra.mxu0 0.0
        %4799 = vmatpush.xpose.msra.mxu0 0.0
        %4800 = vmatpush.xpose.msra.mxu0 0.0
        %4801 = vmatpush.xpose.msra.mxu0 0.0
        %4802 = vmatpush.xpose.msra.mxu0 0.0
        %4803 = vmatpush.xpose.msra.mxu0 0.0
        %4804 = vmatpush.xpose.msra.mxu0 0.0
        %v4805 = vand.u32 %v3845, 4294901760
        %v4806 = vsub.f32 %v3845, %v4805
        %4807 = vmatpush.xpose.msra.mxu0 %v4806
        %v4808 = vand.u32 %v3853, 4294901760
        %v4809 = vsub.f32 %v3853, %v4808
        %4810 = vmatmul.f32.gmra.mxu0 %v4809
        %v4811 = vpop.f32.mrf.mxu0
        %v4812 = vadd.f32 %v4788, %v4811
        %4813 = vdwg.mxu0
        %4814 = vmatpush.xpose.msra.mxu0 0.0
        %4815 = vmatpush.xpose.msra.mxu0 0.0
        %4816 = vmatpush.xpose.msra.mxu0 0.0
        %4817 = vmatpush.xpose.msra.mxu0 0.0
        %4818 = vmatpush.xpose.msra.mxu0 0.0
        %4819 = vmatpush.xpose.msra.mxu0 0.0
        %4820 = vmatpush.xpose.msra.mxu0 0.0
        %4821 = vmatpush.xpose.msra.mxu0 0.0
        %4822 = vmatpush.xpose.msra.mxu0 0.0
        %4823 = vmatpush.xpose.msra.mxu0 0.0
        %4824 = vmatpush.xpose.msra.mxu0 0.0
        %4825 = vmatpush.xpose.msra.mxu0 0.0
        %4826 = vmatpush.xpose.msra.mxu0 0.0
        %4827 = vmatpush.xpose.msra.mxu0 0.0
        %4828 = vmatpush.xpose.msra.mxu0 0.0
        %v4829 = vand.u32 %v3845, 4294901760
        %4830 = vmatpush.xpose.msra.mxu0 %v4829
        %v4831 = vand.u32 %v3853, 4294901760
        %v4832 = vsub.f32 %v3853, %v4831
        %v4833 = vand.u32 %v4832, 4294901760
        %4834 = vmatmul.f32.gmra.mxu0 %v4833
        %v4835 = vpop.f32.mrf.mxu0
        %v4836 = vadd.f32 %v4812, %v4835
        %4837 = vdwg.mxu0
        %4838 = vmatpush.xpose.msra.mxu0 0.0
        %4839 = vmatpush.xpose.msra.mxu0 0.0
        %4840 = vmatpush.xpose.msra.mxu0 0.0
        %4841 = vmatpush.xpose.msra.mxu0 0.0
        %4842 = vmatpush.xpose.msra.mxu0 0.0
        %4843 = vmatpush.xpose.msra.mxu0 0.0
        %4844 = vmatpush.xpose.msra.mxu0 0.0
        %4845 = vmatpush.xpose.msra.mxu0 0.0
        %4846 = vmatpush.xpose.msra.mxu0 0.0
        %4847 = vmatpush.xpose.msra.mxu0 0.0
        %4848 = vmatpush.xpose.msra.mxu0 0.0
        %4849 = vmatpush.xpose.msra.mxu0 0.0
        %4850 = vmatpush.xpose.msra.mxu0 0.0
        %4851 = vmatpush.xpose.msra.mxu0 0.0
        %4852 = vmatpush.xpose.msra.mxu0 0.0
        %v4853 = vand.u32 %v3845, 4294901760
        %v4854 = vsub.f32 %v3845, %v4853
        %v4855 = vand.u32 %v4854, 4294901760
        %4856 = vmatpush.xpose.msra.mxu0 %v4855
        %v4857 = vand.u32 %v3853, 4294901760
        %4858 = vmatmul.f32.gmra.mxu0 %v4857
        %v4859 = vpop.f32.mrf.mxu0
        %v4860 = vadd.f32 %v4836, %v4859
        %4861 = vdwg.mxu0
        %4862 = vmatpush.xpose.msra.mxu0 0.0
        %4863 = vmatpush.xpose.msra.mxu0 0.0
        %4864 = vmatpush.xpose.msra.mxu0 0.0
        %4865 = vmatpush.xpose.msra.mxu0 0.0
        %4866 = vmatpush.xpose.msra.mxu0 0.0
        %4867 = vmatpush.xpose.msra.mxu0 0.0
        %4868 = vmatpush.xpose.msra.mxu0 0.0
        %4869 = vmatpush.xpose.msra.mxu0 0.0
        %4870 = vmatpush.xpose.msra.mxu0 0.0
        %4871 = vmatpush.xpose.msra.mxu0 0.0
        %4872 = vmatpush.xpose.msra.mxu0 0.0
        %4873 = vmatpush.xpose.msra.mxu0 0.0
        %4874 = vmatpush.xpose.msra.mxu0 0.0
        %4875 = vmatpush.xpose.msra.mxu0 0.0
        %4876 = vmatpush.xpose.msra.mxu0 0.0
        %v4877 = vand.u32 %v3845, 4294901760
        %4878 = vmatpush.xpose.msra.mxu0 %v4877
        %v4879 = vand.u32 %v3853, 4294901760
        %4880 = vmatmul.f32.gmra.mxu0 %v4879
        %v4881 = vpop.f32.mrf.mxu0
        %v4882 = vadd.f32 %v4860, %v4881
        %4883 = vdwg.mxu0
        %4884 = vmatpush.xpose.msra.mxu0 0.0
        %4885 = vmatpush.xpose.msra.mxu0 0.0
        %4886 = vmatpush.xpose.msra.mxu0 0.0
        %4887 = vmatpush.xpose.msra.mxu0 0.0
        %4888 = vmatpush.xpose.msra.mxu0 0.0
        %4889 = vmatpush.xpose.msra.mxu0 0.0
        %4890 = vmatpush.xpose.msra.mxu0 0.0
        %4891 = vmatpush.xpose.msra.mxu0 0.0
        %4892 = vmatpush.xpose.msra.mxu0 0.0
        %4893 = vmatpush.xpose.msra.mxu0 0.0
        %4894 = vmatpush.xpose.msra.mxu0 0.0
        %4895 = vmatpush.xpose.msra.mxu0 0.0
        %4896 = vmatpush.xpose.msra.mxu0 0.0
        %4897 = vmatpush.xpose.msra.mxu0 0.0
        %4898 = vmatpush.xpose.msra.mxu0 0.0
        %v4899 = vand.u32 %v3846, 4294901760
        %4900 = vmatpush.xpose.msra.mxu0 %v4899
        %v4901 = vand.u32 %v3854, 4294901760
        %v4902 = vsub.f32 %v3854, %v4901
        %v4903 = vand.u32 %v4902, 4294901760
        %v4904 = vsub.f32 %v4902, %v4903
        %v4905 = vand.u32 %v4904, 4294901760
        %4906 = vmatmul.f32.gmra.mxu0 %v4905
        %v4907 = vpop.f32.mrf.mxu0
        %v4908 = vadd.f32 %v4882, %v4907
        %4909 = vdwg.mxu0
        %4910 = vmatpush.xpose.msra.mxu0 0.0
        %4911 = vmatpush.xpose.msra.mxu0 0.0
        %4912 = vmatpush.xpose.msra.mxu0 0.0
        %4913 = vmatpush.xpose.msra.mxu0 0.0
        %4914 = vmatpush.xpose.msra.mxu0 0.0
        %4915 = vmatpush.xpose.msra.mxu0 0.0
        %4916 = vmatpush.xpose.msra.mxu0 0.0
        %4917 = vmatpush.xpose.msra.mxu0 0.0
        %4918 = vmatpush.xpose.msra.mxu0 0.0
        %4919 = vmatpush.xpose.msra.mxu0 0.0
        %4920 = vmatpush.xpose.msra.mxu0 0.0
        %4921 = vmatpush.xpose.msra.mxu0 0.0
        %4922 = vmatpush.xpose.msra.mxu0 0.0
        %4923 = vmatpush.xpose.msra.mxu0 0.0
        %4924 = vmatpush.xpose.msra.mxu0 0.0
        %v4925 = vand.u32 %v3846, 4294901760
        %v4926 = vsub.f32 %v3846, %v4925
        %v4927 = vand.u32 %v4926, 4294901760
        %v4928 = vsub.f32 %v4926, %v4927
        %v4929 = vand.u32 %v4928, 4294901760
        %4930 = vmatpush.xpose.msra.mxu0 %v4929
        %v4931 = vand.u32 %v3854, 4294901760
        %4932 = vmatmul.f32.gmra.mxu0 %v4931
        %v4933 = vpop.f32.mrf.mxu0
        %v4934 = vadd.f32 %v4908, %v4933
        %4935 = vdwg.mxu0
        %4936 = vmatpush.xpose.msra.mxu0 0.0
        %4937 = vmatpush.xpose.msra.mxu0 0.0
        %4938 = vmatpush.xpose.msra.mxu0 0.0
        %4939 = vmatpush.xpose.msra.mxu0 0.0
        %4940 = vmatpush.xpose.msra.mxu0 0.0
        %4941 = vmatpush.xpose.msra.mxu0 0.0
        %4942 = vmatpush.xpose.msra.mxu0 0.0
        %4943 = vmatpush.xpose.msra.mxu0 0.0
        %4944 = vmatpush.xpose.msra.mxu0 0.0
        %4945 = vmatpush.xpose.msra.mxu0 0.0
        %4946 = vmatpush.xpose.msra.mxu0 0.0
        %4947 = vmatpush.xpose.msra.mxu0 0.0
        %4948 = vmatpush.xpose.msra.mxu0 0.0
        %4949 = vmatpush.xpose.msra.mxu0 0.0
        %4950 = vmatpush.xpose.msra.mxu0 0.0
        %v4951 = vand.u32 %v3846, 4294901760
        %v4952 = vsub.f32 %v3846, %v4951
        %4953 = vmatpush.xpose.msra.mxu0 %v4952
        %v4954 = vand.u32 %v3854, 4294901760
        %v4955 = vsub.f32 %v3854, %v4954
        %4956 = vmatmul.f32.gmra.mxu0 %v4955
        %v4957 = vpop.f32.mrf.mxu0
        %v4958 = vadd.f32 %v4934, %v4957
        %4959 = vdwg.mxu0
        %4960 = vmatpush.xpose.msra.mxu0 0.0
        %4961 = vmatpush.xpose.msra.mxu0 0.0
        %4962 = vmatpush.xpose.msra.mxu0 0.0
        %4963 = vmatpush.xpose.msra.mxu0 0.0
        %4964 = vmatpush.xpose.msra.mxu0 0.0
        %4965 = vmatpush.xpose.msra.mxu0 0.0
        %4966 = vmatpush.xpose.msra.mxu0 0.0
        %4967 = vmatpush.xpose.msra.mxu0 0.0
        %4968 = vmatpush.xpose.msra.mxu0 0.0
        %4969 = vmatpush.xpose.msra.mxu0 0.0
        %4970 = vmatpush.xpose.msra.mxu0 0.0
        %4971 = vmatpush.xpose.msra.mxu0 0.0
        %4972 = vmatpush.xpose.msra.mxu0 0.0
        %4973 = vmatpush.xpose.msra.mxu0 0.0
        %4974 = vmatpush.xpose.msra.mxu0 0.0
        %v4975 = vand.u32 %v3846, 4294901760
        %4976 = vmatpush.xpose.msra.mxu0 %v4975
        %v4977 = vand.u32 %v3854, 4294901760
        %v4978 = vsub.f32 %v3854, %v4977
        %v4979 = vand.u32 %v4978, 4294901760
        %4980 = vmatmul.f32.gmra.mxu0 %v4979
        %v4981 = vpop.f32.mrf.mxu0
        %v4982 = vadd.f32 %v4958, %v4981
        %4983 = vdwg.mxu0
        %4984 = vmatpush.xpose.msra.mxu0 0.0
        %4985 = vmatpush.xpose.msra.mxu0 0.0
        %4986 = vmatpush.xpose.msra.mxu0 0.0
        %4987 = vmatpush.xpose.msra.mxu0 0.0
        %4988 = vmatpush.xpose.msra.mxu0 0.0
        %4989 = vmatpush.xpose.msra.mxu0 0.0
        %4990 = vmatpush.xpose.msra.mxu0 0.0
        %4991 = vmatpush.xpose.msra.mxu0 0.0
        %4992 = vmatpush.xpose.msra.mxu0 0.0
        %4993 = vmatpush.xpose.msra.mxu0 0.0
        %4994 = vmatpush.xpose.msra.mxu0 0.0
        %4995 = vmatpush.xpose.msra.mxu0 0.0
        %4996 = vmatpush.xpose.msra.mxu0 0.0
        %4997 = vmatpush.xpose.msra.mxu0 0.0
        %4998 = vmatpush.xpose.msra.mxu0 0.0
        %v4999 = vand.u32 %v3846, 4294901760
        %v5000 = vsub.f32 %v3846, %v4999
        %v5001 = vand.u32 %v5000, 4294901760
        %5002 = vmatpush.xpose.msra.mxu0 %v5001
        %v5003 = vand.u32 %v3854, 4294901760
        %5004 = vmatmul.f32.gmra.mxu0 %v5003
        %v5005 = vpop.f32.mrf.mxu0
        %v5006 = vadd.f32 %v4982, %v5005
        %5007 = vdwg.mxu0
        %5008 = vmatpush.xpose.msra.mxu0 0.0
        %5009 = vmatpush.xpose.msra.mxu0 0.0
        %5010 = vmatpush.xpose.msra.mxu0 0.0
        %5011 = vmatpush.xpose.msra.mxu0 0.0
        %5012 = vmatpush.xpose.msra.mxu0 0.0
        %5013 = vmatpush.xpose.msra.mxu0 0.0
        %5014 = vmatpush.xpose.msra.mxu0 0.0
        %5015 = vmatpush.xpose.msra.mxu0 0.0
        %5016 = vmatpush.xpose.msra.mxu0 0.0
        %5017 = vmatpush.xpose.msra.mxu0 0.0
        %5018 = vmatpush.xpose.msra.mxu0 0.0
        %5019 = vmatpush.xpose.msra.mxu0 0.0
        %5020 = vmatpush.xpose.msra.mxu0 0.0
        %5021 = vmatpush.xpose.msra.mxu0 0.0
        %5022 = vmatpush.xpose.msra.mxu0 0.0
        %v5023 = vand.u32 %v3846, 4294901760
        %5024 = vmatpush.xpose.msra.mxu0 %v5023
        %v5025 = vand.u32 %v3854, 4294901760
        %5026 = vmatmul.f32.gmra.mxu0 %v5025
        %v5027 = vpop.f32.mrf.mxu0
        %v5028 = vadd.f32 %v5006, %v5027
        %5029 = vdwg.mxu0
        %v5030 = vadd.f32 %v5028, %v3838
        %v5031 = vtanh.pop %v5030
        %vm5032 = vcmask 64512
        %5033 = vst.msk [vmem:[%s257] sm:$0xff] %vm5032, %v5031
        %s5034 = sand.u32 %s166, 1
        %s5035 = scalar_lea.sflag [#allocation4], %s5034
        %s5036 = sand.u32 %s166, 1
        %s5037 = smul.addr %s5036, 8
        %s5038 = scalar_lea.vmem [#allocation3], %s5037
        // Predicated region
        $region45: #{ntn_forward_batched.1} parent=43 // pred_check
          %p5039 = pneg %p176
        $region46: #{ntn_forward_batched.1} parent=43 // pred_check_branch
          %5041 = sbr.rel (%p5039) target = $region48
        $region47: #{ntn_forward_batched.1} parent=43 // pred_region
          %5043 = vsyncadd %s5035, 0
          %s5044 = smul.addr %s22, 8
          %s5045 = scalar_lea.hbm %s6, %s5044
          %s5047 = sshll.u32 %s5038, 4
          %s5048 = int_to_ptr.vmem [resolvable:$true] %s5047
          %s5049 = sshll.u32 %s5045, 4
          %s5050 = int_to_ptr.hbm [resolvable:$true] %s5049
          %5052 = dma.vmem_to_hbm [thread:$0]  %s5048, 128, %s5050, %s5035
        $region48: #{ntn_forward_batched.1} parent=43 // pred_fallthru
          _
      $region44: #{ntn_forward_batched.1} parent=5 // pred_fallthru
        _
      %p5053 = scmp.le.s32.totalorder 2, %s17
      // Predicated region
      $region49: #{ntn_forward_batched.1} parent=5 // pred_check
        %p5054 = pneg %p5053
      $region50: #{ntn_forward_batched.1} parent=5 // pred_check_branch
        %5056 = sbr.rel (%p5054) target = $region52
      $region51: #{ntn_forward_batched.1} parent=5 // pred_region
        %s5057 = ssub.s32 %s17, 2
        // Predicated region
        $region53: #{ntn_forward_batched.1} parent=51 // pred_check
          %p5058 = pneg %p182
        $region54: #{ntn_forward_batched.1} parent=51 // pred_check_branch
          %5060 = sbr.rel (%p5058) target = $region56
        $region55: #{ntn_forward_batched.1} parent=51 // pred_region
          %s5061 = sand.u32 %s167, 1
          %s5062 = scalar_lea.sflag [#allocation4], %s5061
          %s5063 = sand.u32 %s167, 1
          %s5064 = smul.addr %s5063, 8
          %s5065 = scalar_lea.vmem [#allocation3], %s5064
          %5067 = dma.done %s5062, 128
        $region56: #{ntn_forward_batched.1} parent=51 // pred_fallthru
          _
      $region52: #{ntn_forward_batched.1} parent=5 // pred_fallthru
        _
    $region6: #{ntn_forward_batched.1} parent=1 // loop_footer
      %s21 = sadd.s32 1, %s17
    $region7: #{ntn_forward_batched.1} parent=1 // loop_footer_branch
      %16 = sbr.rel target = $region3
    $region8: #{ntn_forward_batched.1} parent=1 // loop_exit
      _
    %5068 = vsyncpa [#allocation4], 1
    %s5069 = scalar_lea.sflag [#allocation4], 1
    %5070 = vsyncpa %s5069, 1

</llo_original>
